<compile_context>
chip_gen: v6e
topology: v6e:2x2x1
jax: 0.10.0
libtpu: 0.0.40
codegen_flags: <defaults>
</compile_context>

<pallas_src>
import functools

import jax
import jax.numpy as jnp
from jax.experimental import pallas as pl
from jax.experimental.pallas import tpu as pltpu


CFG = dict(
    vocab_size=128,
    max_pos=32,
    type_vocab=2,
    hidden=32,
    heads=4,
    ffn=64,
    layers=2,
    num_classes=3,
)


# ----------------------------- fused Pallas kernel ---------------------------

def _bert_kernel(
    x_ref,        # (1, S, H)  embedded tokens for this batch element (f32)
    mask_ref,     # (1, 1, S)  additive key mask (0 / -1e9), f32
    emb_g_ref, emb_b_ref,              # (1, H)               f32
    wqkv_ref, bqkv_ref,                # (L, H, 3H) bf16, (L, 1, 3H) f32
    wo_ref, bo_ref,                    # (L, H, H)  f32,  (L, 1, H)  f32
    ln1_g_ref, ln1_b_ref,              # (L, 1, H)            f32
    w1_ref, b1_ref,                    # (L, H, F)  bf16, (L, 1, F)  f32
    w2_ref, b2_ref,                    # (L, F, H)  bf16, (L, 1, H)  f32
    ln2_g_ref, ln2_b_ref,              # (L, 1, H)            f32
    pool_w_ref, pool_b_ref,            # (H, H) bf16, (1, H) f32
    cls_w_ref, cls_b_ref,              # (H, C) bf16, (1, C) f32
    out_ref,                           # (1, 1, C)  logits (f32)
    *, num_layers, num_heads, head_dim, eps,
):
    H = num_heads * head_dim
    scale = 1.0 / float(head_dim) ** 0.5

    def mm(a, b):
        # bf16 MXU operands, f32 accumulation (contract a's last with b's first).
        # astype is a no-op for operands that are already bf16.
        return jax.lax.dot_general(
            a.astype(jnp.bfloat16), b.astype(jnp.bfloat16),
            dimension_numbers=(((a.ndim - 1,), (0,)), ((), ())),
            preferred_element_type=jnp.float32)

    def mm_nt(a, b):
        # a @ b.T without materializing a transpose: contract last axes of both.
        return jax.lax.dot_general(
            a.astype(jnp.bfloat16), b.astype(jnp.bfloat16),
            dimension_numbers=(((1,), (1,)), ((), ())),
            preferred_element_type=jnp.float32)

    def layernorm(x, g, b):
        mu = jnp.mean(x, axis=-1, keepdims=True)
        d = x - mu
        var = jnp.mean(d * d, axis=-1, keepdims=True)
        return d * jax.lax.rsqrt(var + eps) * g + b

    def gelu(x):
        # tanh-approx GELU; tanh runs on the EUP slot (free vs VALU).
        c = jnp.float32(0.7978845608028654)  # sqrt(2/pi)
        return 0.5 * x * (1.0 + jnp.tanh(c * (x + 0.044715 * x * x * x)))

    x = x_ref[0].astype(jnp.float32)                       # (S, H)
    S = x.shape[0]
    # Hoist the key-mask broadcast out of the layer/head loops.
    mask_full = jnp.broadcast_to(mask_ref[0], (S, S))      # (S, S)

    # Residual-free embedding LayerNorm.
    h = layernorm(x, emb_g_ref[...], emb_b_ref[...])

    for l in range(num_layers):                 # static unroll, weights in VMEM
        # ---- self-attention: fused QKV projection ----
        qkv = mm(h, wqkv_ref[l]) + bqkv_ref[l]              # (S, 3H) f32
        q = qkv[:, 0:H] * scale                             # fold 1/sqrt(dh) once
        k = qkv[:, H:2 * H]
        v = qkv[:, 2 * H:3 * H]

        wo = wo_ref[l]                                      # (H, H) f32
        attn = None
        for hh in range(num_heads):                         # static head loop
            sl = slice(hh * head_dim, (hh + 1) * head_dim)
            s = mm_nt(q[:, sl], k[:, sl]) + mask_full       # (S, S)
            s = s - jnp.max(s, axis=-1, keepdims=True)
            p = jnp.exp(s)
            p = p * pl.reciprocal(jnp.sum(p, axis=-1, keepdims=True), approx=True)
            ctx_h = mm(p, v[:, sl])                         # (S, dh)
            # Fold the output projection into the head loop:
            #   concat_h(ctx_h) @ Wo == sum_h ctx_h @ Wo[h]
            contrib = mm(ctx_h, wo[sl, :])                  # (S, H)
            attn = contrib if attn is None else attn + contrib
        attn = attn + bo_ref[l]
        h = layernorm(attn + h, ln1_g_ref[l], ln1_b_ref[l])

        # ---- feed-forward ----
        inter = gelu(mm(h, w1_ref[l]) + b1_ref[l])          # (S, F)
        ffn = mm(inter, w2_ref[l]) + b2_ref[l]              # (S, H)
        h = layernorm(ffn + h, ln2_g_ref[l], ln2_b_ref[l])

    # ---- pooler ([CLS] token -> dense -> tanh) + classifier, fused in-kernel ----
    cls = h[0:1, :]                                         # (1, H)
    pooled = jnp.tanh(mm(cls, pool_w_ref[...]) + pool_b_ref[...])
    logits = mm(pooled, cls_w_ref[...]) + cls_b_ref[...]    # (1, C)
    out_ref[0] = logits.astype(out_ref.dtype)


def fused_bert_encoder(emb, mask_add, params, cfg):
    """emb: (B, S, H) f32; mask_add: (B, 1, S) additive mask. Returns (B, C) logits."""
    B, S, H = emb.shape
    L, F, C = cfg["layers"], cfg["ffn"], cfg["num_classes"]
    nH = cfg["heads"]
    dh = H // nH

    kernel = functools.partial(
        _bert_kernel, num_layers=L, num_heads=nH, head_dim=dh, eps=1e-12)

    # Un-sliced matmul weights go to the MXU as bf16 (half the weight DMA, no
    # per-use casts).  wo stays f32 (it is row-sliced per head inside the kernel).
    bf = lambda a: a.astype(jnp.bfloat16)
    wqkv = bf(params["wqkv"])
    w1 = bf(params["w1"])
    w2 = bf(params["w2"])
    pool_w = bf(params["pool_w"])
    cls_w = bf(params["cls_w"])

    full = lambda b: (0, 0)          # whole-array 2-D weights
    full3 = lambda b: (0, 0, 0)      # whole-array stacked 3-D weights

    out = pl.pallas_call(
        kernel,
        out_shape=jax.ShapeDtypeStruct((B, 1, C), jnp.float32),
        grid=(B,),
        in_specs=[
            pl.BlockSpec((1, S, H), lambda b: (b, 0, 0)),       # emb
            pl.BlockSpec((1, 1, S), lambda b: (b, 0, 0)),       # mask
            pl.BlockSpec((1, H), full),                         # emb_ln_g
            pl.BlockSpec((1, H), full),                         # emb_ln_b
            pl.BlockSpec((L, H, 3 * H), full3),                 # wqkv (bf16)
            pl.BlockSpec((L, 1, 3 * H), full3),                 # bqkv
            pl.BlockSpec((L, H, H), full3),                     # wo (f32)
            pl.BlockSpec((L, 1, H), full3),                     # bo
            pl.BlockSpec((L, 1, H), full3),                     # ln1_g
            pl.BlockSpec((L, 1, H), full3),                     # ln1_b
            pl.BlockSpec((L, H, F), full3),                     # w1 (bf16)
            pl.BlockSpec((L, 1, F), full3),                     # b1
            pl.BlockSpec((L, F, H), full3),                     # w2 (bf16)
            pl.BlockSpec((L, 1, H), full3),                     # b2
            pl.BlockSpec((L, 1, H), full3),                     # ln2_g
            pl.BlockSpec((L, 1, H), full3),                     # ln2_b
            pl.BlockSpec((H, H), full),                         # pool_w (bf16)
            pl.BlockSpec((1, H), full),                         # pool_b
            pl.BlockSpec((H, C), full),                         # cls_w (bf16)
            pl.BlockSpec((1, C), full),                         # cls_b
        ],
        out_specs=pl.BlockSpec((1, 1, C), lambda b: (b, 0, 0)),
        compiler_params=pltpu.CompilerParams(
            dimension_semantics=("parallel",)),                 # v7x: 2 TCs split batch
    )(
        emb, mask_add,
        params["emb_ln_g"], params["emb_ln_b"],
        wqkv, params["bqkv"], params["wo"], params["bo"],
        params["ln1_g"], params["ln1_b"],
        w1, params["b1"], w2, params["b2"],
        params["ln2_g"], params["ln2_b"],
        pool_w, params["pool_b"], cls_w, params["cls_b"],
    )
    return out.reshape(B, C)


# --------------------------- model (glue in JAX) -----------------------------

def init_params(key, cfg):
    H, F, L, C = cfg["hidden"], cfg["ffn"], cfg["layers"], cfg["num_classes"]
    cnt = [0]

    def nxt():
        cnt[0] += 1
        return jax.random.fold_in(key, cnt[0])

    def w(shape, scale=0.02):
        return scale * jax.random.normal(nxt(), shape, dtype=jnp.float32)

    zeros = lambda s: jnp.zeros(s, jnp.float32)
    ones = lambda s: jnp.ones(s, jnp.float32)

    return {
        "word_emb": w((cfg["vocab_size"], H)),
        "pos_emb": w((cfg["max_pos"], H)),
        "type_emb": w((cfg["type_vocab"], H)),
        "emb_ln_g": ones((1, H)),
        "emb_ln_b": zeros((1, H)),
        # per-layer weights stacked along a leading layer axis (fused QKV)
        "wqkv": w((L, H, 3 * H)), "bqkv": zeros((L, 1, 3 * H)),
        "wo": w((L, H, H)), "bo": zeros((L, 1, H)),
        "ln1_g": ones((L, 1, H)), "ln1_b": zeros((L, 1, H)),
        "w1": w((L, H, F)), "b1": zeros((L, 1, F)),
        "w2": w((L, F, H)), "b2": zeros((L, 1, H)),
        "ln2_g": ones((L, 1, H)), "ln2_b": zeros((L, 1, H)),
        "pool_w": w((H, H)), "pool_b": zeros((1, H)),
        "cls_w": w((H, C)), "cls_b": zeros((1, C)),
    }


def sequence_bert_forward(params, input_ids, token_type_ids, attention_mask, cfg):
    B, S = input_ids.shape

    # embeddings (gathers are glue in plain JAX)
    pos_ids = jnp.arange(S, dtype=jnp.int32)
    emb = (jnp.take(params["word_emb"], input_ids, axis=0)
           + jnp.take(params["pos_emb"], pos_ids, axis=0)[None, :, :]
           + jnp.take(params["type_emb"], token_type_ids, axis=0)
           ).astype(jnp.float32)                                  # (B, S, H)

    # additive attention mask over keys: (B, 1, S), 0 for keep / -1e9 for pad
    mask_add = ((1.0 - attention_mask.astype(jnp.float32)) * -1e9)[:, None, :]

    logits = fused_bert_encoder(emb, mask_add, params, cfg)
    # TODO(synk): tokenizer / pretrained-checkpoint loading and the predict()
    # pipeline of the original SequenceBERT wrapper have no Pallas equivalent;
    # the forward math producing logits is what is implemented here.
    return logits


# --------------------------------- main ---------------------------------------

if __name__ == "__main__":
    key = jax.random.PRNGKey(0)
    B, S = 2, 8

    params = init_params(jax.random.fold_in(key, 123), CFG)

    input_ids = jax.random.randint(jax.random.fold_in(key, 1), (B, S),
                                   0, CFG["vocab_size"], dtype=jnp.int32)
    token_type_ids = jnp.zeros((B, S), dtype=jnp.int32)
    attention_mask = jnp.ones((B, S), dtype=jnp.int32)
    attention_mask = attention_mask.at[1, -2:].set(0)   # pad tail of sample 1

    fwd = jax.jit(functools.partial(sequence_bert_forward, cfg=CFG))
    logits = fwd(params, input_ids, token_type_ids, attention_mask)
    jax.block_until_ready(logits)

    assert logits.shape == (B, CFG["num_classes"])
    assert bool(jnp.all(jnp.isfinite(logits)))
    print("KERNEL_OK")
</pallas_src>

<mosaic_0001>
module attributes {stable_mosaic.version = 11 : i64} {
  func.func @_bert_kernel(%arg0: i32, %arg1: memref<1x8x32xf32, #tpu.memory_space<vmem>>, %arg2: memref<1x1x8xf32, #tpu.memory_space<vmem>>, %arg3: memref<1x32xf32, #tpu.memory_space<vmem>>, %arg4: memref<1x32xf32, #tpu.memory_space<vmem>>, %arg5: memref<2x32x96xbf16, #tpu.memory_space<vmem>>, %arg6: memref<2x1x96xf32, #tpu.memory_space<vmem>>, %arg7: memref<2x32x32xf32, #tpu.memory_space<vmem>>, %arg8: memref<2x1x32xf32, #tpu.memory_space<vmem>>, %arg9: memref<2x1x32xf32, #tpu.memory_space<vmem>>, %arg10: memref<2x1x32xf32, #tpu.memory_space<vmem>>, %arg11: memref<2x32x64xbf16, #tpu.memory_space<vmem>>, %arg12: memref<2x1x64xf32, #tpu.memory_space<vmem>>, %arg13: memref<2x64x32xbf16, #tpu.memory_space<vmem>>, %arg14: memref<2x1x32xf32, #tpu.memory_space<vmem>>, %arg15: memref<2x1x32xf32, #tpu.memory_space<vmem>>, %arg16: memref<2x1x32xf32, #tpu.memory_space<vmem>>, %arg17: memref<32x32xbf16, #tpu.memory_space<vmem>>, %arg18: memref<1x32xf32, #tpu.memory_space<vmem>>, %arg19: memref<32x3xbf16, #tpu.memory_space<vmem>>, %arg20: memref<1x3xf32, #tpu.memory_space<vmem>>, %arg21: memref<1x1x3xf32, #tpu.memory_space<vmem>>) attributes {dimension_semantics = [#tpu.dimension_semantics<parallel>], iteration_bounds = array<i64: 2>, scalar_prefetch = 0 : i64, scratch_operands = 0 : i64, tpu.core_type = #tpu.core_type<tc>, window_params = [{transform_indices = @transform_0, window_bounds = array<i64: 1, 8, 32>}, {transform_indices = @transform_1, window_bounds = array<i64: 1, 1, 8>}, {pipeline_mode = #tpu.pipeline_mode<synchronous>, transform_indices = @transform_2, window_bounds = array<i64: 1, 32>}, {pipeline_mode = #tpu.pipeline_mode<synchronous>, transform_indices = @transform_3, window_bounds = array<i64: 1, 32>}, {pipeline_mode = #tpu.pipeline_mode<synchronous>, transform_indices = @transform_4, window_bounds = array<i64: 2, 32, 96>}, {pipeline_mode = #tpu.pipeline_mode<synchronous>, transform_indices = @transform_5, window_bounds = array<i64: 2, 1, 96>}, {pipeline_mode = #tpu.pipeline_mode<synchronous>, transform_indices = @transform_6, window_bounds = array<i64: 2, 32, 32>}, {pipeline_mode = #tpu.pipeline_mode<synchronous>, transform_indices = @transform_7, window_bounds = array<i64: 2, 1, 32>}, {pipeline_mode = #tpu.pipeline_mode<synchronous>, transform_indices = @transform_8, window_bounds = array<i64: 2, 1, 32>}, {pipeline_mode = #tpu.pipeline_mode<synchronous>, transform_indices = @transform_9, window_bounds = array<i64: 2, 1, 32>}, {pipeline_mode = #tpu.pipeline_mode<synchronous>, transform_indices = @transform_10, window_bounds = array<i64: 2, 32, 64>}, {pipeline_mode = #tpu.pipeline_mode<synchronous>, transform_indices = @transform_11, window_bounds = array<i64: 2, 1, 64>}, {pipeline_mode = #tpu.pipeline_mode<synchronous>, transform_indices = @transform_12, window_bounds = array<i64: 2, 64, 32>}, {pipeline_mode = #tpu.pipeline_mode<synchronous>, transform_indices = @transform_13, window_bounds = array<i64: 2, 1, 32>}, {pipeline_mode = #tpu.pipeline_mode<synchronous>, transform_indices = @transform_14, window_bounds = array<i64: 2, 1, 32>}, {pipeline_mode = #tpu.pipeline_mode<synchronous>, transform_indices = @transform_15, window_bounds = array<i64: 2, 1, 32>}, {pipeline_mode = #tpu.pipeline_mode<synchronous>, transform_indices = @transform_16, window_bounds = array<i64: 32, 32>}, {pipeline_mode = #tpu.pipeline_mode<synchronous>, transform_indices = @transform_17, window_bounds = array<i64: 1, 32>}, {pipeline_mode = #tpu.pipeline_mode<synchronous>, transform_indices = @transform_18, window_bounds = array<i64: 32, 3>}, {pipeline_mode = #tpu.pipeline_mode<synchronous>, transform_indices = @transform_19, window_bounds = array<i64: 1, 3>}, {transform_indices = @transform_20, window_bounds = array<i64: 1, 1, 3>}]} {
    %c0 = arith.constant 0 : index
    %c0_0 = arith.constant 0 : index
    %c0_1 = arith.constant 0 : index
    %0 = vector.load %arg1[%c0, %c0_0, %c0_1] : memref<1x8x32xf32, #tpu.memory_space<vmem>>, vector<1x8x32xf32>
    %1 = vector.shape_cast %0 : vector<1x8x32xf32> to vector<8x32xf32>
    %c0_2 = arith.constant 0 : index
    %c0_3 = arith.constant 0 : index
    %c0_4 = arith.constant 0 : index
    %2 = vector.load %arg2[%c0_2, %c0_3, %c0_4] : memref<1x1x8xf32, #tpu.memory_space<vmem>>, vector<1x1x8xf32>
    %3 = vector.shape_cast %2 : vector<1x1x8xf32> to vector<1x8xf32>
    %4 = vector.shape_cast %3 : vector<1x8xf32> to vector<1x8xf32>
    %5 = vector.broadcast %4 : vector<1x8xf32> to vector<8x8xf32>
    %c0_5 = arith.constant 0 : index
    %c0_6 = arith.constant 0 : index
    %6 = vector.load %arg3[%c0_5, %c0_6] : memref<1x32xf32, #tpu.memory_space<vmem>>, vector<1x32xf32>
    %c0_7 = arith.constant 0 : index
    %c0_8 = arith.constant 0 : index
    %7 = vector.load %arg4[%c0_7, %c0_8] : memref<1x32xf32, #tpu.memory_space<vmem>>, vector<1x32xf32>
    %cst = arith.constant dense<0.000000e+00> : vector<8xf32>
    %8 = vector.multi_reduction <add>, %1, %cst [1] : vector<8x32xf32> to vector<8xf32>
    %9 = vector.shape_cast %8 : vector<8xf32> to vector<8x1xf32>
    %cst_9 = arith.constant 3.200000e+01 : f32
    %10 = vector.broadcast %cst_9 : f32 to vector<8x1xf32>
    %11 = arith.divf %9, %10 : vector<8x1xf32>
    %12 = vector.broadcast %11 : vector<8x1xf32> to vector<8x32xf32>
    %13 = arith.subf %1, %12 : vector<8x32xf32>
    %14 = arith.mulf %13, %13 : vector<8x32xf32>
    %cst_10 = arith.constant dense<0.000000e+00> : vector<8xf32>
    %15 = vector.multi_reduction <add>, %14, %cst_10 [1] : vector<8x32xf32> to vector<8xf32>
    %16 = vector.shape_cast %15 : vector<8xf32> to vector<8x1xf32>
    %cst_11 = arith.constant 3.200000e+01 : f32
    %17 = vector.broadcast %cst_11 : f32 to vector<8x1xf32>
    %18 = arith.divf %16, %17 : vector<8x1xf32>
    %cst_12 = arith.constant 9.99999996E-13 : f32
    %19 = vector.broadcast %cst_12 : f32 to vector<8x1xf32>
    %20 = arith.addf %18, %19 : vector<8x1xf32>
    %21 = math.rsqrt %20 : vector<8x1xf32>
    %22 = vector.broadcast %21 : vector<8x1xf32> to vector<8x32xf32>
    %23 = arith.mulf %13, %22 : vector<8x32xf32>
    %24 = vector.broadcast %6 : vector<1x32xf32> to vector<8x32xf32>
    %25 = arith.mulf %23, %24 : vector<8x32xf32>
    %26 = vector.broadcast %7 : vector<1x32xf32> to vector<8x32xf32>
    %27 = arith.addf %25, %26 : vector<8x32xf32>
    %c0_13 = arith.constant 0 : index
    %c0_14 = arith.constant 0 : index
    %c0_15 = arith.constant 0 : index
    %28 = vector.load %arg5[%c0_13, %c0_14, %c0_15] : memref<2x32x96xbf16, #tpu.memory_space<vmem>>, vector<1x32x96xbf16>
    %29 = vector.shape_cast %28 : vector<1x32x96xbf16> to vector<32x96xbf16>
    %30 = arith.truncf %27 : vector<8x32xf32> to vector<8x32xbf16>
    %cst_16 = arith.constant dense<0.000000e+00> : vector<8x96xf32>
    %31 = tpu.matmul %30, %29, %cst_16 {dimension_numbers = #tpu.dot_dimension_numbers<[1], [0], [0], [1], [0, 0, 1, 1], [], []>} : vector<8x32xbf16>, vector<32x96xbf16>, vector<8x96xf32> -> vector<8x96xf32>
    %c0_17 = arith.constant 0 : index
    %c0_18 = arith.constant 0 : index
    %c0_19 = arith.constant 0 : index
    %32 = vector.load %arg6[%c0_17, %c0_18, %c0_19] : memref<2x1x96xf32, #tpu.memory_space<vmem>>, vector<1x1x96xf32>
    %33 = vector.shape_cast %32 : vector<1x1x96xf32> to vector<1x96xf32>
    %34 = vector.broadcast %33 : vector<1x96xf32> to vector<8x96xf32>
    %35 = arith.addf %31, %34 : vector<8x96xf32>
    %36 = vector.extract_strided_slice %35 {offsets = [0, 0], sizes = [8, 32], strides = [1, 1]} : vector<8x96xf32> to vector<8x32xf32>
    %cst_20 = arith.constant 0.353553385 : f32
    %37 = vector.broadcast %cst_20 : f32 to vector<8x32xf32>
    %38 = arith.mulf %36, %37 : vector<8x32xf32>
    %39 = vector.extract_strided_slice %35 {offsets = [0, 32], sizes = [8, 32], strides = [1, 1]} : vector<8x96xf32> to vector<8x32xf32>
    %40 = vector.extract_strided_slice %35 {offsets = [0, 64], sizes = [8, 32], strides = [1, 1]} : vector<8x96xf32> to vector<8x32xf32>
    %c0_21 = arith.constant 0 : index
    %c0_22 = arith.constant 0 : index
    %c0_23 = arith.constant 0 : index
    %41 = vector.load %arg7[%c0_21, %c0_22, %c0_23] : memref<2x32x32xf32, #tpu.memory_space<vmem>>, vector<1x32x32xf32>
    %42 = vector.shape_cast %41 : vector<1x32x32xf32> to vector<32x32xf32>
    %43 = vector.extract_strided_slice %38 {offsets = [0, 0], sizes = [8, 8], strides = [1, 1]} : vector<8x32xf32> to vector<8x8xf32>
    %44 = vector.extract_strided_slice %39 {offsets = [0, 0], sizes = [8, 8], strides = [1, 1]} : vector<8x32xf32> to vector<8x8xf32>
    %45 = arith.truncf %43 : vector<8x8xf32> to vector<8x8xbf16>
    %46 = arith.truncf %44 : vector<8x8xf32> to vector<8x8xbf16>
    %cst_24 = arith.constant dense<0.000000e+00> : vector<8x8xf32>
    %47 = tpu.matmul %45, %46, %cst_24 {dimension_numbers = #tpu.dot_dimension_numbers<[1], [1], [0], [0], [0, 0, 1, 0], [], []>} : vector<8x8xbf16>, vector<8x8xbf16>, vector<8x8xf32> -> vector<8x8xf32>
    %48 = arith.addf %47, %5 : vector<8x8xf32>
    %cst_25 = arith.constant dense<0xFF800000> : vector<8xf32>
    %49 = vector.multi_reduction <maximumf>, %48, %cst_25 [1] : vector<8x8xf32> to vector<8xf32>
    %50 = vector.shape_cast %49 : vector<8xf32> to vector<8x1xf32>
    %51 = vector.broadcast %50 : vector<8x1xf32> to vector<8x8xf32>
    %52 = arith.subf %48, %51 : vector<8x8xf32>
    %53 = math.exp %52 : vector<8x8xf32>
    %cst_26 = arith.constant dense<0.000000e+00> : vector<8xf32>
    %54 = vector.multi_reduction <add>, %53, %cst_26 [1] : vector<8x8xf32> to vector<8xf32>
    %55 = vector.shape_cast %54 : vector<8xf32> to vector<8x1xf32>
    %56 = tpu.reciprocal %55 {approx = true} : vector<8x1xf32> -> vector<8x1xf32>
    %57 = vector.broadcast %56 : vector<8x1xf32> to vector<8x8xf32>
    %58 = arith.mulf %53, %57 : vector<8x8xf32>
    %59 = vector.extract_strided_slice %40 {offsets = [0, 0], sizes = [8, 8], strides = [1, 1]} : vector<8x32xf32> to vector<8x8xf32>
    %60 = arith.truncf %58 : vector<8x8xf32> to vector<8x8xbf16>
    %61 = arith.truncf %59 : vector<8x8xf32> to vector<8x8xbf16>
    %cst_27 = arith.constant dense<0.000000e+00> : vector<8x8xf32>
    %62 = tpu.matmul %60, %61, %cst_27 {dimension_numbers = #tpu.dot_dimension_numbers<[1], [0], [0], [1], [0, 0, 1, 1], [], []>} : vector<8x8xbf16>, vector<8x8xbf16>, vector<8x8xf32> -> vector<8x8xf32>
    %63 = vector.extract_strided_slice %42 {offsets = [0, 0], sizes = [8, 32], strides = [1, 1]} : vector<32x32xf32> to vector<8x32xf32>
    %64 = arith.truncf %62 : vector<8x8xf32> to vector<8x8xbf16>
    %65 = arith.truncf %63 : vector<8x32xf32> to vector<8x32xbf16>
    %cst_28 = arith.constant dense<0.000000e+00> : vector<8x32xf32>
    %66 = tpu.matmul %64, %65, %cst_28 {dimension_numbers = #tpu.dot_dimension_numbers<[1], [0], [0], [1], [0, 0, 1, 1], [], []>} : vector<8x8xbf16>, vector<8x32xbf16>, vector<8x32xf32> -> vector<8x32xf32>
    %67 = vector.extract_strided_slice %38 {offsets = [0, 8], sizes = [8, 8], strides = [1, 1]} : vector<8x32xf32> to vector<8x8xf32>
    %68 = vector.extract_strided_slice %39 {offsets = [0, 8], sizes = [8, 8], strides = [1, 1]} : vector<8x32xf32> to vector<8x8xf32>
    %69 = arith.truncf %67 : vector<8x8xf32> to vector<8x8xbf16>
    %70 = arith.truncf %68 : vector<8x8xf32> to vector<8x8xbf16>
    %cst_29 = arith.constant dense<0.000000e+00> : vector<8x8xf32>
    %71 = tpu.matmul %69, %70, %cst_29 {dimension_numbers = #tpu.dot_dimension_numbers<[1], [1], [0], [0], [0, 0, 1, 0], [], []>} : vector<8x8xbf16>, vector<8x8xbf16>, vector<8x8xf32> -> vector<8x8xf32>
    %72 = arith.addf %71, %5 : vector<8x8xf32>
    %cst_30 = arith.constant dense<0xFF800000> : vector<8xf32>
    %73 = vector.multi_reduction <maximumf>, %72, %cst_30 [1] : vector<8x8xf32> to vector<8xf32>
    %74 = vector.shape_cast %73 : vector<8xf32> to vector<8x1xf32>
    %75 = vector.broadcast %74 : vector<8x1xf32> to vector<8x8xf32>
    %76 = arith.subf %72, %75 : vector<8x8xf32>
    %77 = math.exp %76 : vector<8x8xf32>
    %cst_31 = arith.constant dense<0.000000e+00> : vector<8xf32>
    %78 = vector.multi_reduction <add>, %77, %cst_31 [1] : vector<8x8xf32> to vector<8xf32>
    %79 = vector.shape_cast %78 : vector<8xf32> to vector<8x1xf32>
    %80 = tpu.reciprocal %79 {approx = true} : vector<8x1xf32> -> vector<8x1xf32>
    %81 = vector.broadcast %80 : vector<8x1xf32> to vector<8x8xf32>
    %82 = arith.mulf %77, %81 : vector<8x8xf32>
    %83 = vector.extract_strided_slice %40 {offsets = [0, 8], sizes = [8, 8], strides = [1, 1]} : vector<8x32xf32> to vector<8x8xf32>
    %84 = arith.truncf %82 : vector<8x8xf32> to vector<8x8xbf16>
    %85 = arith.truncf %83 : vector<8x8xf32> to vector<8x8xbf16>
    %cst_32 = arith.constant dense<0.000000e+00> : vector<8x8xf32>
    %86 = tpu.matmul %84, %85, %cst_32 {dimension_numbers = #tpu.dot_dimension_numbers<[1], [0], [0], [1], [0, 0, 1, 1], [], []>} : vector<8x8xbf16>, vector<8x8xbf16>, vector<8x8xf32> -> vector<8x8xf32>
    %87 = vector.extract_strided_slice %42 {offsets = [8, 0], sizes = [8, 32], strides = [1, 1]} : vector<32x32xf32> to vector<8x32xf32>
    %88 = arith.truncf %86 : vector<8x8xf32> to vector<8x8xbf16>
    %89 = arith.truncf %87 : vector<8x32xf32> to vector<8x32xbf16>
    %cst_33 = arith.constant dense<0.000000e+00> : vector<8x32xf32>
    %90 = tpu.matmul %88, %89, %cst_33 {dimension_numbers = #tpu.dot_dimension_numbers<[1], [0], [0], [1], [0, 0, 1, 1], [], []>} : vector<8x8xbf16>, vector<8x32xbf16>, vector<8x32xf32> -> vector<8x32xf32>
    %91 = arith.addf %66, %90 : vector<8x32xf32>
    %92 = vector.extract_strided_slice %38 {offsets = [0, 16], sizes = [8, 8], strides = [1, 1]} : vector<8x32xf32> to vector<8x8xf32>
    %93 = vector.extract_strided_slice %39 {offsets = [0, 16], sizes = [8, 8], strides = [1, 1]} : vector<8x32xf32> to vector<8x8xf32>
    %94 = arith.truncf %92 : vector<8x8xf32> to vector<8x8xbf16>
    %95 = arith.truncf %93 : vector<8x8xf32> to vector<8x8xbf16>
    %cst_34 = arith.constant dense<0.000000e+00> : vector<8x8xf32>
    %96 = tpu.matmul %94, %95, %cst_34 {dimension_numbers = #tpu.dot_dimension_numbers<[1], [1], [0], [0], [0, 0, 1, 0], [], []>} : vector<8x8xbf16>, vector<8x8xbf16>, vector<8x8xf32> -> vector<8x8xf32>
    %97 = arith.addf %96, %5 : vector<8x8xf32>
    %cst_35 = arith.constant dense<0xFF800000> : vector<8xf32>
    %98 = vector.multi_reduction <maximumf>, %97, %cst_35 [1] : vector<8x8xf32> to vector<8xf32>
    %99 = vector.shape_cast %98 : vector<8xf32> to vector<8x1xf32>
    %100 = vector.broadcast %99 : vector<8x1xf32> to vector<8x8xf32>
    %101 = arith.subf %97, %100 : vector<8x8xf32>
    %102 = math.exp %101 : vector<8x8xf32>
    %cst_36 = arith.constant dense<0.000000e+00> : vector<8xf32>
    %103 = vector.multi_reduction <add>, %102, %cst_36 [1] : vector<8x8xf32> to vector<8xf32>
    %104 = vector.shape_cast %103 : vector<8xf32> to vector<8x1xf32>
    %105 = tpu.reciprocal %104 {approx = true} : vector<8x1xf32> -> vector<8x1xf32>
    %106 = vector.broadcast %105 : vector<8x1xf32> to vector<8x8xf32>
    %107 = arith.mulf %102, %106 : vector<8x8xf32>
    %108 = vector.extract_strided_slice %40 {offsets = [0, 16], sizes = [8, 8], strides = [1, 1]} : vector<8x32xf32> to vector<8x8xf32>
    %109 = arith.truncf %107 : vector<8x8xf32> to vector<8x8xbf16>
    %110 = arith.truncf %108 : vector<8x8xf32> to vector<8x8xbf16>
    %cst_37 = arith.constant dense<0.000000e+00> : vector<8x8xf32>
    %111 = tpu.matmul %109, %110, %cst_37 {dimension_numbers = #tpu.dot_dimension_numbers<[1], [0], [0], [1], [0, 0, 1, 1], [], []>} : vector<8x8xbf16>, vector<8x8xbf16>, vector<8x8xf32> -> vector<8x8xf32>
    %112 = vector.extract_strided_slice %42 {offsets = [16, 0], sizes = [8, 32], strides = [1, 1]} : vector<32x32xf32> to vector<8x32xf32>
    %113 = arith.truncf %111 : vector<8x8xf32> to vector<8x8xbf16>
    %114 = arith.truncf %112 : vector<8x32xf32> to vector<8x32xbf16>
    %cst_38 = arith.constant dense<0.000000e+00> : vector<8x32xf32>
    %115 = tpu.matmul %113, %114, %cst_38 {dimension_numbers = #tpu.dot_dimension_numbers<[1], [0], [0], [1], [0, 0, 1, 1], [], []>} : vector<8x8xbf16>, vector<8x32xbf16>, vector<8x32xf32> -> vector<8x32xf32>
    %116 = arith.addf %91, %115 : vector<8x32xf32>
    %117 = vector.extract_strided_slice %38 {offsets = [0, 24], sizes = [8, 8], strides = [1, 1]} : vector<8x32xf32> to vector<8x8xf32>
    %118 = vector.extract_strided_slice %39 {offsets = [0, 24], sizes = [8, 8], strides = [1, 1]} : vector<8x32xf32> to vector<8x8xf32>
    %119 = arith.truncf %117 : vector<8x8xf32> to vector<8x8xbf16>
    %120 = arith.truncf %118 : vector<8x8xf32> to vector<8x8xbf16>
    %cst_39 = arith.constant dense<0.000000e+00> : vector<8x8xf32>
    %121 = tpu.matmul %119, %120, %cst_39 {dimension_numbers = #tpu.dot_dimension_numbers<[1], [1], [0], [0], [0, 0, 1, 0], [], []>} : vector<8x8xbf16>, vector<8x8xbf16>, vector<8x8xf32> -> vector<8x8xf32>
    %122 = arith.addf %121, %5 : vector<8x8xf32>
    %cst_40 = arith.constant dense<0xFF800000> : vector<8xf32>
    %123 = vector.multi_reduction <maximumf>, %122, %cst_40 [1] : vector<8x8xf32> to vector<8xf32>
    %124 = vector.shape_cast %123 : vector<8xf32> to vector<8x1xf32>
    %125 = vector.broadcast %124 : vector<8x1xf32> to vector<8x8xf32>
    %126 = arith.subf %122, %125 : vector<8x8xf32>
    %127 = math.exp %126 : vector<8x8xf32>
    %cst_41 = arith.constant dense<0.000000e+00> : vector<8xf32>
    %128 = vector.multi_reduction <add>, %127, %cst_41 [1] : vector<8x8xf32> to vector<8xf32>
    %129 = vector.shape_cast %128 : vector<8xf32> to vector<8x1xf32>
    %130 = tpu.reciprocal %129 {approx = true} : vector<8x1xf32> -> vector<8x1xf32>
    %131 = vector.broadcast %130 : vector<8x1xf32> to vector<8x8xf32>
    %132 = arith.mulf %127, %131 : vector<8x8xf32>
    %133 = vector.extract_strided_slice %40 {offsets = [0, 24], sizes = [8, 8], strides = [1, 1]} : vector<8x32xf32> to vector<8x8xf32>
    %134 = arith.truncf %132 : vector<8x8xf32> to vector<8x8xbf16>
    %135 = arith.truncf %133 : vector<8x8xf32> to vector<8x8xbf16>
    %cst_42 = arith.constant dense<0.000000e+00> : vector<8x8xf32>
    %136 = tpu.matmul %134, %135, %cst_42 {dimension_numbers = #tpu.dot_dimension_numbers<[1], [0], [0], [1], [0, 0, 1, 1], [], []>} : vector<8x8xbf16>, vector<8x8xbf16>, vector<8x8xf32> -> vector<8x8xf32>
    %137 = vector.extract_strided_slice %42 {offsets = [24, 0], sizes = [8, 32], strides = [1, 1]} : vector<32x32xf32> to vector<8x32xf32>
    %138 = arith.truncf %136 : vector<8x8xf32> to vector<8x8xbf16>
    %139 = arith.truncf %137 : vector<8x32xf32> to vector<8x32xbf16>
    %cst_43 = arith.constant dense<0.000000e+00> : vector<8x32xf32>
    %140 = tpu.matmul %138, %139, %cst_43 {dimension_numbers = #tpu.dot_dimension_numbers<[1], [0], [0], [1], [0, 0, 1, 1], [], []>} : vector<8x8xbf16>, vector<8x32xbf16>, vector<8x32xf32> -> vector<8x32xf32>
    %141 = arith.addf %116, %140 : vector<8x32xf32>
    %c0_44 = arith.constant 0 : index
    %c0_45 = arith.constant 0 : index
    %c0_46 = arith.constant 0 : index
    %142 = vector.load %arg8[%c0_44, %c0_45, %c0_46] : memref<2x1x32xf32, #tpu.memory_space<vmem>>, vector<1x1x32xf32>
    %143 = vector.shape_cast %142 : vector<1x1x32xf32> to vector<1x32xf32>
    %144 = vector.broadcast %143 : vector<1x32xf32> to vector<8x32xf32>
    %145 = arith.addf %141, %144 : vector<8x32xf32>
    %146 = arith.addf %145, %27 : vector<8x32xf32>
    %c0_47 = arith.constant 0 : index
    %c0_48 = arith.constant 0 : index
    %c0_49 = arith.constant 0 : index
    %147 = vector.load %arg9[%c0_47, %c0_48, %c0_49] : memref<2x1x32xf32, #tpu.memory_space<vmem>>, vector<1x1x32xf32>
    %148 = vector.shape_cast %147 : vector<1x1x32xf32> to vector<1x32xf32>
    %c0_50 = arith.constant 0 : index
    %c0_51 = arith.constant 0 : index
    %c0_52 = arith.constant 0 : index
    %149 = vector.load %arg10[%c0_50, %c0_51, %c0_52] : memref<2x1x32xf32, #tpu.memory_space<vmem>>, vector<1x1x32xf32>
    %150 = vector.shape_cast %149 : vector<1x1x32xf32> to vector<1x32xf32>
    %cst_53 = arith.constant dense<0.000000e+00> : vector<8xf32>
    %151 = vector.multi_reduction <add>, %146, %cst_53 [1] : vector<8x32xf32> to vector<8xf32>
    %152 = vector.shape_cast %151 : vector<8xf32> to vector<8x1xf32>
    %cst_54 = arith.constant 3.200000e+01 : f32
    %153 = vector.broadcast %cst_54 : f32 to vector<8x1xf32>
    %154 = arith.divf %152, %153 : vector<8x1xf32>
    %155 = vector.broadcast %154 : vector<8x1xf32> to vector<8x32xf32>
    %156 = arith.subf %146, %155 : vector<8x32xf32>
    %157 = arith.mulf %156, %156 : vector<8x32xf32>
    %cst_55 = arith.constant dense<0.000000e+00> : vector<8xf32>
    %158 = vector.multi_reduction <add>, %157, %cst_55 [1] : vector<8x32xf32> to vector<8xf32>
    %159 = vector.shape_cast %158 : vector<8xf32> to vector<8x1xf32>
    %cst_56 = arith.constant 3.200000e+01 : f32
    %160 = vector.broadcast %cst_56 : f32 to vector<8x1xf32>
    %161 = arith.divf %159, %160 : vector<8x1xf32>
    %cst_57 = arith.constant 9.99999996E-13 : f32
    %162 = vector.broadcast %cst_57 : f32 to vector<8x1xf32>
    %163 = arith.addf %161, %162 : vector<8x1xf32>
    %164 = math.rsqrt %163 : vector<8x1xf32>
    %165 = vector.broadcast %164 : vector<8x1xf32> to vector<8x32xf32>
    %166 = arith.mulf %156, %165 : vector<8x32xf32>
    %167 = vector.broadcast %148 : vector<1x32xf32> to vector<8x32xf32>
    %168 = arith.mulf %166, %167 : vector<8x32xf32>
    %169 = vector.broadcast %150 : vector<1x32xf32> to vector<8x32xf32>
    %170 = arith.addf %168, %169 : vector<8x32xf32>
    %c0_58 = arith.constant 0 : index
    %c0_59 = arith.constant 0 : index
    %c0_60 = arith.constant 0 : index
    %171 = vector.load %arg11[%c0_58, %c0_59, %c0_60] : memref<2x32x64xbf16, #tpu.memory_space<vmem>>, vector<1x32x64xbf16>
    %172 = vector.shape_cast %171 : vector<1x32x64xbf16> to vector<32x64xbf16>
    %173 = arith.truncf %170 : vector<8x32xf32> to vector<8x32xbf16>
    %cst_61 = arith.constant dense<0.000000e+00> : vector<8x64xf32>
    %174 = tpu.matmul %173, %172, %cst_61 {dimension_numbers = #tpu.dot_dimension_numbers<[1], [0], [0], [1], [0, 0, 1, 1], [], []>} : vector<8x32xbf16>, vector<32x64xbf16>, vector<8x64xf32> -> vector<8x64xf32>
    %c0_62 = arith.constant 0 : index
    %c0_63 = arith.constant 0 : index
    %c0_64 = arith.constant 0 : index
    %175 = vector.load %arg12[%c0_62, %c0_63, %c0_64] : memref<2x1x64xf32, #tpu.memory_space<vmem>>, vector<1x1x64xf32>
    %176 = vector.shape_cast %175 : vector<1x1x64xf32> to vector<1x64xf32>
    %177 = vector.broadcast %176 : vector<1x64xf32> to vector<8x64xf32>
    %178 = arith.addf %174, %177 : vector<8x64xf32>
    %cst_65 = arith.constant 5.000000e-01 : f32
    %179 = vector.broadcast %cst_65 : f32 to vector<8x64xf32>
    %180 = arith.mulf %179, %178 : vector<8x64xf32>
    %cst_66 = arith.constant 4.471500e-02 : f32
    %181 = vector.broadcast %cst_66 : f32 to vector<8x64xf32>
    %182 = arith.mulf %181, %178 : vector<8x64xf32>
    %183 = arith.mulf %182, %178 : vector<8x64xf32>
    %184 = arith.mulf %183, %178 : vector<8x64xf32>
    %185 = arith.addf %178, %184 : vector<8x64xf32>
    %cst_67 = arith.constant 0.797884583 : f32
    %186 = vector.broadcast %cst_67 : f32 to vector<8x64xf32>
    %187 = arith.mulf %186, %185 : vector<8x64xf32>
    %188 = math.tanh %187 : vector<8x64xf32>
    %cst_68 = arith.constant 1.000000e+00 : f32
    %189 = vector.broadcast %cst_68 : f32 to vector<8x64xf32>
    %190 = arith.addf %189, %188 : vector<8x64xf32>
    %191 = arith.mulf %180, %190 : vector<8x64xf32>
    %c0_69 = arith.constant 0 : index
    %c0_70 = arith.constant 0 : index
    %c0_71 = arith.constant 0 : index
    %192 = vector.load %arg13[%c0_69, %c0_70, %c0_71] : memref<2x64x32xbf16, #tpu.memory_space<vmem>>, vector<1x64x32xbf16>
    %193 = vector.shape_cast %192 : vector<1x64x32xbf16> to vector<64x32xbf16>
    %194 = arith.truncf %191 : vector<8x64xf32> to vector<8x64xbf16>
    %cst_72 = arith.constant dense<0.000000e+00> : vector<8x32xf32>
    %195 = tpu.matmul %194, %193, %cst_72 {dimension_numbers = #tpu.dot_dimension_numbers<[1], [0], [0], [1], [0, 0, 1, 1], [], []>} : vector<8x64xbf16>, vector<64x32xbf16>, vector<8x32xf32> -> vector<8x32xf32>
    %c0_73 = arith.constant 0 : index
    %c0_74 = arith.constant 0 : index
    %c0_75 = arith.constant 0 : index
    %196 = vector.load %arg14[%c0_73, %c0_74, %c0_75] : memref<2x1x32xf32, #tpu.memory_space<vmem>>, vector<1x1x32xf32>
    %197 = vector.shape_cast %196 : vector<1x1x32xf32> to vector<1x32xf32>
    %198 = vector.broadcast %197 : vector<1x32xf32> to vector<8x32xf32>
    %199 = arith.addf %195, %198 : vector<8x32xf32>
    %200 = arith.addf %199, %170 : vector<8x32xf32>
    %c0_76 = arith.constant 0 : index
    %c0_77 = arith.constant 0 : index
    %c0_78 = arith.constant 0 : index
    %201 = vector.load %arg15[%c0_76, %c0_77, %c0_78] : memref<2x1x32xf32, #tpu.memory_space<vmem>>, vector<1x1x32xf32>
    %202 = vector.shape_cast %201 : vector<1x1x32xf32> to vector<1x32xf32>
    %c0_79 = arith.constant 0 : index
    %c0_80 = arith.constant 0 : index
    %c0_81 = arith.constant 0 : index
    %203 = vector.load %arg16[%c0_79, %c0_80, %c0_81] : memref<2x1x32xf32, #tpu.memory_space<vmem>>, vector<1x1x32xf32>
    %204 = vector.shape_cast %203 : vector<1x1x32xf32> to vector<1x32xf32>
    %cst_82 = arith.constant dense<0.000000e+00> : vector<8xf32>
    %205 = vector.multi_reduction <add>, %200, %cst_82 [1] : vector<8x32xf32> to vector<8xf32>
    %206 = vector.shape_cast %205 : vector<8xf32> to vector<8x1xf32>
    %cst_83 = arith.constant 3.200000e+01 : f32
    %207 = vector.broadcast %cst_83 : f32 to vector<8x1xf32>
    %208 = arith.divf %206, %207 : vector<8x1xf32>
    %209 = vector.broadcast %208 : vector<8x1xf32> to vector<8x32xf32>
    %210 = arith.subf %200, %209 : vector<8x32xf32>
    %211 = arith.mulf %210, %210 : vector<8x32xf32>
    %cst_84 = arith.constant dense<0.000000e+00> : vector<8xf32>
    %212 = vector.multi_reduction <add>, %211, %cst_84 [1] : vector<8x32xf32> to vector<8xf32>
    %213 = vector.shape_cast %212 : vector<8xf32> to vector<8x1xf32>
    %cst_85 = arith.constant 3.200000e+01 : f32
    %214 = vector.broadcast %cst_85 : f32 to vector<8x1xf32>
    %215 = arith.divf %213, %214 : vector<8x1xf32>
    %cst_86 = arith.constant 9.99999996E-13 : f32
    %216 = vector.broadcast %cst_86 : f32 to vector<8x1xf32>
    %217 = arith.addf %215, %216 : vector<8x1xf32>
    %218 = math.rsqrt %217 : vector<8x1xf32>
    %219 = vector.broadcast %218 : vector<8x1xf32> to vector<8x32xf32>
    %220 = arith.mulf %210, %219 : vector<8x32xf32>
    %221 = vector.broadcast %202 : vector<1x32xf32> to vector<8x32xf32>
    %222 = arith.mulf %220, %221 : vector<8x32xf32>
    %223 = vector.broadcast %204 : vector<1x32xf32> to vector<8x32xf32>
    %224 = arith.addf %222, %223 : vector<8x32xf32>
    %c1 = arith.constant 1 : index
    %c0_87 = arith.constant 0 : index
    %c0_88 = arith.constant 0 : index
    %225 = vector.load %arg5[%c1, %c0_87, %c0_88] : memref<2x32x96xbf16, #tpu.memory_space<vmem>>, vector<1x32x96xbf16>
    %226 = vector.shape_cast %225 : vector<1x32x96xbf16> to vector<32x96xbf16>
    %227 = arith.truncf %224 : vector<8x32xf32> to vector<8x32xbf16>
    %cst_89 = arith.constant dense<0.000000e+00> : vector<8x96xf32>
    %228 = tpu.matmul %227, %226, %cst_89 {dimension_numbers = #tpu.dot_dimension_numbers<[1], [0], [0], [1], [0, 0, 1, 1], [], []>} : vector<8x32xbf16>, vector<32x96xbf16>, vector<8x96xf32> -> vector<8x96xf32>
    %c1_90 = arith.constant 1 : index
    %c0_91 = arith.constant 0 : index
    %c0_92 = arith.constant 0 : index
    %229 = vector.load %arg6[%c1_90, %c0_91, %c0_92] : memref<2x1x96xf32, #tpu.memory_space<vmem>>, vector<1x1x96xf32>
    %230 = vector.shape_cast %229 : vector<1x1x96xf32> to vector<1x96xf32>
    %231 = vector.broadcast %230 : vector<1x96xf32> to vector<8x96xf32>
    %232 = arith.addf %228, %231 : vector<8x96xf32>
    %233 = vector.extract_strided_slice %232 {offsets = [0, 0], sizes = [8, 32], strides = [1, 1]} : vector<8x96xf32> to vector<8x32xf32>
    %cst_93 = arith.constant 0.353553385 : f32
    %234 = vector.broadcast %cst_93 : f32 to vector<8x32xf32>
    %235 = arith.mulf %233, %234 : vector<8x32xf32>
    %236 = vector.extract_strided_slice %232 {offsets = [0, 32], sizes = [8, 32], strides = [1, 1]} : vector<8x96xf32> to vector<8x32xf32>
    %237 = vector.extract_strided_slice %232 {offsets = [0, 64], sizes = [8, 32], strides = [1, 1]} : vector<8x96xf32> to vector<8x32xf32>
    %c1_94 = arith.constant 1 : index
    %c0_95 = arith.constant 0 : index
    %c0_96 = arith.constant 0 : index
    %238 = vector.load %arg7[%c1_94, %c0_95, %c0_96] : memref<2x32x32xf32, #tpu.memory_space<vmem>>, vector<1x32x32xf32>
    %239 = vector.shape_cast %238 : vector<1x32x32xf32> to vector<32x32xf32>
    %240 = vector.extract_strided_slice %235 {offsets = [0, 0], sizes = [8, 8], strides = [1, 1]} : vector<8x32xf32> to vector<8x8xf32>
    %241 = vector.extract_strided_slice %236 {offsets = [0, 0], sizes = [8, 8], strides = [1, 1]} : vector<8x32xf32> to vector<8x8xf32>
    %242 = arith.truncf %240 : vector<8x8xf32> to vector<8x8xbf16>
    %243 = arith.truncf %241 : vector<8x8xf32> to vector<8x8xbf16>
    %cst_97 = arith.constant dense<0.000000e+00> : vector<8x8xf32>
    %244 = tpu.matmul %242, %243, %cst_97 {dimension_numbers = #tpu.dot_dimension_numbers<[1], [1], [0], [0], [0, 0, 1, 0], [], []>} : vector<8x8xbf16>, vector<8x8xbf16>, vector<8x8xf32> -> vector<8x8xf32>
    %245 = arith.addf %244, %5 : vector<8x8xf32>
    %cst_98 = arith.constant dense<0xFF800000> : vector<8xf32>
    %246 = vector.multi_reduction <maximumf>, %245, %cst_98 [1] : vector<8x8xf32> to vector<8xf32>
    %247 = vector.shape_cast %246 : vector<8xf32> to vector<8x1xf32>
    %248 = vector.broadcast %247 : vector<8x1xf32> to vector<8x8xf32>
    %249 = arith.subf %245, %248 : vector<8x8xf32>
    %250 = math.exp %249 : vector<8x8xf32>
    %cst_99 = arith.constant dense<0.000000e+00> : vector<8xf32>
    %251 = vector.multi_reduction <add>, %250, %cst_99 [1] : vector<8x8xf32> to vector<8xf32>
    %252 = vector.shape_cast %251 : vector<8xf32> to vector<8x1xf32>
    %253 = tpu.reciprocal %252 {approx = true} : vector<8x1xf32> -> vector<8x1xf32>
    %254 = vector.broadcast %253 : vector<8x1xf32> to vector<8x8xf32>
    %255 = arith.mulf %250, %254 : vector<8x8xf32>
    %256 = vector.extract_strided_slice %237 {offsets = [0, 0], sizes = [8, 8], strides = [1, 1]} : vector<8x32xf32> to vector<8x8xf32>
    %257 = arith.truncf %255 : vector<8x8xf32> to vector<8x8xbf16>
    %258 = arith.truncf %256 : vector<8x8xf32> to vector<8x8xbf16>
    %cst_100 = arith.constant dense<0.000000e+00> : vector<8x8xf32>
    %259 = tpu.matmul %257, %258, %cst_100 {dimension_numbers = #tpu.dot_dimension_numbers<[1], [0], [0], [1], [0, 0, 1, 1], [], []>} : vector<8x8xbf16>, vector<8x8xbf16>, vector<8x8xf32> -> vector<8x8xf32>
    %260 = vector.extract_strided_slice %239 {offsets = [0, 0], sizes = [8, 32], strides = [1, 1]} : vector<32x32xf32> to vector<8x32xf32>
    %261 = arith.truncf %259 : vector<8x8xf32> to vector<8x8xbf16>
    %262 = arith.truncf %260 : vector<8x32xf32> to vector<8x32xbf16>
    %cst_101 = arith.constant dense<0.000000e+00> : vector<8x32xf32>
    %263 = tpu.matmul %261, %262, %cst_101 {dimension_numbers = #tpu.dot_dimension_numbers<[1], [0], [0], [1], [0, 0, 1, 1], [], []>} : vector<8x8xbf16>, vector<8x32xbf16>, vector<8x32xf32> -> vector<8x32xf32>
    %264 = vector.extract_strided_slice %235 {offsets = [0, 8], sizes = [8, 8], strides = [1, 1]} : vector<8x32xf32> to vector<8x8xf32>
    %265 = vector.extract_strided_slice %236 {offsets = [0, 8], sizes = [8, 8], strides = [1, 1]} : vector<8x32xf32> to vector<8x8xf32>
    %266 = arith.truncf %264 : vector<8x8xf32> to vector<8x8xbf16>
    %267 = arith.truncf %265 : vector<8x8xf32> to vector<8x8xbf16>
    %cst_102 = arith.constant dense<0.000000e+00> : vector<8x8xf32>
    %268 = tpu.matmul %266, %267, %cst_102 {dimension_numbers = #tpu.dot_dimension_numbers<[1], [1], [0], [0], [0, 0, 1, 0], [], []>} : vector<8x8xbf16>, vector<8x8xbf16>, vector<8x8xf32> -> vector<8x8xf32>
    %269 = arith.addf %268, %5 : vector<8x8xf32>
    %cst_103 = arith.constant dense<0xFF800000> : vector<8xf32>
    %270 = vector.multi_reduction <maximumf>, %269, %cst_103 [1] : vector<8x8xf32> to vector<8xf32>
    %271 = vector.shape_cast %270 : vector<8xf32> to vector<8x1xf32>
    %272 = vector.broadcast %271 : vector<8x1xf32> to vector<8x8xf32>
    %273 = arith.subf %269, %272 : vector<8x8xf32>
    %274 = math.exp %273 : vector<8x8xf32>
    %cst_104 = arith.constant dense<0.000000e+00> : vector<8xf32>
    %275 = vector.multi_reduction <add>, %274, %cst_104 [1] : vector<8x8xf32> to vector<8xf32>
    %276 = vector.shape_cast %275 : vector<8xf32> to vector<8x1xf32>
    %277 = tpu.reciprocal %276 {approx = true} : vector<8x1xf32> -> vector<8x1xf32>
    %278 = vector.broadcast %277 : vector<8x1xf32> to vector<8x8xf32>
    %279 = arith.mulf %274, %278 : vector<8x8xf32>
    %280 = vector.extract_strided_slice %237 {offsets = [0, 8], sizes = [8, 8], strides = [1, 1]} : vector<8x32xf32> to vector<8x8xf32>
    %281 = arith.truncf %279 : vector<8x8xf32> to vector<8x8xbf16>
    %282 = arith.truncf %280 : vector<8x8xf32> to vector<8x8xbf16>
    %cst_105 = arith.constant dense<0.000000e+00> : vector<8x8xf32>
    %283 = tpu.matmul %281, %282, %cst_105 {dimension_numbers = #tpu.dot_dimension_numbers<[1], [0], [0], [1], [0, 0, 1, 1], [], []>} : vector<8x8xbf16>, vector<8x8xbf16>, vector<8x8xf32> -> vector<8x8xf32>
    %284 = vector.extract_strided_slice %239 {offsets = [8, 0], sizes = [8, 32], strides = [1, 1]} : vector<32x32xf32> to vector<8x32xf32>
    %285 = arith.truncf %283 : vector<8x8xf32> to vector<8x8xbf16>
    %286 = arith.truncf %284 : vector<8x32xf32> to vector<8x32xbf16>
    %cst_106 = arith.constant dense<0.000000e+00> : vector<8x32xf32>
    %287 = tpu.matmul %285, %286, %cst_106 {dimension_numbers = #tpu.dot_dimension_numbers<[1], [0], [0], [1], [0, 0, 1, 1], [], []>} : vector<8x8xbf16>, vector<8x32xbf16>, vector<8x32xf32> -> vector<8x32xf32>
    %288 = arith.addf %263, %287 : vector<8x32xf32>
    %289 = vector.extract_strided_slice %235 {offsets = [0, 16], sizes = [8, 8], strides = [1, 1]} : vector<8x32xf32> to vector<8x8xf32>
    %290 = vector.extract_strided_slice %236 {offsets = [0, 16], sizes = [8, 8], strides = [1, 1]} : vector<8x32xf32> to vector<8x8xf32>
    %291 = arith.truncf %289 : vector<8x8xf32> to vector<8x8xbf16>
    %292 = arith.truncf %290 : vector<8x8xf32> to vector<8x8xbf16>
    %cst_107 = arith.constant dense<0.000000e+00> : vector<8x8xf32>
    %293 = tpu.matmul %291, %292, %cst_107 {dimension_numbers = #tpu.dot_dimension_numbers<[1], [1], [0], [0], [0, 0, 1, 0], [], []>} : vector<8x8xbf16>, vector<8x8xbf16>, vector<8x8xf32> -> vector<8x8xf32>
    %294 = arith.addf %293, %5 : vector<8x8xf32>
    %cst_108 = arith.constant dense<0xFF800000> : vector<8xf32>
    %295 = vector.multi_reduction <maximumf>, %294, %cst_108 [1] : vector<8x8xf32> to vector<8xf32>
    %296 = vector.shape_cast %295 : vector<8xf32> to vector<8x1xf32>
    %297 = vector.broadcast %296 : vector<8x1xf32> to vector<8x8xf32>
    %298 = arith.subf %294, %297 : vector<8x8xf32>
    %299 = math.exp %298 : vector<8x8xf32>
    %cst_109 = arith.constant dense<0.000000e+00> : vector<8xf32>
    %300 = vector.multi_reduction <add>, %299, %cst_109 [1] : vector<8x8xf32> to vector<8xf32>
    %301 = vector.shape_cast %300 : vector<8xf32> to vector<8x1xf32>
    %302 = tpu.reciprocal %301 {approx = true} : vector<8x1xf32> -> vector<8x1xf32>
    %303 = vector.broadcast %302 : vector<8x1xf32> to vector<8x8xf32>
    %304 = arith.mulf %299, %303 : vector<8x8xf32>
    %305 = vector.extract_strided_slice %237 {offsets = [0, 16], sizes = [8, 8], strides = [1, 1]} : vector<8x32xf32> to vector<8x8xf32>
    %306 = arith.truncf %304 : vector<8x8xf32> to vector<8x8xbf16>
    %307 = arith.truncf %305 : vector<8x8xf32> to vector<8x8xbf16>
    %cst_110 = arith.constant dense<0.000000e+00> : vector<8x8xf32>
    %308 = tpu.matmul %306, %307, %cst_110 {dimension_numbers = #tpu.dot_dimension_numbers<[1], [0], [0], [1], [0, 0, 1, 1], [], []>} : vector<8x8xbf16>, vector<8x8xbf16>, vector<8x8xf32> -> vector<8x8xf32>
    %309 = vector.extract_strided_slice %239 {offsets = [16, 0], sizes = [8, 32], strides = [1, 1]} : vector<32x32xf32> to vector<8x32xf32>
    %310 = arith.truncf %308 : vector<8x8xf32> to vector<8x8xbf16>
    %311 = arith.truncf %309 : vector<8x32xf32> to vector<8x32xbf16>
    %cst_111 = arith.constant dense<0.000000e+00> : vector<8x32xf32>
    %312 = tpu.matmul %310, %311, %cst_111 {dimension_numbers = #tpu.dot_dimension_numbers<[1], [0], [0], [1], [0, 0, 1, 1], [], []>} : vector<8x8xbf16>, vector<8x32xbf16>, vector<8x32xf32> -> vector<8x32xf32>
    %313 = arith.addf %288, %312 : vector<8x32xf32>
    %314 = vector.extract_strided_slice %235 {offsets = [0, 24], sizes = [8, 8], strides = [1, 1]} : vector<8x32xf32> to vector<8x8xf32>
    %315 = vector.extract_strided_slice %236 {offsets = [0, 24], sizes = [8, 8], strides = [1, 1]} : vector<8x32xf32> to vector<8x8xf32>
    %316 = arith.truncf %314 : vector<8x8xf32> to vector<8x8xbf16>
    %317 = arith.truncf %315 : vector<8x8xf32> to vector<8x8xbf16>
    %cst_112 = arith.constant dense<0.000000e+00> : vector<8x8xf32>
    %318 = tpu.matmul %316, %317, %cst_112 {dimension_numbers = #tpu.dot_dimension_numbers<[1], [1], [0], [0], [0, 0, 1, 0], [], []>} : vector<8x8xbf16>, vector<8x8xbf16>, vector<8x8xf32> -> vector<8x8xf32>
    %319 = arith.addf %318, %5 : vector<8x8xf32>
    %cst_113 = arith.constant dense<0xFF800000> : vector<8xf32>
    %320 = vector.multi_reduction <maximumf>, %319, %cst_113 [1] : vector<8x8xf32> to vector<8xf32>
    %321 = vector.shape_cast %320 : vector<8xf32> to vector<8x1xf32>
    %322 = vector.broadcast %321 : vector<8x1xf32> to vector<8x8xf32>
    %323 = arith.subf %319, %322 : vector<8x8xf32>
    %324 = math.exp %323 : vector<8x8xf32>
    %cst_114 = arith.constant dense<0.000000e+00> : vector<8xf32>
    %325 = vector.multi_reduction <add>, %324, %cst_114 [1] : vector<8x8xf32> to vector<8xf32>
    %326 = vector.shape_cast %325 : vector<8xf32> to vector<8x1xf32>
    %327 = tpu.reciprocal %326 {approx = true} : vector<8x1xf32> -> vector<8x1xf32>
    %328 = vector.broadcast %327 : vector<8x1xf32> to vector<8x8xf32>
    %329 = arith.mulf %324, %328 : vector<8x8xf32>
    %330 = vector.extract_strided_slice %237 {offsets = [0, 24], sizes = [8, 8], strides = [1, 1]} : vector<8x32xf32> to vector<8x8xf32>
    %331 = arith.truncf %329 : vector<8x8xf32> to vector<8x8xbf16>
    %332 = arith.truncf %330 : vector<8x8xf32> to vector<8x8xbf16>
    %cst_115 = arith.constant dense<0.000000e+00> : vector<8x8xf32>
    %333 = tpu.matmul %331, %332, %cst_115 {dimension_numbers = #tpu.dot_dimension_numbers<[1], [0], [0], [1], [0, 0, 1, 1], [], []>} : vector<8x8xbf16>, vector<8x8xbf16>, vector<8x8xf32> -> vector<8x8xf32>
    %334 = vector.extract_strided_slice %239 {offsets = [24, 0], sizes = [8, 32], strides = [1, 1]} : vector<32x32xf32> to vector<8x32xf32>
    %335 = arith.truncf %333 : vector<8x8xf32> to vector<8x8xbf16>
    %336 = arith.truncf %334 : vector<8x32xf32> to vector<8x32xbf16>
    %cst_116 = arith.constant dense<0.000000e+00> : vector<8x32xf32>
    %337 = tpu.matmul %335, %336, %cst_116 {dimension_numbers = #tpu.dot_dimension_numbers<[1], [0], [0], [1], [0, 0, 1, 1], [], []>} : vector<8x8xbf16>, vector<8x32xbf16>, vector<8x32xf32> -> vector<8x32xf32>
    %338 = arith.addf %313, %337 : vector<8x32xf32>
    %c1_117 = arith.constant 1 : index
    %c0_118 = arith.constant 0 : index
    %c0_119 = arith.constant 0 : index
    %339 = vector.load %arg8[%c1_117, %c0_118, %c0_119] : memref<2x1x32xf32, #tpu.memory_space<vmem>>, vector<1x1x32xf32>
    %340 = vector.shape_cast %339 : vector<1x1x32xf32> to vector<1x32xf32>
    %341 = vector.broadcast %340 : vector<1x32xf32> to vector<8x32xf32>
    %342 = arith.addf %338, %341 : vector<8x32xf32>
    %343 = arith.addf %342, %224 : vector<8x32xf32>
    %c1_120 = arith.constant 1 : index
    %c0_121 = arith.constant 0 : index
    %c0_122 = arith.constant 0 : index
    %344 = vector.load %arg9[%c1_120, %c0_121, %c0_122] : memref<2x1x32xf32, #tpu.memory_space<vmem>>, vector<1x1x32xf32>
    %345 = vector.shape_cast %344 : vector<1x1x32xf32> to vector<1x32xf32>
    %c1_123 = arith.constant 1 : index
    %c0_124 = arith.constant 0 : index
    %c0_125 = arith.constant 0 : index
    %346 = vector.load %arg10[%c1_123, %c0_124, %c0_125] : memref<2x1x32xf32, #tpu.memory_space<vmem>>, vector<1x1x32xf32>
    %347 = vector.shape_cast %346 : vector<1x1x32xf32> to vector<1x32xf32>
    %cst_126 = arith.constant dense<0.000000e+00> : vector<8xf32>
    %348 = vector.multi_reduction <add>, %343, %cst_126 [1] : vector<8x32xf32> to vector<8xf32>
    %349 = vector.shape_cast %348 : vector<8xf32> to vector<8x1xf32>
    %cst_127 = arith.constant 3.200000e+01 : f32
    %350 = vector.broadcast %cst_127 : f32 to vector<8x1xf32>
    %351 = arith.divf %349, %350 : vector<8x1xf32>
    %352 = vector.broadcast %351 : vector<8x1xf32> to vector<8x32xf32>
    %353 = arith.subf %343, %352 : vector<8x32xf32>
    %354 = arith.mulf %353, %353 : vector<8x32xf32>
    %cst_128 = arith.constant dense<0.000000e+00> : vector<8xf32>
    %355 = vector.multi_reduction <add>, %354, %cst_128 [1] : vector<8x32xf32> to vector<8xf32>
    %356 = vector.shape_cast %355 : vector<8xf32> to vector<8x1xf32>
    %cst_129 = arith.constant 3.200000e+01 : f32
    %357 = vector.broadcast %cst_129 : f32 to vector<8x1xf32>
    %358 = arith.divf %356, %357 : vector<8x1xf32>
    %cst_130 = arith.constant 9.99999996E-13 : f32
    %359 = vector.broadcast %cst_130 : f32 to vector<8x1xf32>
    %360 = arith.addf %358, %359 : vector<8x1xf32>
    %361 = math.rsqrt %360 : vector<8x1xf32>
    %362 = vector.broadcast %361 : vector<8x1xf32> to vector<8x32xf32>
    %363 = arith.mulf %353, %362 : vector<8x32xf32>
    %364 = vector.broadcast %345 : vector<1x32xf32> to vector<8x32xf32>
    %365 = arith.mulf %363, %364 : vector<8x32xf32>
    %366 = vector.broadcast %347 : vector<1x32xf32> to vector<8x32xf32>
    %367 = arith.addf %365, %366 : vector<8x32xf32>
    %c1_131 = arith.constant 1 : index
    %c0_132 = arith.constant 0 : index
    %c0_133 = arith.constant 0 : index
    %368 = vector.load %arg11[%c1_131, %c0_132, %c0_133] : memref<2x32x64xbf16, #tpu.memory_space<vmem>>, vector<1x32x64xbf16>
    %369 = vector.shape_cast %368 : vector<1x32x64xbf16> to vector<32x64xbf16>
    %370 = arith.truncf %367 : vector<8x32xf32> to vector<8x32xbf16>
    %cst_134 = arith.constant dense<0.000000e+00> : vector<8x64xf32>
    %371 = tpu.matmul %370, %369, %cst_134 {dimension_numbers = #tpu.dot_dimension_numbers<[1], [0], [0], [1], [0, 0, 1, 1], [], []>} : vector<8x32xbf16>, vector<32x64xbf16>, vector<8x64xf32> -> vector<8x64xf32>
    %c1_135 = arith.constant 1 : index
    %c0_136 = arith.constant 0 : index
    %c0_137 = arith.constant 0 : index
    %372 = vector.load %arg12[%c1_135, %c0_136, %c0_137] : memref<2x1x64xf32, #tpu.memory_space<vmem>>, vector<1x1x64xf32>
    %373 = vector.shape_cast %372 : vector<1x1x64xf32> to vector<1x64xf32>
    %374 = vector.broadcast %373 : vector<1x64xf32> to vector<8x64xf32>
    %375 = arith.addf %371, %374 : vector<8x64xf32>
    %cst_138 = arith.constant 5.000000e-01 : f32
    %376 = vector.broadcast %cst_138 : f32 to vector<8x64xf32>
    %377 = arith.mulf %376, %375 : vector<8x64xf32>
    %cst_139 = arith.constant 4.471500e-02 : f32
    %378 = vector.broadcast %cst_139 : f32 to vector<8x64xf32>
    %379 = arith.mulf %378, %375 : vector<8x64xf32>
    %380 = arith.mulf %379, %375 : vector<8x64xf32>
    %381 = arith.mulf %380, %375 : vector<8x64xf32>
    %382 = arith.addf %375, %381 : vector<8x64xf32>
    %cst_140 = arith.constant 0.797884583 : f32
    %383 = vector.broadcast %cst_140 : f32 to vector<8x64xf32>
    %384 = arith.mulf %383, %382 : vector<8x64xf32>
    %385 = math.tanh %384 : vector<8x64xf32>
    %cst_141 = arith.constant 1.000000e+00 : f32
    %386 = vector.broadcast %cst_141 : f32 to vector<8x64xf32>
    %387 = arith.addf %386, %385 : vector<8x64xf32>
    %388 = arith.mulf %377, %387 : vector<8x64xf32>
    %c1_142 = arith.constant 1 : index
    %c0_143 = arith.constant 0 : index
    %c0_144 = arith.constant 0 : index
    %389 = vector.load %arg13[%c1_142, %c0_143, %c0_144] : memref<2x64x32xbf16, #tpu.memory_space<vmem>>, vector<1x64x32xbf16>
    %390 = vector.shape_cast %389 : vector<1x64x32xbf16> to vector<64x32xbf16>
    %391 = arith.truncf %388 : vector<8x64xf32> to vector<8x64xbf16>
    %cst_145 = arith.constant dense<0.000000e+00> : vector<8x32xf32>
    %392 = tpu.matmul %391, %390, %cst_145 {dimension_numbers = #tpu.dot_dimension_numbers<[1], [0], [0], [1], [0, 0, 1, 1], [], []>} : vector<8x64xbf16>, vector<64x32xbf16>, vector<8x32xf32> -> vector<8x32xf32>
    %c1_146 = arith.constant 1 : index
    %c0_147 = arith.constant 0 : index
    %c0_148 = arith.constant 0 : index
    %393 = vector.load %arg14[%c1_146, %c0_147, %c0_148] : memref<2x1x32xf32, #tpu.memory_space<vmem>>, vector<1x1x32xf32>
    %394 = vector.shape_cast %393 : vector<1x1x32xf32> to vector<1x32xf32>
    %395 = vector.broadcast %394 : vector<1x32xf32> to vector<8x32xf32>
    %396 = arith.addf %392, %395 : vector<8x32xf32>
    %397 = arith.addf %396, %367 : vector<8x32xf32>
    %c1_149 = arith.constant 1 : index
    %c0_150 = arith.constant 0 : index
    %c0_151 = arith.constant 0 : index
    %398 = vector.load %arg15[%c1_149, %c0_150, %c0_151] : memref<2x1x32xf32, #tpu.memory_space<vmem>>, vector<1x1x32xf32>
    %399 = vector.shape_cast %398 : vector<1x1x32xf32> to vector<1x32xf32>
    %c1_152 = arith.constant 1 : index
    %c0_153 = arith.constant 0 : index
    %c0_154 = arith.constant 0 : index
    %400 = vector.load %arg16[%c1_152, %c0_153, %c0_154] : memref<2x1x32xf32, #tpu.memory_space<vmem>>, vector<1x1x32xf32>
    %401 = vector.shape_cast %400 : vector<1x1x32xf32> to vector<1x32xf32>
    %cst_155 = arith.constant dense<0.000000e+00> : vector<8xf32>
    %402 = vector.multi_reduction <add>, %397, %cst_155 [1] : vector<8x32xf32> to vector<8xf32>
    %403 = vector.shape_cast %402 : vector<8xf32> to vector<8x1xf32>
    %cst_156 = arith.constant 3.200000e+01 : f32
    %404 = vector.broadcast %cst_156 : f32 to vector<8x1xf32>
    %405 = arith.divf %403, %404 : vector<8x1xf32>
    %406 = vector.broadcast %405 : vector<8x1xf32> to vector<8x32xf32>
    %407 = arith.subf %397, %406 : vector<8x32xf32>
    %408 = arith.mulf %407, %407 : vector<8x32xf32>
    %cst_157 = arith.constant dense<0.000000e+00> : vector<8xf32>
    %409 = vector.multi_reduction <add>, %408, %cst_157 [1] : vector<8x32xf32> to vector<8xf32>
    %410 = vector.shape_cast %409 : vector<8xf32> to vector<8x1xf32>
    %cst_158 = arith.constant 3.200000e+01 : f32
    %411 = vector.broadcast %cst_158 : f32 to vector<8x1xf32>
    %412 = arith.divf %410, %411 : vector<8x1xf32>
    %cst_159 = arith.constant 9.99999996E-13 : f32
    %413 = vector.broadcast %cst_159 : f32 to vector<8x1xf32>
    %414 = arith.addf %412, %413 : vector<8x1xf32>
    %415 = math.rsqrt %414 : vector<8x1xf32>
    %416 = vector.broadcast %415 : vector<8x1xf32> to vector<8x32xf32>
    %417 = arith.mulf %407, %416 : vector<8x32xf32>
    %418 = vector.broadcast %399 : vector<1x32xf32> to vector<8x32xf32>
    %419 = arith.mulf %417, %418 : vector<8x32xf32>
    %420 = vector.broadcast %401 : vector<1x32xf32> to vector<8x32xf32>
    %421 = arith.addf %419, %420 : vector<8x32xf32>
    %422 = vector.extract_strided_slice %421 {offsets = [0, 0], sizes = [1, 32], strides = [1, 1]} : vector<8x32xf32> to vector<1x32xf32>
    %c0_160 = arith.constant 0 : index
    %c0_161 = arith.constant 0 : index
    %423 = vector.load %arg17[%c0_160, %c0_161] : memref<32x32xbf16, #tpu.memory_space<vmem>>, vector<32x32xbf16>
    %424 = arith.truncf %422 : vector<1x32xf32> to vector<1x32xbf16>
    %cst_162 = arith.constant dense<0.000000e+00> : vector<1x32xf32>
    %425 = tpu.matmul %424, %423, %cst_162 {dimension_numbers = #tpu.dot_dimension_numbers<[1], [0], [0], [1], [0, 0, 1, 1], [], []>} : vector<1x32xbf16>, vector<32x32xbf16>, vector<1x32xf32> -> vector<1x32xf32>
    %c0_163 = arith.constant 0 : index
    %c0_164 = arith.constant 0 : index
    %426 = vector.load %arg18[%c0_163, %c0_164] : memref<1x32xf32, #tpu.memory_space<vmem>>, vector<1x32xf32>
    %427 = arith.addf %425, %426 : vector<1x32xf32>
    %428 = math.tanh %427 : vector<1x32xf32>
    %c0_165 = arith.constant 0 : index
    %c0_166 = arith.constant 0 : index
    %429 = vector.load %arg19[%c0_165, %c0_166] : memref<32x3xbf16, #tpu.memory_space<vmem>>, vector<32x3xbf16>
    %430 = arith.truncf %428 : vector<1x32xf32> to vector<1x32xbf16>
    %cst_167 = arith.constant dense<0.000000e+00> : vector<1x3xf32>
    %431 = tpu.matmul %430, %429, %cst_167 {dimension_numbers = #tpu.dot_dimension_numbers<[1], [0], [0], [1], [0, 0, 1, 1], [], []>} : vector<1x32xbf16>, vector<32x3xbf16>, vector<1x3xf32> -> vector<1x3xf32>
    %c0_168 = arith.constant 0 : index
    %c0_169 = arith.constant 0 : index
    %432 = vector.load %arg20[%c0_168, %c0_169] : memref<1x3xf32, #tpu.memory_space<vmem>>, vector<1x3xf32>
    %433 = arith.addf %431, %432 : vector<1x3xf32>
    %c0_170 = arith.constant 0 : index
    %c0_171 = arith.constant 0 : index
    %c0_172 = arith.constant 0 : index
    %434 = vector.load %arg21[%c0_170, %c0_171, %c0_172] : memref<1x1x3xf32, #tpu.memory_space<vmem>>, vector<1x1x3xf32>
    %435 = vector.shape_cast %434 : vector<1x1x3xf32> to vector<1x3xf32>
    %436 = vector.shape_cast %433 : vector<1x3xf32> to vector<1x1x3xf32>
    tpu.vector_store %arg21[%c0_170, %c0_171, %c0_172], %436 {strides = array<i32>} : memref<1x1x3xf32, #tpu.memory_space<vmem>>, vector<1x1x3xf32>,
    return
  }
  func.func @transform_0(%arg0: i32) -> (i32, i32, i32) {
    %c0_i32 = arith.constant 0 : i32
    %c0_i32_0 = arith.constant 0 : i32
    %c0_i32_1 = arith.constant 0 : i32
    return %arg0, %c0_i32, %c0_i32_0 : i32, i32, i32
  }
  func.func @transform_1(%arg0: i32) -> (i32, i32, i32) {
    %c0_i32 = arith.constant 0 : i32
    %c0_i32_0 = arith.constant 0 : i32
    %c0_i32_1 = arith.constant 0 : i32
    return %arg0, %c0_i32, %c0_i32_0 : i32, i32, i32
  }
  func.func @transform_2(%arg0: i32) -> (i32, i32) {
    %c0_i32 = arith.constant 0 : i32
    %c0_i32_0 = arith.constant 0 : i32
    %c0_i32_1 = arith.constant 0 : i32
    return %c0_i32, %c0_i32_0 : i32, i32
  }
  func.func @transform_3(%arg0: i32) -> (i32, i32) {
    %c0_i32 = arith.constant 0 : i32
    %c0_i32_0 = arith.constant 0 : i32
    %c0_i32_1 = arith.constant 0 : i32
    return %c0_i32, %c0_i32_0 : i32, i32
  }
  func.func @transform_4(%arg0: i32) -> (i32, i32, i32) {
    %c0_i32 = arith.constant 0 : i32
    %c0_i32_0 = arith.constant 0 : i32
    %c0_i32_1 = arith.constant 0 : i32
    %c0_i32_2 = arith.constant 0 : i32
    return %c0_i32, %c0_i32_0, %c0_i32_1 : i32, i32, i32
  }
  func.func @transform_5(%arg0: i32) -> (i32, i32, i32) {
    %c0_i32 = arith.constant 0 : i32
    %c0_i32_0 = arith.constant 0 : i32
    %c0_i32_1 = arith.constant 0 : i32
    %c0_i32_2 = arith.constant 0 : i32
    return %c0_i32, %c0_i32_0, %c0_i32_1 : i32, i32, i32
  }
  func.func @transform_6(%arg0: i32) -> (i32, i32, i32) {
    %c0_i32 = arith.constant 0 : i32
    %c0_i32_0 = arith.constant 0 : i32
    %c0_i32_1 = arith.constant 0 : i32
    %c0_i32_2 = arith.constant 0 : i32
    return %c0_i32, %c0_i32_0, %c0_i32_1 : i32, i32, i32
  }
  func.func @transform_7(%arg0: i32) -> (i32, i32, i32) {
    %c0_i32 = arith.constant 0 : i32
    %c0_i32_0 = arith.constant 0 : i32
    %c0_i32_1 = arith.constant 0 : i32
    %c0_i32_2 = arith.constant 0 : i32
    return %c0_i32, %c0_i32_0, %c0_i32_1 : i32, i32, i32
  }
  func.func @transform_8(%arg0: i32) -> (i32, i32, i32) {
    %c0_i32 = arith.constant 0 : i32
    %c0_i32_0 = arith.constant 0 : i32
    %c0_i32_1 = arith.constant 0 : i32
    %c0_i32_2 = arith.constant 0 : i32
    return %c0_i32, %c0_i32_0, %c0_i32_1 : i32, i32, i32
  }
  func.func @transform_9(%arg0: i32) -> (i32, i32, i32) {
    %c0_i32 = arith.constant 0 : i32
    %c0_i32_0 = arith.constant 0 : i32
    %c0_i32_1 = arith.constant 0 : i32
    %c0_i32_2 = arith.constant 0 : i32
    return %c0_i32, %c0_i32_0, %c0_i32_1 : i32, i32, i32
  }
  func.func @transform_10(%arg0: i32) -> (i32, i32, i32) {
    %c0_i32 = arith.constant 0 : i32
    %c0_i32_0 = arith.constant 0 : i32
    %c0_i32_1 = arith.constant 0 : i32
    %c0_i32_2 = arith.constant 0 : i32
    return %c0_i32, %c0_i32_0, %c0_i32_1 : i32, i32, i32
  }
  func.func @transform_11(%arg0: i32) -> (i32, i32, i32) {
    %c0_i32 = arith.constant 0 : i32
    %c0_i32_0 = arith.constant 0 : i32
    %c0_i32_1 = arith.constant 0 : i32
    %c0_i32_2 = arith.constant 0 : i32
    return %c0_i32, %c0_i32_0, %c0_i32_1 : i32, i32, i32
  }
  func.func @transform_12(%arg0: i32) -> (i32, i32, i32) {
    %c0_i32 = arith.constant 0 : i32
    %c0_i32_0 = arith.constant 0 : i32
    %c0_i32_1 = arith.constant 0 : i32
    %c0_i32_2 = arith.constant 0 : i32
    return %c0_i32, %c0_i32_0, %c0_i32_1 : i32, i32, i32
  }
  func.func @transform_13(%arg0: i32) -> (i32, i32, i32) {
    %c0_i32 = arith.constant 0 : i32
    %c0_i32_0 = arith.constant 0 : i32
    %c0_i32_1 = arith.constant 0 : i32
    %c0_i32_2 = arith.constant 0 : i32
    return %c0_i32, %c0_i32_0, %c0_i32_1 : i32, i32, i32
  }
  func.func @transform_14(%arg0: i32) -> (i32, i32, i32) {
    %c0_i32 = arith.constant 0 : i32
    %c0_i32_0 = arith.constant 0 : i32
    %c0_i32_1 = arith.constant 0 : i32
    %c0_i32_2 = arith.constant 0 : i32
    return %c0_i32, %c0_i32_0, %c0_i32_1 : i32, i32, i32
  }
  func.func @transform_15(%arg0: i32) -> (i32, i32, i32) {
    %c0_i32 = arith.constant 0 : i32
    %c0_i32_0 = arith.constant 0 : i32
    %c0_i32_1 = arith.constant 0 : i32
    %c0_i32_2 = arith.constant 0 : i32
    return %c0_i32, %c0_i32_0, %c0_i32_1 : i32, i32, i32
  }
  func.func @transform_16(%arg0: i32) -> (i32, i32) {
    %c0_i32 = arith.constant 0 : i32
    %c0_i32_0 = arith.constant 0 : i32
    %c0_i32_1 = arith.constant 0 : i32
    return %c0_i32, %c0_i32_0 : i32, i32
  }
  func.func @transform_17(%arg0: i32) -> (i32, i32) {
    %c0_i32 = arith.constant 0 : i32
    %c0_i32_0 = arith.constant 0 : i32
    %c0_i32_1 = arith.constant 0 : i32
    return %c0_i32, %c0_i32_0 : i32, i32
  }
  func.func @transform_18(%arg0: i32) -> (i32, i32) {
    %c0_i32 = arith.constant 0 : i32
    %c0_i32_0 = arith.constant 0 : i32
    %c0_i32_1 = arith.constant 0 : i32
    return %c0_i32, %c0_i32_0 : i32, i32
  }
  func.func @transform_19(%arg0: i32) -> (i32, i32) {
    %c0_i32 = arith.constant 0 : i32
    %c0_i32_0 = arith.constant 0 : i32
    %c0_i32_1 = arith.constant 0 : i32
    return %c0_i32, %c0_i32_0 : i32, i32
  }
  func.func @transform_20(%arg0: i32) -> (i32, i32, i32) {
    %c0_i32 = arith.constant 0 : i32
    %c0_i32_0 = arith.constant 0 : i32
    %c0_i32_1 = arith.constant 0 : i32
    return %arg0, %c0_i32, %c0_i32_0 : i32, i32, i32
  }
}

</mosaic_0001>

<llo_original>
// kernel: sequence_bert_forward.1
$region0: #{sequence_bert_forward.1}
  #allocation0 [shape = 'u32[]', space=smem, size = 0x4, offset = 0x4, fixed_abs, tag = 'smem constant byte address 0x4 - core index']
  #allocation1 [shape = 'u32[144,128]{1,0:T(1,128)}', space=vmem, size = 0x12000, scoped, tag = 'internal scratch']
  %s0 = inlined_call_operand.vmem [shape: f32[2,8,32], index: 0, kind: input, shape index: {}]
  %s1 = inlined_call_operand.vmem [shape: f32[2,1,8], index: 1, kind: input, shape index: {}]
  %s2 = inlined_call_operand.vmem [shape: f32[1,32], index: 2, kind: input, shape index: {}]
  %s3 = inlined_call_operand.vmem [shape: f32[1,32], index: 3, kind: input, shape index: {}]
  %s4 = inlined_call_operand.vmem [shape: bf16[2,32,96], index: 4, kind: input, shape index: {}]
  %s5 = inlined_call_operand.vmem [shape: f32[2,1,96], index: 5, kind: input, shape index: {}]
  %s6 = inlined_call_operand.vmem [shape: f32[2,32,32], index: 6, kind: input, shape index: {}]
  %s7 = inlined_call_operand.vmem [shape: f32[2,1,32], index: 7, kind: input, shape index: {}]
  %s8 = inlined_call_operand.vmem [shape: f32[2,1,32], index: 8, kind: input, shape index: {}]
  %s9 = inlined_call_operand.vmem [shape: f32[2,1,32], index: 9, kind: input, shape index: {}]
  %s10 = inlined_call_operand.vmem [shape: bf16[2,32,64], index: 10, kind: input, shape index: {}]
  %s11 = inlined_call_operand.vmem [shape: f32[2,1,64], index: 11, kind: input, shape index: {}]
  %s12 = inlined_call_operand.vmem [shape: bf16[2,64,32], index: 12, kind: input, shape index: {}]
  %s13 = inlined_call_operand.vmem [shape: f32[2,1,32], index: 13, kind: input, shape index: {}]
  %s14 = inlined_call_operand.vmem [shape: f32[2,1,32], index: 14, kind: input, shape index: {}]
  %s15 = inlined_call_operand.vmem [shape: f32[2,1,32], index: 15, kind: input, shape index: {}]
  %s16 = inlined_call_operand.vmem [shape: bf16[32,32], index: 16, kind: input, shape index: {}]
  %s17 = inlined_call_operand.vmem [shape: f32[1,32], index: 17, kind: input, shape index: {}]
  %s18 = inlined_call_operand.vmem [shape: bf16[32,3], index: 18, kind: input, shape index: {}]
  %s19 = inlined_call_operand.vmem [shape: f32[1,3], index: 19, kind: input, shape index: {}]
  %s20 = inlined_call_operand.hbm [shape: f32[2,1,3], index: 20, kind: output, shape index: {}]
  %s21 = sld [smem:[#allocation0]]
  $region113: #{sequence_bert_forward.1} parent=0
    _
  %s23 = ssub.s32 1, %s21
  %s24 = scalar_select 0, %s23, %s21
  $region1: #{sequence_bert_forward.1} parent=0
    #allocation2 [shape = 'u8[1024]{0}', space=vmem, size = 0x400, scoped, tag = 'output window, operand 0']
    #allocation3 [shape = 's32[2]{0}', space=sflag, size = 0x8, scoped, tag = 'scoped memory for sequence_bert_forward.1']
    %25 = vsyncpa [#allocation3], 0
    %s26 = scalar_lea.sflag [#allocation3], 1
    %27 = vsyncpa %s26, 0
    loop: start=0, step=1, limit=4
    $region2: #{sequence_bert_forward.1} parent=1 // loop_pre_header
      _
    $region3: #{sequence_bert_forward.1} parent=1 // loop_header
      %s29 = sphi 0, %s33
      %p30 = scmp.ge.s32.totalorder %s29, 4
      %s39 = sphi 0, %s41
      %s42 = sphi 0, %s39
      %s43 = sphi 0, %s42
      %s59 = sphi 0, %s43
      %s65 = sphi 0, %s67
      %s68 = sphi 0, %s65
      %s69 = sphi 0, %s68
      %s85 = sphi 0, %s69
      %s89 = sphi 0, %s89
      %s91 = sphi 0, %s89
      %s92 = sphi 0, %s91
      %s106 = sphi 0, %s92
      %s110 = sphi 0, %s110
      %s112 = sphi 0, %s110
      %s113 = sphi 0, %s112
      %s127 = sphi 0, %s113
      %s131 = sphi 0, %s131
      %s133 = sphi 0, %s131
      %s134 = sphi 0, %s133
      %s148 = sphi 0, %s134
      %s152 = sphi 0, %s152
      %s154 = sphi 0, %s152
      %s155 = sphi 0, %s154
      %s169 = sphi 0, %s155
      %s173 = sphi 0, %s173
      %s175 = sphi 0, %s173
      %s176 = sphi 0, %s175
      %s190 = sphi 0, %s176
      %s194 = sphi 0, %s194
      %s196 = sphi 0, %s194
      %s197 = sphi 0, %s196
      %s211 = sphi 0, %s197
      %s215 = sphi 0, %s215
      %s217 = sphi 0, %s215
      %s218 = sphi 0, %s217
      %s232 = sphi 0, %s218
      %s236 = sphi 0, %s236
      %s238 = sphi 0, %s236
      %s239 = sphi 0, %s238
      %s253 = sphi 0, %s239
      %s257 = sphi 0, %s257
      %s259 = sphi 0, %s257
      %s260 = sphi 0, %s259
      %s274 = sphi 0, %s260
      %s278 = sphi 0, %s278
      %s280 = sphi 0, %s278
      %s281 = sphi 0, %s280
      %s295 = sphi 0, %s281
      %s299 = sphi 0, %s299
      %s301 = sphi 0, %s299
      %s302 = sphi 0, %s301
      %s316 = sphi 0, %s302
      %s320 = sphi 0, %s320
      %s322 = sphi 0, %s320
      %s323 = sphi 0, %s322
      %s337 = sphi 0, %s323
      %s341 = sphi 0, %s341
      %s343 = sphi 0, %s341
      %s344 = sphi 0, %s343
      %s358 = sphi 0, %s344
      %s362 = sphi 0, %s362
      %s364 = sphi 0, %s362
      %s365 = sphi 0, %s364
      %s379 = sphi 0, %s365
      %s383 = sphi 0, %s383
      %s385 = sphi 0, %s383
      %s386 = sphi 0, %s385
      %s400 = sphi 0, %s386
      %s404 = sphi 0, %s404
      %s406 = sphi 0, %s404
      %s407 = sphi 0, %s406
      %s421 = sphi 0, %s407
      %s425 = sphi 0, %s425
      %s427 = sphi 0, %s425
      %s428 = sphi 0, %s427
      %s442 = sphi 0, %s428
      %s446 = sphi 0, %s446
      %s448 = sphi 0, %s446
      %s449 = sphi 0, %s448
      %s463 = sphi 0, %s449
      %s469 = sphi 0, %s471
      %s472 = sphi 0, %s469
      %s473 = sphi 0, %s472
      %s489 = sphi 0, %s473
    $region4: #{sequence_bert_forward.1} parent=1 // loop_header_branch
      %32 = sbr.rel (%p30) target = $region8
    $region5: #{sequence_bert_forward.1} parent=1 // loop_body
      %s34 = ssub.s32 %s29, 1
      %s35 = ssub.s32 %s29, 2
      %s36 = sadd.s32 %s29, 1
      %s37 = ssub.s32 %s29, %s36
      %p38 = scmp.eq.s32.totalorder %s37, 0
      %s40 = sadd.s32 %s39, 1
      %s41 = scalar_select %p38, %s39, %s40
      %p44 = pneg %p38
      %p45 = scmp.eq.s32.totalorder %s29, 1
      %p46 = por %p44, %p45
      %p47 = scmp.ne.s32.totalorder %s39, %s42
      %p48 = scmp.eq.s32.totalorder %s29, 0
      %p49 = por %p47, %p48
      %p50 = scmp.ne.s32.totalorder %s39, %s42
      %p51 = scmp.eq.s32.totalorder %s34, 1
      %p52 = por %p50, %p51
      %p53 = scmp.ne.s32.totalorder %s42, %s43
      %p54 = scmp.eq.s32.totalorder %s34, 0
      %p55 = por %p53, %p54
      %p56 = scmp.ne.s32.totalorder %s42, %s43
      %p57 = scmp.eq.s32.totalorder %s35, 1
      %p58 = por %p56, %p57
      %p60 = scmp.ne.s32.totalorder %s43, %s59
      %p61 = scmp.eq.s32.totalorder %s35, 0
      %p62 = por %p60, %p61
      %s63 = ssub.s32 %s29, %s36
      %p64 = scmp.eq.s32.totalorder %s63, 0
      %s66 = sadd.s32 %s65, 1
      %s67 = scalar_select %p64, %s65, %s66
      %p70 = pneg %p64
      %p71 = scmp.eq.s32.totalorder %s29, 1
      %p72 = por %p70, %p71
      %p73 = scmp.ne.s32.totalorder %s65, %s68
      %p74 = scmp.eq.s32.totalorder %s29, 0
      %p75 = por %p73, %p74
      %p76 = scmp.ne.s32.totalorder %s65, %s68
      %p77 = scmp.eq.s32.totalorder %s34, 1
      %p78 = por %p76, %p77
      %p79 = scmp.ne.s32.totalorder %s68, %s69
      %p80 = scmp.eq.s32.totalorder %s34, 0
      %p81 = por %p79, %p80
      %p82 = scmp.ne.s32.totalorder %s68, %s69
      %p83 = scmp.eq.s32.totalorder %s35, 1
      %p84 = por %p82, %p83
      %p86 = scmp.ne.s32.totalorder %s69, %s85
      %p87 = scmp.eq.s32.totalorder %s35, 0
      %p88 = por %p86, %p87
      %s90 = sadd.s32 %s89, 1
      %p93 = scmp.eq.s32.totalorder %s29, 1
      %p94 = scmp.ne.s32.totalorder %s89, %s91
      %p95 = scmp.eq.s32.totalorder %s29, 0
      %p96 = por %p94, %p95
      %p97 = scmp.ne.s32.totalorder %s89, %s91
      %p98 = scmp.eq.s32.totalorder %s34, 1
      %p99 = por %p97, %p98
      %p100 = scmp.ne.s32.totalorder %s91, %s92
      %p101 = scmp.eq.s32.totalorder %s34, 0
      %p102 = por %p100, %p101
      %p103 = scmp.ne.s32.totalorder %s91, %s92
      %p104 = scmp.eq.s32.totalorder %s35, 1
      %p105 = por %p103, %p104
      %p107 = scmp.ne.s32.totalorder %s92, %s106
      %p108 = scmp.eq.s32.totalorder %s35, 0
      %p109 = por %p107, %p108
      %s111 = sadd.s32 %s110, 1
      %p114 = scmp.eq.s32.totalorder %s29, 1
      %p115 = scmp.ne.s32.totalorder %s110, %s112
      %p116 = scmp.eq.s32.totalorder %s29, 0
      %p117 = por %p115, %p116
      %p118 = scmp.ne.s32.totalorder %s110, %s112
      %p119 = scmp.eq.s32.totalorder %s34, 1
      %p120 = por %p118, %p119
      %p121 = scmp.ne.s32.totalorder %s112, %s113
      %p122 = scmp.eq.s32.totalorder %s34, 0
      %p123 = por %p121, %p122
      %p124 = scmp.ne.s32.totalorder %s112, %s113
      %p125 = scmp.eq.s32.totalorder %s35, 1
      %p126 = por %p124, %p125
      %p128 = scmp.ne.s32.totalorder %s113, %s127
      %p129 = scmp.eq.s32.totalorder %s35, 0
      %p130 = por %p128, %p129
      %s132 = sadd.s32 %s131, 1
      %p135 = scmp.eq.s32.totalorder %s29, 1
      %p136 = scmp.ne.s32.totalorder %s131, %s133
      %p137 = scmp.eq.s32.totalorder %s29, 0
      %p138 = por %p136, %p137
      %p139 = scmp.ne.s32.totalorder %s131, %s133
      %p140 = scmp.eq.s32.totalorder %s34, 1
      %p141 = por %p139, %p140
      %p142 = scmp.ne.s32.totalorder %s133, %s134
      %p143 = scmp.eq.s32.totalorder %s34, 0
      %p144 = por %p142, %p143
      %p145 = scmp.ne.s32.totalorder %s133, %s134
      %p146 = scmp.eq.s32.totalorder %s35, 1
      %p147 = por %p145, %p146
      %p149 = scmp.ne.s32.totalorder %s134, %s148
      %p150 = scmp.eq.s32.totalorder %s35, 0
      %p151 = por %p149, %p150
      %s153 = sadd.s32 %s152, 1
      %p156 = scmp.eq.s32.totalorder %s29, 1
      %p157 = scmp.ne.s32.totalorder %s152, %s154
      %p158 = scmp.eq.s32.totalorder %s29, 0
      %p159 = por %p157, %p158
      %p160 = scmp.ne.s32.totalorder %s152, %s154
      %p161 = scmp.eq.s32.totalorder %s34, 1
      %p162 = por %p160, %p161
      %p163 = scmp.ne.s32.totalorder %s154, %s155
      %p164 = scmp.eq.s32.totalorder %s34, 0
      %p165 = por %p163, %p164
      %p166 = scmp.ne.s32.totalorder %s154, %s155
      %p167 = scmp.eq.s32.totalorder %s35, 1
      %p168 = por %p166, %p167
      %p170 = scmp.ne.s32.totalorder %s155, %s169
      %p171 = scmp.eq.s32.totalorder %s35, 0
      %p172 = por %p170, %p171
      %s174 = sadd.s32 %s173, 1
      %p177 = scmp.eq.s32.totalorder %s29, 1
      %p178 = scmp.ne.s32.totalorder %s173, %s175
      %p179 = scmp.eq.s32.totalorder %s29, 0
      %p180 = por %p178, %p179
      %p181 = scmp.ne.s32.totalorder %s173, %s175
      %p182 = scmp.eq.s32.totalorder %s34, 1
      %p183 = por %p181, %p182
      %p184 = scmp.ne.s32.totalorder %s175, %s176
      %p185 = scmp.eq.s32.totalorder %s34, 0
      %p186 = por %p184, %p185
      %p187 = scmp.ne.s32.totalorder %s175, %s176
      %p188 = scmp.eq.s32.totalorder %s35, 1
      %p189 = por %p187, %p188
      %p191 = scmp.ne.s32.totalorder %s176, %s190
      %p192 = scmp.eq.s32.totalorder %s35, 0
      %p193 = por %p191, %p192
      %s195 = sadd.s32 %s194, 1
      %p198 = scmp.eq.s32.totalorder %s29, 1
      %p199 = scmp.ne.s32.totalorder %s194, %s196
      %p200 = scmp.eq.s32.totalorder %s29, 0
      %p201 = por %p199, %p200
      %p202 = scmp.ne.s32.totalorder %s194, %s196
      %p203 = scmp.eq.s32.totalorder %s34, 1
      %p204 = por %p202, %p203
      %p205 = scmp.ne.s32.totalorder %s196, %s197
      %p206 = scmp.eq.s32.totalorder %s34, 0
      %p207 = por %p205, %p206
      %p208 = scmp.ne.s32.totalorder %s196, %s197
      %p209 = scmp.eq.s32.totalorder %s35, 1
      %p210 = por %p208, %p209
      %p212 = scmp.ne.s32.totalorder %s197, %s211
      %p213 = scmp.eq.s32.totalorder %s35, 0
      %p214 = por %p212, %p213
      %s216 = sadd.s32 %s215, 1
      %p219 = scmp.eq.s32.totalorder %s29, 1
      %p220 = scmp.ne.s32.totalorder %s215, %s217
      %p221 = scmp.eq.s32.totalorder %s29, 0
      %p222 = por %p220, %p221
      %p223 = scmp.ne.s32.totalorder %s215, %s217
      %p224 = scmp.eq.s32.totalorder %s34, 1
      %p225 = por %p223, %p224
      %p226 = scmp.ne.s32.totalorder %s217, %s218
      %p227 = scmp.eq.s32.totalorder %s34, 0
      %p228 = por %p226, %p227
      %p229 = scmp.ne.s32.totalorder %s217, %s218
      %p230 = scmp.eq.s32.totalorder %s35, 1
      %p231 = por %p229, %p230
      %p233 = scmp.ne.s32.totalorder %s218, %s232
      %p234 = scmp.eq.s32.totalorder %s35, 0
      %p235 = por %p233, %p234
      %s237 = sadd.s32 %s236, 1
      %p240 = scmp.eq.s32.totalorder %s29, 1
      %p241 = scmp.ne.s32.totalorder %s236, %s238
      %p242 = scmp.eq.s32.totalorder %s29, 0
      %p243 = por %p241, %p242
      %p244 = scmp.ne.s32.totalorder %s236, %s238
      %p245 = scmp.eq.s32.totalorder %s34, 1
      %p246 = por %p244, %p245
      %p247 = scmp.ne.s32.totalorder %s238, %s239
      %p248 = scmp.eq.s32.totalorder %s34, 0
      %p249 = por %p247, %p248
      %p250 = scmp.ne.s32.totalorder %s238, %s239
      %p251 = scmp.eq.s32.totalorder %s35, 1
      %p252 = por %p250, %p251
      %p254 = scmp.ne.s32.totalorder %s239, %s253
      %p255 = scmp.eq.s32.totalorder %s35, 0
      %p256 = por %p254, %p255
      %s258 = sadd.s32 %s257, 1
      %p261 = scmp.eq.s32.totalorder %s29, 1
      %p262 = scmp.ne.s32.totalorder %s257, %s259
      %p263 = scmp.eq.s32.totalorder %s29, 0
      %p264 = por %p262, %p263
      %p265 = scmp.ne.s32.totalorder %s257, %s259
      %p266 = scmp.eq.s32.totalorder %s34, 1
      %p267 = por %p265, %p266
      %p268 = scmp.ne.s32.totalorder %s259, %s260
      %p269 = scmp.eq.s32.totalorder %s34, 0
      %p270 = por %p268, %p269
      %p271 = scmp.ne.s32.totalorder %s259, %s260
      %p272 = scmp.eq.s32.totalorder %s35, 1
      %p273 = por %p271, %p272
      %p275 = scmp.ne.s32.totalorder %s260, %s274
      %p276 = scmp.eq.s32.totalorder %s35, 0
      %p277 = por %p275, %p276
      %s279 = sadd.s32 %s278, 1
      %p282 = scmp.eq.s32.totalorder %s29, 1
      %p283 = scmp.ne.s32.totalorder %s278, %s280
      %p284 = scmp.eq.s32.totalorder %s29, 0
      %p285 = por %p283, %p284
      %p286 = scmp.ne.s32.totalorder %s278, %s280
      %p287 = scmp.eq.s32.totalorder %s34, 1
      %p288 = por %p286, %p287
      %p289 = scmp.ne.s32.totalorder %s280, %s281
      %p290 = scmp.eq.s32.totalorder %s34, 0
      %p291 = por %p289, %p290
      %p292 = scmp.ne.s32.totalorder %s280, %s281
      %p293 = scmp.eq.s32.totalorder %s35, 1
      %p294 = por %p292, %p293
      %p296 = scmp.ne.s32.totalorder %s281, %s295
      %p297 = scmp.eq.s32.totalorder %s35, 0
      %p298 = por %p296, %p297
      %s300 = sadd.s32 %s299, 1
      %p303 = scmp.eq.s32.totalorder %s29, 1
      %p304 = scmp.ne.s32.totalorder %s299, %s301
      %p305 = scmp.eq.s32.totalorder %s29, 0
      %p306 = por %p304, %p305
      %p307 = scmp.ne.s32.totalorder %s299, %s301
      %p308 = scmp.eq.s32.totalorder %s34, 1
      %p309 = por %p307, %p308
      %p310 = scmp.ne.s32.totalorder %s301, %s302
      %p311 = scmp.eq.s32.totalorder %s34, 0
      %p312 = por %p310, %p311
      %p313 = scmp.ne.s32.totalorder %s301, %s302
      %p314 = scmp.eq.s32.totalorder %s35, 1
      %p315 = por %p313, %p314
      %p317 = scmp.ne.s32.totalorder %s302, %s316
      %p318 = scmp.eq.s32.totalorder %s35, 0
      %p319 = por %p317, %p318
      %s321 = sadd.s32 %s320, 1
      %p324 = scmp.eq.s32.totalorder %s29, 1
      %p325 = scmp.ne.s32.totalorder %s320, %s322
      %p326 = scmp.eq.s32.totalorder %s29, 0
      %p327 = por %p325, %p326
      %p328 = scmp.ne.s32.totalorder %s320, %s322
      %p329 = scmp.eq.s32.totalorder %s34, 1
      %p330 = por %p328, %p329
      %p331 = scmp.ne.s32.totalorder %s322, %s323
      %p332 = scmp.eq.s32.totalorder %s34, 0
      %p333 = por %p331, %p332
      %p334 = scmp.ne.s32.totalorder %s322, %s323
      %p335 = scmp.eq.s32.totalorder %s35, 1
      %p336 = por %p334, %p335
      %p338 = scmp.ne.s32.totalorder %s323, %s337
      %p339 = scmp.eq.s32.totalorder %s35, 0
      %p340 = por %p338, %p339
      %s342 = sadd.s32 %s341, 1
      %p345 = scmp.eq.s32.totalorder %s29, 1
      %p346 = scmp.ne.s32.totalorder %s341, %s343
      %p347 = scmp.eq.s32.totalorder %s29, 0
      %p348 = por %p346, %p347
      %p349 = scmp.ne.s32.totalorder %s341, %s343
      %p350 = scmp.eq.s32.totalorder %s34, 1
      %p351 = por %p349, %p350
      %p352 = scmp.ne.s32.totalorder %s343, %s344
      %p353 = scmp.eq.s32.totalorder %s34, 0
      %p354 = por %p352, %p353
      %p355 = scmp.ne.s32.totalorder %s343, %s344
      %p356 = scmp.eq.s32.totalorder %s35, 1
      %p357 = por %p355, %p356
      %p359 = scmp.ne.s32.totalorder %s344, %s358
      %p360 = scmp.eq.s32.totalorder %s35, 0
      %p361 = por %p359, %p360
      %s363 = sadd.s32 %s362, 1
      %p366 = scmp.eq.s32.totalorder %s29, 1
      %p367 = scmp.ne.s32.totalorder %s362, %s364
      %p368 = scmp.eq.s32.totalorder %s29, 0
      %p369 = por %p367, %p368
      %p370 = scmp.ne.s32.totalorder %s362, %s364
      %p371 = scmp.eq.s32.totalorder %s34, 1
      %p372 = por %p370, %p371
      %p373 = scmp.ne.s32.totalorder %s364, %s365
      %p374 = scmp.eq.s32.totalorder %s34, 0
      %p375 = por %p373, %p374
      %p376 = scmp.ne.s32.totalorder %s364, %s365
      %p377 = scmp.eq.s32.totalorder %s35, 1
      %p378 = por %p376, %p377
      %p380 = scmp.ne.s32.totalorder %s365, %s379
      %p381 = scmp.eq.s32.totalorder %s35, 0
      %p382 = por %p380, %p381
      %s384 = sadd.s32 %s383, 1
      %p387 = scmp.eq.s32.totalorder %s29, 1
      %p388 = scmp.ne.s32.totalorder %s383, %s385
      %p389 = scmp.eq.s32.totalorder %s29, 0
      %p390 = por %p388, %p389
      %p391 = scmp.ne.s32.totalorder %s383, %s385
      %p392 = scmp.eq.s32.totalorder %s34, 1
      %p393 = por %p391, %p392
      %p394 = scmp.ne.s32.totalorder %s385, %s386
      %p395 = scmp.eq.s32.totalorder %s34, 0
      %p396 = por %p394, %p395
      %p397 = scmp.ne.s32.totalorder %s385, %s386
      %p398 = scmp.eq.s32.totalorder %s35, 1
      %p399 = por %p397, %p398
      %p401 = scmp.ne.s32.totalorder %s386, %s400
      %p402 = scmp.eq.s32.totalorder %s35, 0
      %p403 = por %p401, %p402
      %s405 = sadd.s32 %s404, 1
      %p408 = scmp.eq.s32.totalorder %s29, 1
      %p409 = scmp.ne.s32.totalorder %s404, %s406
      %p410 = scmp.eq.s32.totalorder %s29, 0
      %p411 = por %p409, %p410
      %p412 = scmp.ne.s32.totalorder %s404, %s406
      %p413 = scmp.eq.s32.totalorder %s34, 1
      %p414 = por %p412, %p413
      %p415 = scmp.ne.s32.totalorder %s406, %s407
      %p416 = scmp.eq.s32.totalorder %s34, 0
      %p417 = por %p415, %p416
      %p418 = scmp.ne.s32.totalorder %s406, %s407
      %p419 = scmp.eq.s32.totalorder %s35, 1
      %p420 = por %p418, %p419
      %p422 = scmp.ne.s32.totalorder %s407, %s421
      %p423 = scmp.eq.s32.totalorder %s35, 0
      %p424 = por %p422, %p423
      %s426 = sadd.s32 %s425, 1
      %p429 = scmp.eq.s32.totalorder %s29, 1
      %p430 = scmp.ne.s32.totalorder %s425, %s427
      %p431 = scmp.eq.s32.totalorder %s29, 0
      %p432 = por %p430, %p431
      %p433 = scmp.ne.s32.totalorder %s425, %s427
      %p434 = scmp.eq.s32.totalorder %s34, 1
      %p435 = por %p433, %p434
      %p436 = scmp.ne.s32.totalorder %s427, %s428
      %p437 = scmp.eq.s32.totalorder %s34, 0
      %p438 = por %p436, %p437
      %p439 = scmp.ne.s32.totalorder %s427, %s428
      %p440 = scmp.eq.s32.totalorder %s35, 1
      %p441 = por %p439, %p440
      %p443 = scmp.ne.s32.totalorder %s428, %s442
      %p444 = scmp.eq.s32.totalorder %s35, 0
      %p445 = por %p443, %p444
      %s447 = sadd.s32 %s446, 1
      %p450 = scmp.eq.s32.totalorder %s29, 1
      %p451 = scmp.ne.s32.totalorder %s446, %s448
      %p452 = scmp.eq.s32.totalorder %s29, 0
      %p453 = por %p451, %p452
      %p454 = scmp.ne.s32.totalorder %s446, %s448
      %p455 = scmp.eq.s32.totalorder %s34, 1
      %p456 = por %p454, %p455
      %p457 = scmp.ne.s32.totalorder %s448, %s449
      %p458 = scmp.eq.s32.totalorder %s34, 0
      %p459 = por %p457, %p458
      %p460 = scmp.ne.s32.totalorder %s448, %s449
      %p461 = scmp.eq.s32.totalorder %s35, 1
      %p462 = por %p460, %p461
      %p464 = scmp.ne.s32.totalorder %s449, %s463
      %p465 = scmp.eq.s32.totalorder %s35, 0
      %p466 = por %p464, %p465
      %s467 = ssub.s32 %s29, %s36
      %p468 = scmp.eq.s32.totalorder %s467, 0
      %s470 = sadd.s32 %s469, 1
      %s471 = scalar_select %p468, %s469, %s470
      %p474 = pneg %p468
      %p475 = scmp.eq.s32.totalorder %s29, 1
      %p476 = por %p474, %p475
      %p477 = scmp.ne.s32.totalorder %s469, %s472
      %p478 = scmp.eq.s32.totalorder %s29, 0
      %p479 = por %p477, %p478
      %p480 = scmp.ne.s32.totalorder %s469, %s472
      %p481 = scmp.eq.s32.totalorder %s34, 1
      %p482 = por %p480, %p481
      %p483 = scmp.ne.s32.totalorder %s472, %s473
      %p484 = scmp.eq.s32.totalorder %s34, 0
      %p485 = por %p483, %p484
      %p486 = scmp.ne.s32.totalorder %s472, %s473
      %p487 = scmp.eq.s32.totalorder %s35, 1
      %p488 = por %p486, %p487
      %p490 = scmp.ne.s32.totalorder %s473, %s489
      %p491 = scmp.eq.s32.totalorder %s35, 0
      %p492 = por %p490, %p491
      %p493 = scmp.le.s32.totalorder 1, %s29
      %p494 = scmp.lt.s32.totalorder %s29, 3
      %p495 = pnand %p493, %p494
      %p496 = pneg %p495
      // Predicated region
      $region9: #{sequence_bert_forward.1} parent=5 // pred_check
        _
      $region10: #{sequence_bert_forward.1} parent=5 // pred_check_branch
        %498 = sbr.rel (%p495) target = $region12
      $region11: #{sequence_bert_forward.1} parent=5 // pred_region
        %s499 = ssub.s32 %s29, 1
        // Predicated region
        $region13: #{sequence_bert_forward.1} parent=11 // pred_check
          %p500 = pneg %p102
        $region14: #{sequence_bert_forward.1} parent=11 // pred_check_branch
          %502 = sbr.rel (%p500) target = $region16
        $region15: #{sequence_bert_forward.1} parent=11 // pred_region
          _
        $region16: #{sequence_bert_forward.1} parent=11 // pred_fallthru
          _
        // Predicated region
        $region17: #{sequence_bert_forward.1} parent=11 // pred_check
          %p503 = pneg %p123
        $region18: #{sequence_bert_forward.1} parent=11 // pred_check_branch
          %505 = sbr.rel (%p503) target = $region20
        $region19: #{sequence_bert_forward.1} parent=11 // pred_region
          _
        $region20: #{sequence_bert_forward.1} parent=11 // pred_fallthru
          _
        // Predicated region
        $region21: #{sequence_bert_forward.1} parent=11 // pred_check
          %p506 = pneg %p144
        $region22: #{sequence_bert_forward.1} parent=11 // pred_check_branch
          %508 = sbr.rel (%p506) target = $region24
        $region23: #{sequence_bert_forward.1} parent=11 // pred_region
          _
        $region24: #{sequence_bert_forward.1} parent=11 // pred_fallthru
          _
        // Predicated region
        $region25: #{sequence_bert_forward.1} parent=11 // pred_check
          %p509 = pneg %p165
        $region26: #{sequence_bert_forward.1} parent=11 // pred_check_branch
          %511 = sbr.rel (%p509) target = $region28
        $region27: #{sequence_bert_forward.1} parent=11 // pred_region
          _
        $region28: #{sequence_bert_forward.1} parent=11 // pred_fallthru
          _
        // Predicated region
        $region29: #{sequence_bert_forward.1} parent=11 // pred_check
          %p512 = pneg %p186
        $region30: #{sequence_bert_forward.1} parent=11 // pred_check_branch
          %514 = sbr.rel (%p512) target = $region32
        $region31: #{sequence_bert_forward.1} parent=11 // pred_region
          _
        $region32: #{sequence_bert_forward.1} parent=11 // pred_fallthru
          _
        // Predicated region
        $region33: #{sequence_bert_forward.1} parent=11 // pred_check
          %p515 = pneg %p207
        $region34: #{sequence_bert_forward.1} parent=11 // pred_check_branch
          %517 = sbr.rel (%p515) target = $region36
        $region35: #{sequence_bert_forward.1} parent=11 // pred_region
          _
        $region36: #{sequence_bert_forward.1} parent=11 // pred_fallthru
          _
        // Predicated region
        $region37: #{sequence_bert_forward.1} parent=11 // pred_check
          %p518 = pneg %p228
        $region38: #{sequence_bert_forward.1} parent=11 // pred_check_branch
          %520 = sbr.rel (%p518) target = $region40
        $region39: #{sequence_bert_forward.1} parent=11 // pred_region
          _
        $region40: #{sequence_bert_forward.1} parent=11 // pred_fallthru
          _
        // Predicated region
        $region41: #{sequence_bert_forward.1} parent=11 // pred_check
          %p521 = pneg %p249
        $region42: #{sequence_bert_forward.1} parent=11 // pred_check_branch
          %523 = sbr.rel (%p521) target = $region44
        $region43: #{sequence_bert_forward.1} parent=11 // pred_region
          _
        $region44: #{sequence_bert_forward.1} parent=11 // pred_fallthru
          _
        // Predicated region
        $region45: #{sequence_bert_forward.1} parent=11 // pred_check
          %p524 = pneg %p270
        $region46: #{sequence_bert_forward.1} parent=11 // pred_check_branch
          %526 = sbr.rel (%p524) target = $region48
        $region47: #{sequence_bert_forward.1} parent=11 // pred_region
          _
        $region48: #{sequence_bert_forward.1} parent=11 // pred_fallthru
          _
        // Predicated region
        $region49: #{sequence_bert_forward.1} parent=11 // pred_check
          %p527 = pneg %p291
        $region50: #{sequence_bert_forward.1} parent=11 // pred_check_branch
          %529 = sbr.rel (%p527) target = $region52
        $region51: #{sequence_bert_forward.1} parent=11 // pred_region
          _
        $region52: #{sequence_bert_forward.1} parent=11 // pred_fallthru
          _
        // Predicated region
        $region53: #{sequence_bert_forward.1} parent=11 // pred_check
          %p530 = pneg %p312
        $region54: #{sequence_bert_forward.1} parent=11 // pred_check_branch
          %532 = sbr.rel (%p530) target = $region56
        $region55: #{sequence_bert_forward.1} parent=11 // pred_region
          _
        $region56: #{sequence_bert_forward.1} parent=11 // pred_fallthru
          _
        // Predicated region
        $region57: #{sequence_bert_forward.1} parent=11 // pred_check
          %p533 = pneg %p333
        $region58: #{sequence_bert_forward.1} parent=11 // pred_check_branch
          %535 = sbr.rel (%p533) target = $region60
        $region59: #{sequence_bert_forward.1} parent=11 // pred_region
          _
        $region60: #{sequence_bert_forward.1} parent=11 // pred_fallthru
          _
        // Predicated region
        $region61: #{sequence_bert_forward.1} parent=11 // pred_check
          %p536 = pneg %p354
        $region62: #{sequence_bert_forward.1} parent=11 // pred_check_branch
          %538 = sbr.rel (%p536) target = $region64
        $region63: #{sequence_bert_forward.1} parent=11 // pred_region
          _
        $region64: #{sequence_bert_forward.1} parent=11 // pred_fallthru
          _
        // Predicated region
        $region65: #{sequence_bert_forward.1} parent=11 // pred_check
          %p539 = pneg %p375
        $region66: #{sequence_bert_forward.1} parent=11 // pred_check_branch
          %541 = sbr.rel (%p539) target = $region68
        $region67: #{sequence_bert_forward.1} parent=11 // pred_region
          _
        $region68: #{sequence_bert_forward.1} parent=11 // pred_fallthru
          _
        // Predicated region
        $region69: #{sequence_bert_forward.1} parent=11 // pred_check
          %p542 = pneg %p396
        $region70: #{sequence_bert_forward.1} parent=11 // pred_check_branch
          %544 = sbr.rel (%p542) target = $region72
        $region71: #{sequence_bert_forward.1} parent=11 // pred_region
          _
        $region72: #{sequence_bert_forward.1} parent=11 // pred_fallthru
          _
        // Predicated region
        $region73: #{sequence_bert_forward.1} parent=11 // pred_check
          %p545 = pneg %p417
        $region74: #{sequence_bert_forward.1} parent=11 // pred_check_branch
          %547 = sbr.rel (%p545) target = $region76
        $region75: #{sequence_bert_forward.1} parent=11 // pred_region
          _
        $region76: #{sequence_bert_forward.1} parent=11 // pred_fallthru
          _
        // Predicated region
        $region77: #{sequence_bert_forward.1} parent=11 // pred_check
          %p548 = pneg %p438
        $region78: #{sequence_bert_forward.1} parent=11 // pred_check_branch
          %550 = sbr.rel (%p548) target = $region80
        $region79: #{sequence_bert_forward.1} parent=11 // pred_region
          _
        $region80: #{sequence_bert_forward.1} parent=11 // pred_fallthru
          _
        // Predicated region
        $region81: #{sequence_bert_forward.1} parent=11 // pred_check
          %p551 = pneg %p459
        $region82: #{sequence_bert_forward.1} parent=11 // pred_check_branch
          %553 = sbr.rel (%p551) target = $region84
        $region83: #{sequence_bert_forward.1} parent=11 // pred_region
          _
        $region84: #{sequence_bert_forward.1} parent=11 // pred_fallthru
          _
      $region12: #{sequence_bert_forward.1} parent=5 // pred_fallthru
        _
      %p554 = scmp.lt.s32.totalorder %s29, 2
      // Predicated region
      $region85: #{sequence_bert_forward.1} parent=5 // pred_check
        %p555 = pneg %p554
      $region86: #{sequence_bert_forward.1} parent=5 // pred_check_branch
        %557 = sbr.rel (%p555) target = $region88
      $region87: #{sequence_bert_forward.1} parent=5 // pred_region
        // Predicated region
        $region89: #{sequence_bert_forward.1} parent=87 // pred_check
          %p558 = pneg %p49
        $region90: #{sequence_bert_forward.1} parent=87 // pred_check_branch
          %560 = sbr.rel (%p558) target = $region92
        $region91: #{sequence_bert_forward.1} parent=87 // pred_region
          %p561 = scmp.lt.s32.totalorder %s29, 1
          %s562 = scalar_select %p561, %s29, 1
          %s563 = smul.addr %s562, 8
          %s564 = scalar_lea.vmem %s0, %s563
        $region92: #{sequence_bert_forward.1} parent=87 // pred_fallthru
          _
        // Predicated region
        $region93: #{sequence_bert_forward.1} parent=87 // pred_check
          %p565 = pneg %p75
        $region94: #{sequence_bert_forward.1} parent=87 // pred_check_branch
          %567 = sbr.rel (%p565) target = $region96
        $region95: #{sequence_bert_forward.1} parent=87 // pred_region
          %p568 = scmp.lt.s32.totalorder %s29, 1
          %s569 = scalar_select %p568, %s29, 1
          %s570 = scalar_lea.vmem %s1, %s569
        $region96: #{sequence_bert_forward.1} parent=87 // pred_fallthru
          _
      $region88: #{sequence_bert_forward.1} parent=5 // pred_fallthru
        _
      %p571 = scmp.le.s32.totalorder 1, %s29
      %p572 = scmp.lt.s32.totalorder %s29, 3
      %p573 = pnand %p571, %p572
      %p574 = pneg %p573
      // Predicated region
      $region97: #{sequence_bert_forward.1} parent=5 // pred_check
        _
      $region98: #{sequence_bert_forward.1} parent=5 // pred_check_branch
        %576 = sbr.rel (%p573) target = $region100
      $region99: #{sequence_bert_forward.1} parent=5 // pred_region
        %s577 = ssub.s32 %s29, 1
        %p578 = scmp.lt.s32.totalorder %s34, 1
        %s579 = scalar_select %p578, %s34, 1
        %s580 = smul.addr %s579, 8
        %s581 = scalar_lea.vmem %s0, %s580
        %p582 = pneg %p55
        %p583 = pneg %p52
        %p584 = scmp.lt.s32.totalorder %s34, 1
        %s585 = scalar_select %p584, %s34, 1
        %s586 = scalar_lea.vmem %s1, %s585
        %p587 = pneg %p81
        %p588 = pneg %p78
        %p589 = pneg %p102
        %p590 = pneg %p99
        %p591 = pneg %p123
        %p592 = pneg %p120
        %p593 = pneg %p144
        %p594 = pneg %p141
        %p595 = pneg %p165
        %p596 = pneg %p162
        %p597 = pneg %p186
        %p598 = pneg %p183
        %p599 = pneg %p207
        %p600 = pneg %p204
        %p601 = pneg %p228
        %p602 = pneg %p225
        %p603 = pneg %p249
        %p604 = pneg %p246
        %p605 = pneg %p270
        %p606 = pneg %p267
        %p607 = pneg %p291
        %p608 = pneg %p288
        %p609 = pneg %p312
        %p610 = pneg %p309
        %p611 = pneg %p333
        %p612 = pneg %p330
        %p613 = pneg %p354
        %p614 = pneg %p351
        %p615 = pneg %p375
        %p616 = pneg %p372
        %p617 = pneg %p396
        %p618 = pneg %p393
        %p619 = pneg %p417
        %p620 = pneg %p414
        %p621 = pneg %p438
        %p622 = pneg %p435
        %p623 = pneg %p459
        %p624 = pneg %p456
        %p625 = pneg %p485
        %p626 = pneg %p482
        %s627 = sand.u32 %s472, 1
        %s628 = scalar_lea.sflag [#allocation3], %s627
        %s629 = sand.u32 %s472, 1
        %s630 = scalar_lea.vmem [#allocation2], %s629
        %p631 = scmp.lt.s32.totalorder %s34, 1
        %s632 = scalar_select %p631, %s34, 1
        %s633 = smul.addr %s632, 8
        %s634 = scalar_lea.vmem %s0, %s633
        %p635 = scmp.lt.s32.totalorder %s34, 1
        %s636 = scalar_select %p635, %s34, 1
        %s637 = scalar_lea.vmem %s1, %s636
        %v639 = vld [vmem:[%s634] sm:$0xff]
        %v640 = vld [vmem:[%s637] sm:$0x1]
        %v642 = vlaneseq
        %v643 = vshrl.u32 %v642, 7
        %v644 = vsub.s32 0, %v643
        %v645 = vrot.slane %v640, %v644
        %v647 = vld [vmem:[%s2] sm:$0x1]
        %v648 = vld [vmem:[%s3] sm:$0x1]
        %vm649 = vcmask 261120
        %v650 = vsel %vm649, %v639, 0.0
        %651 = vadd.xlane.f32.xlu0 %v650
        %v652 = vpop.xlane.xlu0 %651
        %v653 = vrcp.pop 32.0
        %v654 = vmul.f32 %v652, %v653
        %v655 = vsub.f32 %v639, %v654
        %v656 = vmul.f32 %v655, %v655
        %v657 = vsel %vm649, %v656, 0.0
        %658 = vadd.xlane.f32.xlu0 %v657
        %v659 = vpop.xlane.xlu0 %658
        %v660 = vmul.f32 %v659, %v653
        %v661 = vadd.f32 %v660, 1e-12
        %v662 = vrsqrt.pop %v661
        %v663 = vmul.f32 %v655, %v662
        %v665 = vlaneseq
        %v666 = vshrl.u32 %v665, 7
        %v667 = vsub.s32 0, %v666
        %v668 = vrot.slane %v647, %v667
        %v670 = vmul.f32 %v663, %v668
        %v672 = vlaneseq
        %v673 = vshrl.u32 %v672, 7
        %v674 = vsub.s32 0, %v673
        %v675 = vrot.slane %v648, %v674
        %v677 = vadd.f32 %v670, %v675
        %v678 = vld [vmem:[%s4] sm:$0xf]
        %v679 = vld [vmem:[%s4 + $0x4] sm:$0xf]
        %v680 = vld [vmem:[%s4 + $0x8] sm:$0xf]
        %v681 = vld [vmem:[%s4 + $0xc] sm:$0xf]
        %v682 = vpack.c.bf16 %v677, %v677
        %v683 = vld [vmem:[%s5] sm:$0x1]
        %v685 = vlaneseq
        %v686 = vshrl.u32 %v685, 7
        %v687 = vsub.s32 0, %v686
        %v688 = vrot.slane %v683, %v687
        %v694 = vunpack.c.l.b16 %v678
        %v695 = vunpack.c.l.b16 %v679
        %v696 = vunpack.c.l.b16 %v680
        %v697 = vunpack.c.l.b16 %v681
        %v698 = vpack.c.b16 %v695, %v694
        %v699 = vpack.c.b16 %v697, %v696
        %v703 = vsel %vm649, %v682, 0
        %705 = vmatprep.subr.bf16.mxu0 0
        %706 = vmatpush1.bf16.msra.mxu0 0
        %707 = vmatprep.subr.bf16.mxu0 0
        %708 = vmatpush1.bf16.msra.mxu0 0
        %709 = vmatprep.subr.bf16.mxu0 0
        %710 = vmatpush1.bf16.msra.mxu0 0
        %711 = vmatprep.subr.bf16.mxu0 0
        %712 = vmatpush1.bf16.msra.mxu0 0
        %713 = vmatprep.subr.bf16.mxu0 0
        %714 = vmatpush1.bf16.msra.mxu0 0
        %715 = vmatprep.subr.bf16.mxu0 0
        %716 = vmatpush1.bf16.msra.mxu0 0
        %717 = vmatprep.subr.bf16.mxu0 0
        %718 = vmatpush1.bf16.msra.mxu0 %v699
        %719 = vmatprep.subr.bf16.mxu0 0
        %720 = vmatpush1.bf16.msra.mxu0 %v698
        %721 = vmatprep.subr.bf16.mxu0 0
        %722 = vmatpush2.bf16.msra.mxu0 0
        %723 = vmatprep.subr.bf16.mxu0 0
        %724 = vmatpush2.bf16.msra.mxu0 0
        %725 = vmatprep.subr.bf16.mxu0 0
        %726 = vmatpush2.bf16.msra.mxu0 0
        %727 = vmatprep.subr.bf16.mxu0 0
        %728 = vmatpush2.bf16.msra.mxu0 0
        %729 = vmatprep.subr.bf16.mxu0 0
        %730 = vmatpush2.bf16.msra.mxu0 0
        %731 = vmatprep.subr.bf16.mxu0 0
        %732 = vmatpush2.bf16.msra.mxu0 0
        %733 = vmatprep.subr.bf16.mxu0 0
        %734 = vmatpush2.bf16.msra.mxu0 0
        %735 = vmatprep.subr.bf16.mxu0 0
        %736 = vmatpush2.bf16.msra.mxu0 0
        %737 = vmatprep.mubr.bf16.mxu0 0
        %738 = vmatmul.mubr.bf16.gmra.mxu0 %v703
        %v739 = vpop.f32.mrf.mxu0
        %v740 = vadd.f32 %v688, %v739
        %v741 = vpop.f32.mrf.mxu0
        %v742 = vpop.f32.mrf.mxu0
        %v743 = vpop.f32.mrf.mxu0
        %744 = vdwg.mxu0
        %v745 = vmul.f32 %v740, 0.35355338
        %v746 = vld [vmem:[%s6] sm:$0xff]
        %v747 = vld [vmem:[%s6 + $0x8] sm:$0xff]
        %v748 = vld [vmem:[%s6 + $0x10] sm:$0xff]
        %v749 = vld [vmem:[%s6 + $0x18] sm:$0xff]
        %v750 = vpack.c.bf16 %v745, %v745
        %v751 = vpack.c.bf16 %v740, %v740
        %753 = vrot.lane.b32.xlu0 %v751, 96
        %v754 = vpop.permute.xlu0 %753
        %vm755 = vcmask 64512
        %v757 = vsel %vm755, %v750, 0
        %v760 = vsel %vm755, %v754, 0
        %762 = vmatprep.subr.bf16.mxu0 0
        %763 = vmatpush1.bf16.xpose.msra.mxu0 0
        %764 = vmatprep.subr.bf16.mxu0 0
        %765 = vmatpush1.bf16.xpose.msra.mxu0 0
        %766 = vmatprep.subr.bf16.mxu0 0
        %767 = vmatpush1.bf16.xpose.msra.mxu0 0
        %768 = vmatprep.subr.bf16.mxu0 0
        %769 = vmatpush1.bf16.xpose.msra.mxu0 0
        %770 = vmatprep.subr.bf16.mxu0 0
        %771 = vmatpush1.bf16.xpose.msra.mxu0 0
        %772 = vmatprep.subr.bf16.mxu0 0
        %773 = vmatpush1.bf16.xpose.msra.mxu0 0
        %774 = vmatprep.subr.bf16.mxu0 0
        %775 = vmatpush1.bf16.xpose.msra.mxu0 0
        %776 = vmatprep.subr.bf16.mxu0 0
        %777 = vmatpush1.bf16.xpose.msra.mxu0 %v760
        %778 = vmatprep.subr.bf16.mxu0 0
        %779 = vmatpush2.bf16.xpose.msra.mxu0 0
        %780 = vmatprep.subr.bf16.mxu0 0
        %781 = vmatpush2.bf16.xpose.msra.mxu0 0
        %782 = vmatprep.subr.bf16.mxu0 0
        %783 = vmatpush2.bf16.xpose.msra.mxu0 0
        %784 = vmatprep.subr.bf16.mxu0 0
        %785 = vmatpush2.bf16.xpose.msra.mxu0 0
        %786 = vmatprep.subr.bf16.mxu0 0
        %787 = vmatpush2.bf16.xpose.msra.mxu0 0
        %788 = vmatprep.subr.bf16.mxu0 0
        %789 = vmatpush2.bf16.xpose.msra.mxu0 0
        %790 = vmatprep.subr.bf16.mxu0 0
        %791 = vmatpush2.bf16.xpose.msra.mxu0 0
        %792 = vmatprep.subr.bf16.mxu0 0
        %793 = vmatpush2.bf16.xpose.msra.mxu0 0
        %794 = vmatprep.mubr.bf16.mxu0 0
        %795 = vmatmul.mubr.bf16.gmra.mxu0 %v757
        %v796 = vpop.f32.mrf.mxu0
        %v797 = vadd.f32 %v645, %v796
        %v798 = vpop.f32.mrf.mxu0
        %v799 = vpop.f32.mrf.mxu0
        %v800 = vpop.f32.mrf.mxu0
        %801 = vdwg.mxu0
        %v802 = vsel %vm755, %v797, -inf
        %803 = vmax.xlane.f32.xlu0 %v802
        %v804 = vpop.xlane.xlu0 %803
        %v805 = vsub.f32 %v797, %v804
        %v806 = vmul.f32 %v805, 1.442695
        %v807 = vpow.pop %v806
        %v808 = vsel %vm755, %v807, 0.0
        %809 = vadd.xlane.f32.xlu0 %v808
        %v810 = vpop.xlane.xlu0 %809
        %v811 = vrcp.pop %v810
        %v812 = vmul.f32 %v807, %v811
        %v813 = vpack.c.bf16 %v812, %v812
        %814 = vrot.lane.b32.xlu0 %v751, 64
        %v815 = vpop.permute.xlu0 %814
        %v817 = vsel %vm755, %v813, 0
        %vm819 = vcmask 1043456
        %v821 = vsel %vm819, %v815, 0
        %823 = vmatprep.subr.bf16.mxu0 0
        %824 = vmatpush1.bf16.msra.mxu0 0
        %825 = vmatprep.subr.bf16.mxu0 0
        %826 = vmatpush1.bf16.msra.mxu0 0
        %827 = vmatprep.subr.bf16.mxu0 0
        %828 = vmatpush1.bf16.msra.mxu0 0
        %829 = vmatprep.subr.bf16.mxu0 0
        %830 = vmatpush1.bf16.msra.mxu0 0
        %831 = vmatprep.subr.bf16.mxu0 0
        %832 = vmatpush1.bf16.msra.mxu0 0
        %833 = vmatprep.subr.bf16.mxu0 0
        %834 = vmatpush1.bf16.msra.mxu0 0
        %835 = vmatprep.subr.bf16.mxu0 0
        %836 = vmatpush1.bf16.msra.mxu0 0
        %837 = vmatprep.subr.bf16.mxu0 0
        %838 = vmatpush1.bf16.msra.mxu0 %v821
        %839 = vmatprep.subr.bf16.mxu0 0
        %840 = vmatpush2.bf16.msra.mxu0 0
        %841 = vmatprep.subr.bf16.mxu0 0
        %842 = vmatpush2.bf16.msra.mxu0 0
        %843 = vmatprep.subr.bf16.mxu0 0
        %844 = vmatpush2.bf16.msra.mxu0 0
        %845 = vmatprep.subr.bf16.mxu0 0
        %846 = vmatpush2.bf16.msra.mxu0 0
        %847 = vmatprep.subr.bf16.mxu0 0
        %848 = vmatpush2.bf16.msra.mxu0 0
        %849 = vmatprep.subr.bf16.mxu0 0
        %850 = vmatpush2.bf16.msra.mxu0 0
        %851 = vmatprep.subr.bf16.mxu0 0
        %852 = vmatpush2.bf16.msra.mxu0 0
        %853 = vmatprep.subr.bf16.mxu0 0
        %854 = vmatpush2.bf16.msra.mxu0 0
        %855 = vmatprep.mubr.bf16.mxu0 0
        %856 = vmatmul.mubr.bf16.gmra.mxu0 %v817
        %v857 = vpop.f32.mrf.mxu0
        %v858 = vadd.f32 0.0, %v857
        %v859 = vpop.f32.mrf.mxu0
        %v860 = vpop.f32.mrf.mxu0
        %v861 = vpop.f32.mrf.mxu0
        %862 = vdwg.mxu0
        %v863 = vpack.c.bf16 %v858, %v858
        %v864 = vpack.c.bf16 %v746, %v746
        %866 = vrot.lane.b32.xlu0 %v750, 120
        %v867 = vpop.permute.xlu0 %866
        %868 = vrot.lane.b32.xlu0 %v751, 88
        %v869 = vpop.permute.xlu0 %868
        %v871 = vsel %vm755, %v867, 0
        %v874 = vsel %vm755, %v869, 0
        %876 = vmatprep.subr.bf16.mxu0 0
        %877 = vmatpush1.bf16.xpose.msra.mxu0 0
        %878 = vmatprep.subr.bf16.mxu0 0
        %879 = vmatpush1.bf16.xpose.msra.mxu0 0
        %880 = vmatprep.subr.bf16.mxu0 0
        %881 = vmatpush1.bf16.xpose.msra.mxu0 0
        %882 = vmatprep.subr.bf16.mxu0 0
        %883 = vmatpush1.bf16.xpose.msra.mxu0 0
        %884 = vmatprep.subr.bf16.mxu0 0
        %885 = vmatpush1.bf16.xpose.msra.mxu0 0
        %886 = vmatprep.subr.bf16.mxu0 0
        %887 = vmatpush1.bf16.xpose.msra.mxu0 0
        %888 = vmatprep.subr.bf16.mxu0 0
        %889 = vmatpush1.bf16.xpose.msra.mxu0 0
        %890 = vmatprep.subr.bf16.mxu0 0
        %891 = vmatpush1.bf16.xpose.msra.mxu0 %v874
        %892 = vmatprep.subr.bf16.mxu0 0
        %893 = vmatpush2.bf16.xpose.msra.mxu0 0
        %894 = vmatprep.subr.bf16.mxu0 0
        %895 = vmatpush2.bf16.xpose.msra.mxu0 0
        %896 = vmatprep.subr.bf16.mxu0 0
        %897 = vmatpush2.bf16.xpose.msra.mxu0 0
        %898 = vmatprep.subr.bf16.mxu0 0
        %899 = vmatpush2.bf16.xpose.msra.mxu0 0
        %900 = vmatprep.subr.bf16.mxu0 0
        %901 = vmatpush2.bf16.xpose.msra.mxu0 0
        %902 = vmatprep.subr.bf16.mxu0 0
        %903 = vmatpush2.bf16.xpose.msra.mxu0 0
        %904 = vmatprep.subr.bf16.mxu0 0
        %905 = vmatpush2.bf16.xpose.msra.mxu0 0
        %906 = vmatprep.subr.bf16.mxu0 0
        %907 = vmatpush2.bf16.xpose.msra.mxu0 0
        %908 = vmatprep.mubr.bf16.mxu0 0
        %909 = vmatmul.mubr.bf16.gmra.mxu0 %v871
        %v910 = vpop.f32.mrf.mxu0
        %v911 = vadd.f32 %v645, %v910
        %v912 = vpop.f32.mrf.mxu0
        %v913 = vpop.f32.mrf.mxu0
        %v914 = vpop.f32.mrf.mxu0
        %915 = vdwg.mxu0
        %v916 = vsel %vm755, %v911, -inf
        %917 = vmax.xlane.f32.xlu0 %v916
        %v918 = vpop.xlane.xlu0 %917
        %v919 = vsub.f32 %v911, %v918
        %v920 = vmul.f32 %v919, 1.442695
        %v921 = vpow.pop %v920
        %v922 = vsel %vm755, %v921, 0.0
        %923 = vadd.xlane.f32.xlu0 %v922
        %v924 = vpop.xlane.xlu0 %923
        %v925 = vrcp.pop %v924
        %v926 = vmul.f32 %v921, %v925
        %v927 = vpack.c.bf16 %v926, %v926
        %928 = vrot.lane.b32.xlu0 %v751, 56
        %v929 = vpop.permute.xlu0 %928
        %v931 = vsel %vm755, %v927, 0
        %v934 = vsel %vm819, %v929, 0
        %936 = vmatprep.subr.bf16.mxu0 0
        %937 = vmatpush1.bf16.msra.mxu0 0
        %938 = vmatprep.subr.bf16.mxu0 0
        %939 = vmatpush1.bf16.msra.mxu0 0
        %940 = vmatprep.subr.bf16.mxu0 0
        %941 = vmatpush1.bf16.msra.mxu0 0
        %942 = vmatprep.subr.bf16.mxu0 0
        %943 = vmatpush1.bf16.msra.mxu0 0
        %944 = vmatprep.subr.bf16.mxu0 0
        %945 = vmatpush1.bf16.msra.mxu0 0
        %946 = vmatprep.subr.bf16.mxu0 0
        %947 = vmatpush1.bf16.msra.mxu0 0
        %948 = vmatprep.subr.bf16.mxu0 0
        %949 = vmatpush1.bf16.msra.mxu0 0
        %950 = vmatprep.subr.bf16.mxu0 0
        %951 = vmatpush1.bf16.msra.mxu0 %v934
        %952 = vmatprep.subr.bf16.mxu0 0
        %953 = vmatpush2.bf16.msra.mxu0 0
        %954 = vmatprep.subr.bf16.mxu0 0
        %955 = vmatpush2.bf16.msra.mxu0 0
        %956 = vmatprep.subr.bf16.mxu0 0
        %957 = vmatpush2.bf16.msra.mxu0 0
        %958 = vmatprep.subr.bf16.mxu0 0
        %959 = vmatpush2.bf16.msra.mxu0 0
        %960 = vmatprep.subr.bf16.mxu0 0
        %961 = vmatpush2.bf16.msra.mxu0 0
        %962 = vmatprep.subr.bf16.mxu0 0
        %963 = vmatpush2.bf16.msra.mxu0 0
        %964 = vmatprep.subr.bf16.mxu0 0
        %965 = vmatpush2.bf16.msra.mxu0 0
        %966 = vmatprep.subr.bf16.mxu0 0
        %967 = vmatpush2.bf16.msra.mxu0 0
        %968 = vmatprep.mubr.bf16.mxu0 0
        %969 = vmatmul.mubr.bf16.gmra.mxu0 %v931
        %v970 = vpop.f32.mrf.mxu0
        %v971 = vadd.f32 0.0, %v970
        %v972 = vpop.f32.mrf.mxu0
        %v973 = vpop.f32.mrf.mxu0
        %v974 = vpop.f32.mrf.mxu0
        %975 = vdwg.mxu0
        %v976 = vpack.c.bf16 %v971, %v971
        %v977 = vpack.c.bf16 %v747, %v747
        %v979 = vsel %vm755, %v976, 0
        %v982 = vsel %vm819, %v977, 0
        %984 = vmatprep.subr.bf16.mxu0 0
        %985 = vmatpush1.bf16.msra.mxu0 0
        %986 = vmatprep.subr.bf16.mxu0 0
        %987 = vmatpush1.bf16.msra.mxu0 0
        %988 = vmatprep.subr.bf16.mxu0 0
        %989 = vmatpush1.bf16.msra.mxu0 0
        %990 = vmatprep.subr.bf16.mxu0 0
        %991 = vmatpush1.bf16.msra.mxu0 0
        %992 = vmatprep.subr.bf16.mxu0 0
        %993 = vmatpush1.bf16.msra.mxu0 0
        %994 = vmatprep.subr.bf16.mxu0 0
        %995 = vmatpush1.bf16.msra.mxu0 0
        %996 = vmatprep.subr.bf16.mxu0 0
        %997 = vmatpush1.bf16.msra.mxu0 0
        %998 = vmatprep.subr.bf16.mxu0 0
        %999 = vmatpush1.bf16.msra.mxu0 %v982
        %1000 = vmatprep.subr.bf16.mxu0 0
        %1001 = vmatpush2.bf16.msra.mxu0 0
        %1002 = vmatprep.subr.bf16.mxu0 0
        %1003 = vmatpush2.bf16.msra.mxu0 0
        %1004 = vmatprep.subr.bf16.mxu0 0
        %1005 = vmatpush2.bf16.msra.mxu0 0
        %1006 = vmatprep.subr.bf16.mxu0 0
        %1007 = vmatpush2.bf16.msra.mxu0 0
        %1008 = vmatprep.subr.bf16.mxu0 0
        %1009 = vmatpush2.bf16.msra.mxu0 0
        %1010 = vmatprep.subr.bf16.mxu0 0
        %1011 = vmatpush2.bf16.msra.mxu0 0
        %1012 = vmatprep.subr.bf16.mxu0 0
        %1013 = vmatpush2.bf16.msra.mxu0 0
        %1014 = vmatprep.subr.bf16.mxu0 0
        %1015 = vmatpush2.bf16.msra.mxu0 0
        %1016 = vmatprep.mubr.bf16.mxu0 0
        %1017 = vmatmul.mubr.bf16.gmra.mxu0 %v979
        %v1018 = vpop.f32.mrf.mxu0
        %v1019 = vadd.f32 0.0, %v1018
        %v1020 = vpop.f32.mrf.mxu0
        %v1021 = vpop.f32.mrf.mxu0
        %v1022 = vpop.f32.mrf.mxu0
        %1023 = vdwg.mxu0
        %v1025 = vsel %vm755, %v863, 0
        %v1028 = vsel %vm819, %v864, 0
        %1030 = vmatprep.subr.bf16.mxu0 0
        %1031 = vmatpush1.bf16.msra.mxu0 0
        %1032 = vmatprep.subr.bf16.mxu0 0
        %1033 = vmatpush1.bf16.msra.mxu0 0
        %1034 = vmatprep.subr.bf16.mxu0 0
        %1035 = vmatpush1.bf16.msra.mxu0 0
        %1036 = vmatprep.subr.bf16.mxu0 0
        %1037 = vmatpush1.bf16.msra.mxu0 0
        %1038 = vmatprep.subr.bf16.mxu0 0
        %1039 = vmatpush1.bf16.msra.mxu0 0
        %1040 = vmatprep.subr.bf16.mxu0 0
        %1041 = vmatpush1.bf16.msra.mxu0 0
        %1042 = vmatprep.subr.bf16.mxu0 0
        %1043 = vmatpush1.bf16.msra.mxu0 0
        %1044 = vmatprep.subr.bf16.mxu0 0
        %1045 = vmatpush1.bf16.msra.mxu0 %v1028
        %1046 = vmatprep.subr.bf16.mxu0 0
        %1047 = vmatpush2.bf16.msra.mxu0 0
        %1048 = vmatprep.subr.bf16.mxu0 0
        %1049 = vmatpush2.bf16.msra.mxu0 0
        %1050 = vmatprep.subr.bf16.mxu0 0
        %1051 = vmatpush2.bf16.msra.mxu0 0
        %1052 = vmatprep.subr.bf16.mxu0 0
        %1053 = vmatpush2.bf16.msra.mxu0 0
        %1054 = vmatprep.subr.bf16.mxu0 0
        %1055 = vmatpush2.bf16.msra.mxu0 0
        %1056 = vmatprep.subr.bf16.mxu0 0
        %1057 = vmatpush2.bf16.msra.mxu0 0
        %1058 = vmatprep.subr.bf16.mxu0 0
        %1059 = vmatpush2.bf16.msra.mxu0 0
        %1060 = vmatprep.subr.bf16.mxu0 0
        %1061 = vmatpush2.bf16.msra.mxu0 0
        %1062 = vmatprep.mubr.bf16.mxu0 0
        %1063 = vmatmul.mubr.bf16.gmra.mxu0 %v1025
        %v1064 = vpop.f32.mrf.mxu0
        %v1065 = vadd.f32 %v1019, %v1064
        %v1066 = vpop.f32.mrf.mxu0
        %v1067 = vpop.f32.mrf.mxu0
        %v1068 = vpop.f32.mrf.mxu0
        %1069 = vdwg.mxu0
        %1070 = vrot.lane.b32.xlu0 %v750, 112
        %v1071 = vpop.permute.xlu0 %1070
        %1072 = vrot.lane.b32.xlu0 %v751, 80
        %v1073 = vpop.permute.xlu0 %1072
        %v1075 = vsel %vm755, %v1071, 0
        %v1078 = vsel %vm755, %v1073, 0
        %1080 = vmatprep.subr.bf16.mxu0 0
        %1081 = vmatpush1.bf16.xpose.msra.mxu0 0
        %1082 = vmatprep.subr.bf16.mxu0 0
        %1083 = vmatpush1.bf16.xpose.msra.mxu0 0
        %1084 = vmatprep.subr.bf16.mxu0 0
        %1085 = vmatpush1.bf16.xpose.msra.mxu0 0
        %1086 = vmatprep.subr.bf16.mxu0 0
        %1087 = vmatpush1.bf16.xpose.msra.mxu0 0
        %1088 = vmatprep.subr.bf16.mxu0 0
        %1089 = vmatpush1.bf16.xpose.msra.mxu0 0
        %1090 = vmatprep.subr.bf16.mxu0 0
        %1091 = vmatpush1.bf16.xpose.msra.mxu0 0
        %1092 = vmatprep.subr.bf16.mxu0 0
        %1093 = vmatpush1.bf16.xpose.msra.mxu0 0
        %1094 = vmatprep.subr.bf16.mxu0 0
        %1095 = vmatpush1.bf16.xpose.msra.mxu0 %v1078
        %1096 = vmatprep.subr.bf16.mxu0 0
        %1097 = vmatpush2.bf16.xpose.msra.mxu0 0
        %1098 = vmatprep.subr.bf16.mxu0 0
        %1099 = vmatpush2.bf16.xpose.msra.mxu0 0
        %1100 = vmatprep.subr.bf16.mxu0 0
        %1101 = vmatpush2.bf16.xpose.msra.mxu0 0
        %1102 = vmatprep.subr.bf16.mxu0 0
        %1103 = vmatpush2.bf16.xpose.msra.mxu0 0
        %1104 = vmatprep.subr.bf16.mxu0 0
        %1105 = vmatpush2.bf16.xpose.msra.mxu0 0
        %1106 = vmatprep.subr.bf16.mxu0 0
        %1107 = vmatpush2.bf16.xpose.msra.mxu0 0
        %1108 = vmatprep.subr.bf16.mxu0 0
        %1109 = vmatpush2.bf16.xpose.msra.mxu0 0
        %1110 = vmatprep.subr.bf16.mxu0 0
        %1111 = vmatpush2.bf16.xpose.msra.mxu0 0
        %1112 = vmatprep.mubr.bf16.mxu0 0
        %1113 = vmatmul.mubr.bf16.gmra.mxu0 %v1075
        %v1114 = vpop.f32.mrf.mxu0
        %v1115 = vadd.f32 %v645, %v1114
        %v1116 = vpop.f32.mrf.mxu0
        %v1117 = vpop.f32.mrf.mxu0
        %v1118 = vpop.f32.mrf.mxu0
        %1119 = vdwg.mxu0
        %v1120 = vsel %vm755, %v1115, -inf
        %1121 = vmax.xlane.f32.xlu0 %v1120
        %v1122 = vpop.xlane.xlu0 %1121
        %v1123 = vsub.f32 %v1115, %v1122
        %v1124 = vmul.f32 %v1123, 1.442695
        %v1125 = vpow.pop %v1124
        %v1126 = vsel %vm755, %v1125, 0.0
        %1127 = vadd.xlane.f32.xlu0 %v1126
        %v1128 = vpop.xlane.xlu0 %1127
        %v1129 = vrcp.pop %v1128
        %v1130 = vmul.f32 %v1125, %v1129
        %v1131 = vpack.c.bf16 %v1130, %v1130
        %1132 = vrot.lane.b32.xlu0 %v751, 48
        %v1133 = vpop.permute.xlu0 %1132
        %v1135 = vsel %vm755, %v1131, 0
        %v1138 = vsel %vm819, %v1133, 0
        %1140 = vmatprep.subr.bf16.mxu0 0
        %1141 = vmatpush1.bf16.msra.mxu0 0
        %1142 = vmatprep.subr.bf16.mxu0 0
        %1143 = vmatpush1.bf16.msra.mxu0 0
        %1144 = vmatprep.subr.bf16.mxu0 0
        %1145 = vmatpush1.bf16.msra.mxu0 0
        %1146 = vmatprep.subr.bf16.mxu0 0
        %1147 = vmatpush1.bf16.msra.mxu0 0
        %1148 = vmatprep.subr.bf16.mxu0 0
        %1149 = vmatpush1.bf16.msra.mxu0 0
        %1150 = vmatprep.subr.bf16.mxu0 0
        %1151 = vmatpush1.bf16.msra.mxu0 0
        %1152 = vmatprep.subr.bf16.mxu0 0
        %1153 = vmatpush1.bf16.msra.mxu0 0
        %1154 = vmatprep.subr.bf16.mxu0 0
        %1155 = vmatpush1.bf16.msra.mxu0 %v1138
        %1156 = vmatprep.subr.bf16.mxu0 0
        %1157 = vmatpush2.bf16.msra.mxu0 0
        %1158 = vmatprep.subr.bf16.mxu0 0
        %1159 = vmatpush2.bf16.msra.mxu0 0
        %1160 = vmatprep.subr.bf16.mxu0 0
        %1161 = vmatpush2.bf16.msra.mxu0 0
        %1162 = vmatprep.subr.bf16.mxu0 0
        %1163 = vmatpush2.bf16.msra.mxu0 0
        %1164 = vmatprep.subr.bf16.mxu0 0
        %1165 = vmatpush2.bf16.msra.mxu0 0
        %1166 = vmatprep.subr.bf16.mxu0 0
        %1167 = vmatpush2.bf16.msra.mxu0 0
        %1168 = vmatprep.subr.bf16.mxu0 0
        %1169 = vmatpush2.bf16.msra.mxu0 0
        %1170 = vmatprep.subr.bf16.mxu0 0
        %1171 = vmatpush2.bf16.msra.mxu0 0
        %1172 = vmatprep.mubr.bf16.mxu0 0
        %1173 = vmatmul.mubr.bf16.gmra.mxu0 %v1135
        %v1174 = vpop.f32.mrf.mxu0
        %v1175 = vadd.f32 0.0, %v1174
        %v1176 = vpop.f32.mrf.mxu0
        %v1177 = vpop.f32.mrf.mxu0
        %v1178 = vpop.f32.mrf.mxu0
        %1179 = vdwg.mxu0
        %v1180 = vpack.c.bf16 %v1175, %v1175
        %v1181 = vpack.c.bf16 %v748, %v748
        %v1183 = vsel %vm755, %v1180, 0
        %v1186 = vsel %vm819, %v1181, 0
        %1188 = vmatprep.subr.bf16.mxu0 0
        %1189 = vmatpush1.bf16.msra.mxu0 0
        %1190 = vmatprep.subr.bf16.mxu0 0
        %1191 = vmatpush1.bf16.msra.mxu0 0
        %1192 = vmatprep.subr.bf16.mxu0 0
        %1193 = vmatpush1.bf16.msra.mxu0 0
        %1194 = vmatprep.subr.bf16.mxu0 0
        %1195 = vmatpush1.bf16.msra.mxu0 0
        %1196 = vmatprep.subr.bf16.mxu0 0
        %1197 = vmatpush1.bf16.msra.mxu0 0
        %1198 = vmatprep.subr.bf16.mxu0 0
        %1199 = vmatpush1.bf16.msra.mxu0 0
        %1200 = vmatprep.subr.bf16.mxu0 0
        %1201 = vmatpush1.bf16.msra.mxu0 0
        %1202 = vmatprep.subr.bf16.mxu0 0
        %1203 = vmatpush1.bf16.msra.mxu0 %v1186
        %1204 = vmatprep.subr.bf16.mxu0 0
        %1205 = vmatpush2.bf16.msra.mxu0 0
        %1206 = vmatprep.subr.bf16.mxu0 0
        %1207 = vmatpush2.bf16.msra.mxu0 0
        %1208 = vmatprep.subr.bf16.mxu0 0
        %1209 = vmatpush2.bf16.msra.mxu0 0
        %1210 = vmatprep.subr.bf16.mxu0 0
        %1211 = vmatpush2.bf16.msra.mxu0 0
        %1212 = vmatprep.subr.bf16.mxu0 0
        %1213 = vmatpush2.bf16.msra.mxu0 0
        %1214 = vmatprep.subr.bf16.mxu0 0
        %1215 = vmatpush2.bf16.msra.mxu0 0
        %1216 = vmatprep.subr.bf16.mxu0 0
        %1217 = vmatpush2.bf16.msra.mxu0 0
        %1218 = vmatprep.subr.bf16.mxu0 0
        %1219 = vmatpush2.bf16.msra.mxu0 0
        %1220 = vmatprep.mubr.bf16.mxu0 0
        %1221 = vmatmul.mubr.bf16.gmra.mxu0 %v1183
        %v1222 = vpop.f32.mrf.mxu0
        %v1223 = vadd.f32 0.0, %v1222
        %v1224 = vpop.f32.mrf.mxu0
        %v1225 = vpop.f32.mrf.mxu0
        %v1226 = vpop.f32.mrf.mxu0
        %1227 = vdwg.mxu0
        %v1228 = vadd.f32 %v1065, %v1223
        %1229 = vrot.lane.b32.xlu0 %v750, 104
        %v1230 = vpop.permute.xlu0 %1229
        %1231 = vrot.lane.b32.xlu0 %v751, 72
        %v1232 = vpop.permute.xlu0 %1231
        %v1234 = vsel %vm755, %v1230, 0
        %v1237 = vsel %vm755, %v1232, 0
        %1239 = vmatprep.subr.bf16.mxu0 0
        %1240 = vmatpush1.bf16.xpose.msra.mxu0 0
        %1241 = vmatprep.subr.bf16.mxu0 0
        %1242 = vmatpush1.bf16.xpose.msra.mxu0 0
        %1243 = vmatprep.subr.bf16.mxu0 0
        %1244 = vmatpush1.bf16.xpose.msra.mxu0 0
        %1245 = vmatprep.subr.bf16.mxu0 0
        %1246 = vmatpush1.bf16.xpose.msra.mxu0 0
        %1247 = vmatprep.subr.bf16.mxu0 0
        %1248 = vmatpush1.bf16.xpose.msra.mxu0 0
        %1249 = vmatprep.subr.bf16.mxu0 0
        %1250 = vmatpush1.bf16.xpose.msra.mxu0 0
        %1251 = vmatprep.subr.bf16.mxu0 0
        %1252 = vmatpush1.bf16.xpose.msra.mxu0 0
        %1253 = vmatprep.subr.bf16.mxu0 0
        %1254 = vmatpush1.bf16.xpose.msra.mxu0 %v1237
        %1255 = vmatprep.subr.bf16.mxu0 0
        %1256 = vmatpush2.bf16.xpose.msra.mxu0 0
        %1257 = vmatprep.subr.bf16.mxu0 0
        %1258 = vmatpush2.bf16.xpose.msra.mxu0 0
        %1259 = vmatprep.subr.bf16.mxu0 0
        %1260 = vmatpush2.bf16.xpose.msra.mxu0 0
        %1261 = vmatprep.subr.bf16.mxu0 0
        %1262 = vmatpush2.bf16.xpose.msra.mxu0 0
        %1263 = vmatprep.subr.bf16.mxu0 0
        %1264 = vmatpush2.bf16.xpose.msra.mxu0 0
        %1265 = vmatprep.subr.bf16.mxu0 0
        %1266 = vmatpush2.bf16.xpose.msra.mxu0 0
        %1267 = vmatprep.subr.bf16.mxu0 0
        %1268 = vmatpush2.bf16.xpose.msra.mxu0 0
        %1269 = vmatprep.subr.bf16.mxu0 0
        %1270 = vmatpush2.bf16.xpose.msra.mxu0 0
        %1271 = vmatprep.mubr.bf16.mxu0 0
        %1272 = vmatmul.mubr.bf16.gmra.mxu0 %v1234
        %v1273 = vpop.f32.mrf.mxu0
        %v1274 = vadd.f32 %v645, %v1273
        %v1275 = vpop.f32.mrf.mxu0
        %v1276 = vpop.f32.mrf.mxu0
        %v1277 = vpop.f32.mrf.mxu0
        %1278 = vdwg.mxu0
        %v1279 = vsel %vm755, %v1274, -inf
        %1280 = vmax.xlane.f32.xlu0 %v1279
        %v1281 = vpop.xlane.xlu0 %1280
        %v1282 = vsub.f32 %v1274, %v1281
        %v1283 = vmul.f32 %v1282, 1.442695
        %v1284 = vpow.pop %v1283
        %v1285 = vsel %vm755, %v1284, 0.0
        %1286 = vadd.xlane.f32.xlu0 %v1285
        %v1287 = vpop.xlane.xlu0 %1286
        %v1288 = vrcp.pop %v1287
        %v1289 = vmul.f32 %v1284, %v1288
        %v1290 = vpack.c.bf16 %v1289, %v1289
        %1291 = vrot.lane.b32.xlu0 %v751, 40
        %v1292 = vpop.permute.xlu0 %1291
        %v1294 = vsel %vm755, %v1290, 0
        %v1297 = vsel %vm819, %v1292, 0
        %1299 = vmatprep.subr.bf16.mxu0 0
        %1300 = vmatpush1.bf16.msra.mxu0 0
        %1301 = vmatprep.subr.bf16.mxu0 0
        %1302 = vmatpush1.bf16.msra.mxu0 0
        %1303 = vmatprep.subr.bf16.mxu0 0
        %1304 = vmatpush1.bf16.msra.mxu0 0
        %1305 = vmatprep.subr.bf16.mxu0 0
        %1306 = vmatpush1.bf16.msra.mxu0 0
        %1307 = vmatprep.subr.bf16.mxu0 0
        %1308 = vmatpush1.bf16.msra.mxu0 0
        %1309 = vmatprep.subr.bf16.mxu0 0
        %1310 = vmatpush1.bf16.msra.mxu0 0
        %1311 = vmatprep.subr.bf16.mxu0 0
        %1312 = vmatpush1.bf16.msra.mxu0 0
        %1313 = vmatprep.subr.bf16.mxu0 0
        %1314 = vmatpush1.bf16.msra.mxu0 %v1297
        %1315 = vmatprep.subr.bf16.mxu0 0
        %1316 = vmatpush2.bf16.msra.mxu0 0
        %1317 = vmatprep.subr.bf16.mxu0 0
        %1318 = vmatpush2.bf16.msra.mxu0 0
        %1319 = vmatprep.subr.bf16.mxu0 0
        %1320 = vmatpush2.bf16.msra.mxu0 0
        %1321 = vmatprep.subr.bf16.mxu0 0
        %1322 = vmatpush2.bf16.msra.mxu0 0
        %1323 = vmatprep.subr.bf16.mxu0 0
        %1324 = vmatpush2.bf16.msra.mxu0 0
        %1325 = vmatprep.subr.bf16.mxu0 0
        %1326 = vmatpush2.bf16.msra.mxu0 0
        %1327 = vmatprep.subr.bf16.mxu0 0
        %1328 = vmatpush2.bf16.msra.mxu0 0
        %1329 = vmatprep.subr.bf16.mxu0 0
        %1330 = vmatpush2.bf16.msra.mxu0 0
        %1331 = vmatprep.mubr.bf16.mxu0 0
        %1332 = vmatmul.mubr.bf16.gmra.mxu0 %v1294
        %v1333 = vpop.f32.mrf.mxu0
        %v1334 = vadd.f32 0.0, %v1333
        %v1335 = vpop.f32.mrf.mxu0
        %v1336 = vpop.f32.mrf.mxu0
        %v1337 = vpop.f32.mrf.mxu0
        %1338 = vdwg.mxu0
        %v1339 = vpack.c.bf16 %v1334, %v1334
        %v1340 = vpack.c.bf16 %v749, %v749
        %v1342 = vsel %vm755, %v1339, 0
        %v1345 = vsel %vm819, %v1340, 0
        %1347 = vmatprep.subr.bf16.mxu0 0
        %1348 = vmatpush1.bf16.msra.mxu0 0
        %1349 = vmatprep.subr.bf16.mxu0 0
        %1350 = vmatpush1.bf16.msra.mxu0 0
        %1351 = vmatprep.subr.bf16.mxu0 0
        %1352 = vmatpush1.bf16.msra.mxu0 0
        %1353 = vmatprep.subr.bf16.mxu0 0
        %1354 = vmatpush1.bf16.msra.mxu0 0
        %1355 = vmatprep.subr.bf16.mxu0 0
        %1356 = vmatpush1.bf16.msra.mxu0 0
        %1357 = vmatprep.subr.bf16.mxu0 0
        %1358 = vmatpush1.bf16.msra.mxu0 0
        %1359 = vmatprep.subr.bf16.mxu0 0
        %1360 = vmatpush1.bf16.msra.mxu0 0
        %1361 = vmatprep.subr.bf16.mxu0 0
        %1362 = vmatpush1.bf16.msra.mxu0 %v1345
        %1363 = vmatprep.subr.bf16.mxu0 0
        %1364 = vmatpush2.bf16.msra.mxu0 0
        %1365 = vmatprep.subr.bf16.mxu0 0
        %1366 = vmatpush2.bf16.msra.mxu0 0
        %1367 = vmatprep.subr.bf16.mxu0 0
        %1368 = vmatpush2.bf16.msra.mxu0 0
        %1369 = vmatprep.subr.bf16.mxu0 0
        %1370 = vmatpush2.bf16.msra.mxu0 0
        %1371 = vmatprep.subr.bf16.mxu0 0
        %1372 = vmatpush2.bf16.msra.mxu0 0
        %1373 = vmatprep.subr.bf16.mxu0 0
        %1374 = vmatpush2.bf16.msra.mxu0 0
        %1375 = vmatprep.subr.bf16.mxu0 0
        %1376 = vmatpush2.bf16.msra.mxu0 0
        %1377 = vmatprep.subr.bf16.mxu0 0
        %1378 = vmatpush2.bf16.msra.mxu0 0
        %1379 = vmatprep.mubr.bf16.mxu0 0
        %1380 = vmatmul.mubr.bf16.gmra.mxu0 %v1342
        %v1381 = vpop.f32.mrf.mxu0
        %v1382 = vadd.f32 0.0, %v1381
        %v1383 = vpop.f32.mrf.mxu0
        %v1384 = vpop.f32.mrf.mxu0
        %v1385 = vpop.f32.mrf.mxu0
        %1386 = vdwg.mxu0
        %v1387 = vadd.f32 %v1228, %v1382
        %v1388 = vld [vmem:[%s7] sm:$0x1]
        %v1390 = vlaneseq
        %v1391 = vshrl.u32 %v1390, 7
        %v1392 = vsub.s32 0, %v1391
        %v1393 = vrot.slane %v1388, %v1392
        %v1395 = vadd.f32 %v1387, %v1393
        %v1396 = vadd.f32 %v1395, %v677
        %v1397 = vld [vmem:[%s8] sm:$0x1]
        %v1398 = vld [vmem:[%s9] sm:$0x1]
        %v1399 = vsel %vm649, %v1396, 0.0
        %1400 = vadd.xlane.f32.xlu0 %v1399
        %v1401 = vpop.xlane.xlu0 %1400
        %v1402 = vmul.f32 %v1401, %v653
        %v1403 = vsub.f32 %v1396, %v1402
        %v1404 = vmul.f32 %v1403, %v1403
        %v1405 = vsel %vm649, %v1404, 0.0
        %1406 = vadd.xlane.f32.xlu0 %v1405
        %v1407 = vpop.xlane.xlu0 %1406
        %v1408 = vmul.f32 %v1407, %v653
        %v1409 = vadd.f32 %v1408, 1e-12
        %v1410 = vrsqrt.pop %v1409
        %v1411 = vmul.f32 %v1403, %v1410
        %v1413 = vlaneseq
        %v1414 = vshrl.u32 %v1413, 7
        %v1415 = vsub.s32 0, %v1414
        %v1416 = vrot.slane %v1397, %v1415
        %v1418 = vmul.f32 %v1411, %v1416
        %v1420 = vlaneseq
        %v1421 = vshrl.u32 %v1420, 7
        %v1422 = vsub.s32 0, %v1421
        %v1423 = vrot.slane %v1398, %v1422
        %v1425 = vadd.f32 %v1418, %v1423
        %v1426 = vld [vmem:[%s10] sm:$0xf]
        %v1427 = vld [vmem:[%s10 + $0x4] sm:$0xf]
        %v1428 = vld [vmem:[%s10 + $0x8] sm:$0xf]
        %v1429 = vld [vmem:[%s10 + $0xc] sm:$0xf]
        %v1430 = vpack.c.bf16 %v1425, %v1425
        %v1431 = vld [vmem:[%s11] sm:$0x1]
        %v1433 = vlaneseq
        %v1434 = vshrl.u32 %v1433, 7
        %v1435 = vsub.s32 0, %v1434
        %v1436 = vrot.slane %v1431, %v1435
        %v1442 = vunpack.c.l.b16 %v1426
        %v1443 = vunpack.c.l.b16 %v1427
        %v1444 = vunpack.c.l.b16 %v1428
        %v1445 = vunpack.c.l.b16 %v1429
        %v1446 = vpack.c.b16 %v1443, %v1442
        %v1447 = vpack.c.b16 %v1445, %v1444
        %v1451 = vsel %vm649, %v1430, 0
        %1453 = vmatprep.subr.bf16.mxu0 0
        %1454 = vmatpush1.bf16.msra.mxu0 0
        %1455 = vmatprep.subr.bf16.mxu0 0
        %1456 = vmatpush1.bf16.msra.mxu0 0
        %1457 = vmatprep.subr.bf16.mxu0 0
        %1458 = vmatpush1.bf16.msra.mxu0 0
        %1459 = vmatprep.subr.bf16.mxu0 0
        %1460 = vmatpush1.bf16.msra.mxu0 0
        %1461 = vmatprep.subr.bf16.mxu0 0
        %1462 = vmatpush1.bf16.msra.mxu0 0
        %1463 = vmatprep.subr.bf16.mxu0 0
        %1464 = vmatpush1.bf16.msra.mxu0 0
        %1465 = vmatprep.subr.bf16.mxu0 0
        %1466 = vmatpush1.bf16.msra.mxu0 %v1447
        %1467 = vmatprep.subr.bf16.mxu0 0
        %1468 = vmatpush1.bf16.msra.mxu0 %v1446
        %1469 = vmatprep.subr.bf16.mxu0 0
        %1470 = vmatpush2.bf16.msra.mxu0 0
        %1471 = vmatprep.subr.bf16.mxu0 0
        %1472 = vmatpush2.bf16.msra.mxu0 0
        %1473 = vmatprep.subr.bf16.mxu0 0
        %1474 = vmatpush2.bf16.msra.mxu0 0
        %1475 = vmatprep.subr.bf16.mxu0 0
        %1476 = vmatpush2.bf16.msra.mxu0 0
        %1477 = vmatprep.subr.bf16.mxu0 0
        %1478 = vmatpush2.bf16.msra.mxu0 0
        %1479 = vmatprep.subr.bf16.mxu0 0
        %1480 = vmatpush2.bf16.msra.mxu0 0
        %1481 = vmatprep.subr.bf16.mxu0 0
        %1482 = vmatpush2.bf16.msra.mxu0 0
        %1483 = vmatprep.subr.bf16.mxu0 0
        %1484 = vmatpush2.bf16.msra.mxu0 0
        %1485 = vmatprep.mubr.bf16.mxu0 0
        %1486 = vmatmul.mubr.bf16.gmra.mxu0 %v1451
        %v1487 = vpop.f32.mrf.mxu0
        %v1488 = vadd.f32 %v1436, %v1487
        %v1489 = vpop.f32.mrf.mxu0
        %v1490 = vpop.f32.mrf.mxu0
        %v1491 = vpop.f32.mrf.mxu0
        %1492 = vdwg.mxu0
        %v1493 = vmul.f32 %v1488, 0.5
        %v1494 = vmul.f32 %v1488, 0.044715
        %v1495 = vmul.f32 %v1494, %v1488
        %v1496 = vmul.f32 %v1495, %v1488
        %v1497 = vadd.f32 %v1488, %v1496
        %v1498 = vmul.f32 %v1497, 0.7978846
        %v1499 = vtanh.pop %v1498
        %v1500 = vadd.f32 %v1499, 1.0
        %v1501 = vmul.f32 %v1493, %v1500
        %v1502 = vld [vmem:[%s12] sm:$0xf]
        %v1503 = vld [vmem:[%s12 + $0x4] sm:$0xf]
        %v1504 = vld [vmem:[%s12 + $0x8] sm:$0xf]
        %v1505 = vld [vmem:[%s12 + $0xc] sm:$0xf]
        %v1506 = vld [vmem:[%s12 + $0x10] sm:$0xf]
        %v1507 = vld [vmem:[%s12 + $0x14] sm:$0xf]
        %v1508 = vld [vmem:[%s12 + $0x18] sm:$0xf]
        %v1509 = vld [vmem:[%s12 + $0x1c] sm:$0xf]
        %v1510 = vpack.c.bf16 %v1501, %v1501
        %v1511 = vld [vmem:[%s13] sm:$0x1]
        %v1513 = vlaneseq
        %v1514 = vshrl.u32 %v1513, 7
        %v1515 = vsub.s32 0, %v1514
        %v1516 = vrot.slane %v1511, %v1515
        %v1526 = vunpack.c.l.b16 %v1502
        %v1527 = vunpack.c.l.b16 %v1503
        %v1528 = vunpack.c.l.b16 %v1504
        %v1529 = vunpack.c.l.b16 %v1505
        %v1530 = vunpack.c.l.b16 %v1506
        %v1531 = vunpack.c.l.b16 %v1507
        %v1532 = vunpack.c.l.b16 %v1508
        %v1533 = vunpack.c.l.b16 %v1509
        %v1534 = vpack.c.b16 %v1527, %v1526
        %v1535 = vpack.c.b16 %v1529, %v1528
        %v1536 = vpack.c.b16 %v1531, %v1530
        %v1537 = vpack.c.b16 %v1533, %v1532
        %vm1542 = vcmask 523264
        %v1544 = vsel %vm1542, %v1510, 0
        %1546 = vmatprep.subr.bf16.mxu0 0
        %1547 = vmatpush1.bf16.msra.mxu0 0
        %1548 = vmatprep.subr.bf16.mxu0 0
        %1549 = vmatpush1.bf16.msra.mxu0 0
        %1550 = vmatprep.subr.bf16.mxu0 0
        %1551 = vmatpush1.bf16.msra.mxu0 0
        %1552 = vmatprep.subr.bf16.mxu0 0
        %1553 = vmatpush1.bf16.msra.mxu0 0
        %1554 = vmatprep.subr.bf16.mxu0 0
        %1555 = vmatpush1.bf16.msra.mxu0 %v1537
        %1556 = vmatprep.subr.bf16.mxu0 0
        %1557 = vmatpush1.bf16.msra.mxu0 %v1536
        %1558 = vmatprep.subr.bf16.mxu0 0
        %1559 = vmatpush1.bf16.msra.mxu0 %v1535
        %1560 = vmatprep.subr.bf16.mxu0 0
        %1561 = vmatpush1.bf16.msra.mxu0 %v1534
        %1562 = vmatprep.subr.bf16.mxu0 0
        %1563 = vmatpush2.bf16.msra.mxu0 0
        %1564 = vmatprep.subr.bf16.mxu0 0
        %1565 = vmatpush2.bf16.msra.mxu0 0
        %1566 = vmatprep.subr.bf16.mxu0 0
        %1567 = vmatpush2.bf16.msra.mxu0 0
        %1568 = vmatprep.subr.bf16.mxu0 0
        %1569 = vmatpush2.bf16.msra.mxu0 0
        %1570 = vmatprep.subr.bf16.mxu0 0
        %1571 = vmatpush2.bf16.msra.mxu0 0
        %1572 = vmatprep.subr.bf16.mxu0 0
        %1573 = vmatpush2.bf16.msra.mxu0 0
        %1574 = vmatprep.subr.bf16.mxu0 0
        %1575 = vmatpush2.bf16.msra.mxu0 0
        %1576 = vmatprep.subr.bf16.mxu0 0
        %1577 = vmatpush2.bf16.msra.mxu0 0
        %1578 = vmatprep.mubr.bf16.mxu0 0
        %1579 = vmatmul.mubr.bf16.gmra.mxu0 %v1544
        %v1580 = vpop.f32.mrf.mxu0
        %v1581 = vadd.f32 %v1516, %v1580
        %v1582 = vpop.f32.mrf.mxu0
        %v1583 = vpop.f32.mrf.mxu0
        %v1584 = vpop.f32.mrf.mxu0
        %1585 = vdwg.mxu0
        %v1586 = vadd.f32 %v1581, %v1425
        %v1587 = vld [vmem:[%s14] sm:$0x1]
        %v1588 = vld [vmem:[%s15] sm:$0x1]
        %v1589 = vsel %vm649, %v1586, 0.0
        %1590 = vadd.xlane.f32.xlu0 %v1589
        %v1591 = vpop.xlane.xlu0 %1590
        %v1592 = vmul.f32 %v1591, %v653
        %v1593 = vsub.f32 %v1586, %v1592
        %v1594 = vmul.f32 %v1593, %v1593
        %v1595 = vsel %vm649, %v1594, 0.0
        %1596 = vadd.xlane.f32.xlu0 %v1595
        %v1597 = vpop.xlane.xlu0 %1596
        %v1598 = vmul.f32 %v1597, %v653
        %v1599 = vadd.f32 %v1598, 1e-12
        %v1600 = vrsqrt.pop %v1599
        %v1601 = vmul.f32 %v1593, %v1600
        %v1603 = vlaneseq
        %v1604 = vshrl.u32 %v1603, 7
        %v1605 = vsub.s32 0, %v1604
        %v1606 = vrot.slane %v1587, %v1605
        %v1608 = vmul.f32 %v1601, %v1606
        %v1610 = vlaneseq
        %v1611 = vshrl.u32 %v1610, 7
        %v1612 = vsub.s32 0, %v1611
        %v1613 = vrot.slane %v1588, %v1612
        %v1615 = vadd.f32 %v1608, %v1613
        %s1616 = scalar_lea.vmem %s4, 16
        %v1617 = vld [vmem:[%s1616] sm:$0xf]
        %v1618 = vld [vmem:[%s1616 + $0x4] sm:$0xf]
        %v1619 = vld [vmem:[%s1616 + $0x8] sm:$0xf]
        %v1620 = vld [vmem:[%s1616 + $0xc] sm:$0xf]
        %v1621 = vpack.c.bf16 %v1615, %v1615
        %s1622 = scalar_lea.vmem %s5, 1
        %v1623 = vld [vmem:[%s1622] sm:$0x1]
        %v1625 = vlaneseq
        %v1626 = vshrl.u32 %v1625, 7
        %v1627 = vsub.s32 0, %v1626
        %v1628 = vrot.slane %v1623, %v1627
        %v1634 = vunpack.c.l.b16 %v1617
        %v1635 = vunpack.c.l.b16 %v1618
        %v1636 = vunpack.c.l.b16 %v1619
        %v1637 = vunpack.c.l.b16 %v1620
        %v1638 = vpack.c.b16 %v1635, %v1634
        %v1639 = vpack.c.b16 %v1637, %v1636
        %v1643 = vsel %vm649, %v1621, 0
        %1645 = vmatprep.subr.bf16.mxu0 0
        %1646 = vmatpush1.bf16.msra.mxu0 0
        %1647 = vmatprep.subr.bf16.mxu0 0
        %1648 = vmatpush1.bf16.msra.mxu0 0
        %1649 = vmatprep.subr.bf16.mxu0 0
        %1650 = vmatpush1.bf16.msra.mxu0 0
        %1651 = vmatprep.subr.bf16.mxu0 0
        %1652 = vmatpush1.bf16.msra.mxu0 0
        %1653 = vmatprep.subr.bf16.mxu0 0
        %1654 = vmatpush1.bf16.msra.mxu0 0
        %1655 = vmatprep.subr.bf16.mxu0 0
        %1656 = vmatpush1.bf16.msra.mxu0 0
        %1657 = vmatprep.subr.bf16.mxu0 0
        %1658 = vmatpush1.bf16.msra.mxu0 %v1639
        %1659 = vmatprep.subr.bf16.mxu0 0
        %1660 = vmatpush1.bf16.msra.mxu0 %v1638
        %1661 = vmatprep.subr.bf16.mxu0 0
        %1662 = vmatpush2.bf16.msra.mxu0 0
        %1663 = vmatprep.subr.bf16.mxu0 0
        %1664 = vmatpush2.bf16.msra.mxu0 0
        %1665 = vmatprep.subr.bf16.mxu0 0
        %1666 = vmatpush2.bf16.msra.mxu0 0
        %1667 = vmatprep.subr.bf16.mxu0 0
        %1668 = vmatpush2.bf16.msra.mxu0 0
        %1669 = vmatprep.subr.bf16.mxu0 0
        %1670 = vmatpush2.bf16.msra.mxu0 0
        %1671 = vmatprep.subr.bf16.mxu0 0
        %1672 = vmatpush2.bf16.msra.mxu0 0
        %1673 = vmatprep.subr.bf16.mxu0 0
        %1674 = vmatpush2.bf16.msra.mxu0 0
        %1675 = vmatprep.subr.bf16.mxu0 0
        %1676 = vmatpush2.bf16.msra.mxu0 0
        %1677 = vmatprep.mubr.bf16.mxu0 0
        %1678 = vmatmul.mubr.bf16.gmra.mxu0 %v1643
        %v1679 = vpop.f32.mrf.mxu0
        %v1680 = vadd.f32 %v1628, %v1679
        %v1681 = vpop.f32.mrf.mxu0
        %v1682 = vpop.f32.mrf.mxu0
        %v1683 = vpop.f32.mrf.mxu0
        %1684 = vdwg.mxu0
        %v1685 = vmul.f32 %v1680, 0.35355338
        %s1686 = scalar_lea.vmem %s6, 32
        %v1687 = vld [vmem:[%s1686] sm:$0xff]
        %v1688 = vld [vmem:[%s1686 + $0x8] sm:$0xff]
        %v1689 = vld [vmem:[%s1686 + $0x10] sm:$0xff]
        %v1690 = vld [vmem:[%s1686 + $0x18] sm:$0xff]
        %v1691 = vpack.c.bf16 %v1685, %v1685
        %v1692 = vpack.c.bf16 %v1680, %v1680
        %1694 = vrot.lane.b32.xlu0 %v1692, 96
        %v1695 = vpop.permute.xlu0 %1694
        %v1697 = vsel %vm755, %v1691, 0
        %v1700 = vsel %vm755, %v1695, 0
        %1702 = vmatprep.subr.bf16.mxu0 0
        %1703 = vmatpush1.bf16.xpose.msra.mxu0 0
        %1704 = vmatprep.subr.bf16.mxu0 0
        %1705 = vmatpush1.bf16.xpose.msra.mxu0 0
        %1706 = vmatprep.subr.bf16.mxu0 0
        %1707 = vmatpush1.bf16.xpose.msra.mxu0 0
        %1708 = vmatprep.subr.bf16.mxu0 0
        %1709 = vmatpush1.bf16.xpose.msra.mxu0 0
        %1710 = vmatprep.subr.bf16.mxu0 0
        %1711 = vmatpush1.bf16.xpose.msra.mxu0 0
        %1712 = vmatprep.subr.bf16.mxu0 0
        %1713 = vmatpush1.bf16.xpose.msra.mxu0 0
        %1714 = vmatprep.subr.bf16.mxu0 0
        %1715 = vmatpush1.bf16.xpose.msra.mxu0 0
        %1716 = vmatprep.subr.bf16.mxu0 0
        %1717 = vmatpush1.bf16.xpose.msra.mxu0 %v1700
        %1718 = vmatprep.subr.bf16.mxu0 0
        %1719 = vmatpush2.bf16.xpose.msra.mxu0 0
        %1720 = vmatprep.subr.bf16.mxu0 0
        %1721 = vmatpush2.bf16.xpose.msra.mxu0 0
        %1722 = vmatprep.subr.bf16.mxu0 0
        %1723 = vmatpush2.bf16.xpose.msra.mxu0 0
        %1724 = vmatprep.subr.bf16.mxu0 0
        %1725 = vmatpush2.bf16.xpose.msra.mxu0 0
        %1726 = vmatprep.subr.bf16.mxu0 0
        %1727 = vmatpush2.bf16.xpose.msra.mxu0 0
        %1728 = vmatprep.subr.bf16.mxu0 0
        %1729 = vmatpush2.bf16.xpose.msra.mxu0 0
        %1730 = vmatprep.subr.bf16.mxu0 0
        %1731 = vmatpush2.bf16.xpose.msra.mxu0 0
        %1732 = vmatprep.subr.bf16.mxu0 0
        %1733 = vmatpush2.bf16.xpose.msra.mxu0 0
        %1734 = vmatprep.mubr.bf16.mxu0 0
        %1735 = vmatmul.mubr.bf16.gmra.mxu0 %v1697
        %v1736 = vpop.f32.mrf.mxu0
        %v1737 = vadd.f32 %v645, %v1736
        %v1738 = vpop.f32.mrf.mxu0
        %v1739 = vpop.f32.mrf.mxu0
        %v1740 = vpop.f32.mrf.mxu0
        %1741 = vdwg.mxu0
        %v1742 = vsel %vm755, %v1737, -inf
        %1743 = vmax.xlane.f32.xlu0 %v1742
        %v1744 = vpop.xlane.xlu0 %1743
        %v1745 = vsub.f32 %v1737, %v1744
        %v1746 = vmul.f32 %v1745, 1.442695
        %v1747 = vpow.pop %v1746
        %v1748 = vsel %vm755, %v1747, 0.0
        %1749 = vadd.xlane.f32.xlu0 %v1748
        %v1750 = vpop.xlane.xlu0 %1749
        %v1751 = vrcp.pop %v1750
        %v1752 = vmul.f32 %v1747, %v1751
        %v1753 = vpack.c.bf16 %v1752, %v1752
        %1754 = vrot.lane.b32.xlu0 %v1692, 64
        %v1755 = vpop.permute.xlu0 %1754
        %v1757 = vsel %vm755, %v1753, 0
        %v1760 = vsel %vm819, %v1755, 0
        %1762 = vmatprep.subr.bf16.mxu0 0
        %1763 = vmatpush1.bf16.msra.mxu0 0
        %1764 = vmatprep.subr.bf16.mxu0 0
        %1765 = vmatpush1.bf16.msra.mxu0 0
        %1766 = vmatprep.subr.bf16.mxu0 0
        %1767 = vmatpush1.bf16.msra.mxu0 0
        %1768 = vmatprep.subr.bf16.mxu0 0
        %1769 = vmatpush1.bf16.msra.mxu0 0
        %1770 = vmatprep.subr.bf16.mxu0 0
        %1771 = vmatpush1.bf16.msra.mxu0 0
        %1772 = vmatprep.subr.bf16.mxu0 0
        %1773 = vmatpush1.bf16.msra.mxu0 0
        %1774 = vmatprep.subr.bf16.mxu0 0
        %1775 = vmatpush1.bf16.msra.mxu0 0
        %1776 = vmatprep.subr.bf16.mxu0 0
        %1777 = vmatpush1.bf16.msra.mxu0 %v1760
        %1778 = vmatprep.subr.bf16.mxu0 0
        %1779 = vmatpush2.bf16.msra.mxu0 0
        %1780 = vmatprep.subr.bf16.mxu0 0
        %1781 = vmatpush2.bf16.msra.mxu0 0
        %1782 = vmatprep.subr.bf16.mxu0 0
        %1783 = vmatpush2.bf16.msra.mxu0 0
        %1784 = vmatprep.subr.bf16.mxu0 0
        %1785 = vmatpush2.bf16.msra.mxu0 0
        %1786 = vmatprep.subr.bf16.mxu0 0
        %1787 = vmatpush2.bf16.msra.mxu0 0
        %1788 = vmatprep.subr.bf16.mxu0 0
        %1789 = vmatpush2.bf16.msra.mxu0 0
        %1790 = vmatprep.subr.bf16.mxu0 0
        %1791 = vmatpush2.bf16.msra.mxu0 0
        %1792 = vmatprep.subr.bf16.mxu0 0
        %1793 = vmatpush2.bf16.msra.mxu0 0
        %1794 = vmatprep.mubr.bf16.mxu0 0
        %1795 = vmatmul.mubr.bf16.gmra.mxu0 %v1757
        %v1796 = vpop.f32.mrf.mxu0
        %v1797 = vadd.f32 0.0, %v1796
        %v1798 = vpop.f32.mrf.mxu0
        %v1799 = vpop.f32.mrf.mxu0
        %v1800 = vpop.f32.mrf.mxu0
        %1801 = vdwg.mxu0
        %v1802 = vpack.c.bf16 %v1797, %v1797
        %v1803 = vpack.c.bf16 %v1687, %v1687
        %1805 = vrot.lane.b32.xlu0 %v1691, 120
        %v1806 = vpop.permute.xlu0 %1805
        %1807 = vrot.lane.b32.xlu0 %v1692, 88
        %v1808 = vpop.permute.xlu0 %1807
        %v1810 = vsel %vm755, %v1806, 0
        %v1813 = vsel %vm755, %v1808, 0
        %1815 = vmatprep.subr.bf16.mxu0 0
        %1816 = vmatpush1.bf16.xpose.msra.mxu0 0
        %1817 = vmatprep.subr.bf16.mxu0 0
        %1818 = vmatpush1.bf16.xpose.msra.mxu0 0
        %1819 = vmatprep.subr.bf16.mxu0 0
        %1820 = vmatpush1.bf16.xpose.msra.mxu0 0
        %1821 = vmatprep.subr.bf16.mxu0 0
        %1822 = vmatpush1.bf16.xpose.msra.mxu0 0
        %1823 = vmatprep.subr.bf16.mxu0 0
        %1824 = vmatpush1.bf16.xpose.msra.mxu0 0
        %1825 = vmatprep.subr.bf16.mxu0 0
        %1826 = vmatpush1.bf16.xpose.msra.mxu0 0
        %1827 = vmatprep.subr.bf16.mxu0 0
        %1828 = vmatpush1.bf16.xpose.msra.mxu0 0
        %1829 = vmatprep.subr.bf16.mxu0 0
        %1830 = vmatpush1.bf16.xpose.msra.mxu0 %v1813
        %1831 = vmatprep.subr.bf16.mxu0 0
        %1832 = vmatpush2.bf16.xpose.msra.mxu0 0
        %1833 = vmatprep.subr.bf16.mxu0 0
        %1834 = vmatpush2.bf16.xpose.msra.mxu0 0
        %1835 = vmatprep.subr.bf16.mxu0 0
        %1836 = vmatpush2.bf16.xpose.msra.mxu0 0
        %1837 = vmatprep.subr.bf16.mxu0 0
        %1838 = vmatpush2.bf16.xpose.msra.mxu0 0
        %1839 = vmatprep.subr.bf16.mxu0 0
        %1840 = vmatpush2.bf16.xpose.msra.mxu0 0
        %1841 = vmatprep.subr.bf16.mxu0 0
        %1842 = vmatpush2.bf16.xpose.msra.mxu0 0
        %1843 = vmatprep.subr.bf16.mxu0 0
        %1844 = vmatpush2.bf16.xpose.msra.mxu0 0
        %1845 = vmatprep.subr.bf16.mxu0 0
        %1846 = vmatpush2.bf16.xpose.msra.mxu0 0
        %1847 = vmatprep.mubr.bf16.mxu0 0
        %1848 = vmatmul.mubr.bf16.gmra.mxu0 %v1810
        %v1849 = vpop.f32.mrf.mxu0
        %v1850 = vadd.f32 %v645, %v1849
        %v1851 = vpop.f32.mrf.mxu0
        %v1852 = vpop.f32.mrf.mxu0
        %v1853 = vpop.f32.mrf.mxu0
        %1854 = vdwg.mxu0
        %v1855 = vsel %vm755, %v1850, -inf
        %1856 = vmax.xlane.f32.xlu0 %v1855
        %v1857 = vpop.xlane.xlu0 %1856
        %v1858 = vsub.f32 %v1850, %v1857
        %v1859 = vmul.f32 %v1858, 1.442695
        %v1860 = vpow.pop %v1859
        %v1861 = vsel %vm755, %v1860, 0.0
        %1862 = vadd.xlane.f32.xlu0 %v1861
        %v1863 = vpop.xlane.xlu0 %1862
        %v1864 = vrcp.pop %v1863
        %v1865 = vmul.f32 %v1860, %v1864
        %v1866 = vpack.c.bf16 %v1865, %v1865
        %1867 = vrot.lane.b32.xlu0 %v1692, 56
        %v1868 = vpop.permute.xlu0 %1867
        %v1870 = vsel %vm755, %v1866, 0
        %v1873 = vsel %vm819, %v1868, 0
        %1875 = vmatprep.subr.bf16.mxu0 0
        %1876 = vmatpush1.bf16.msra.mxu0 0
        %1877 = vmatprep.subr.bf16.mxu0 0
        %1878 = vmatpush1.bf16.msra.mxu0 0
        %1879 = vmatprep.subr.bf16.mxu0 0
        %1880 = vmatpush1.bf16.msra.mxu0 0
        %1881 = vmatprep.subr.bf16.mxu0 0
        %1882 = vmatpush1.bf16.msra.mxu0 0
        %1883 = vmatprep.subr.bf16.mxu0 0
        %1884 = vmatpush1.bf16.msra.mxu0 0
        %1885 = vmatprep.subr.bf16.mxu0 0
        %1886 = vmatpush1.bf16.msra.mxu0 0
        %1887 = vmatprep.subr.bf16.mxu0 0
        %1888 = vmatpush1.bf16.msra.mxu0 0
        %1889 = vmatprep.subr.bf16.mxu0 0
        %1890 = vmatpush1.bf16.msra.mxu0 %v1873
        %1891 = vmatprep.subr.bf16.mxu0 0
        %1892 = vmatpush2.bf16.msra.mxu0 0
        %1893 = vmatprep.subr.bf16.mxu0 0
        %1894 = vmatpush2.bf16.msra.mxu0 0
        %1895 = vmatprep.subr.bf16.mxu0 0
        %1896 = vmatpush2.bf16.msra.mxu0 0
        %1897 = vmatprep.subr.bf16.mxu0 0
        %1898 = vmatpush2.bf16.msra.mxu0 0
        %1899 = vmatprep.subr.bf16.mxu0 0
        %1900 = vmatpush2.bf16.msra.mxu0 0
        %1901 = vmatprep.subr.bf16.mxu0 0
        %1902 = vmatpush2.bf16.msra.mxu0 0
        %1903 = vmatprep.subr.bf16.mxu0 0
        %1904 = vmatpush2.bf16.msra.mxu0 0
        %1905 = vmatprep.subr.bf16.mxu0 0
        %1906 = vmatpush2.bf16.msra.mxu0 0
        %1907 = vmatprep.mubr.bf16.mxu0 0
        %1908 = vmatmul.mubr.bf16.gmra.mxu0 %v1870
        %v1909 = vpop.f32.mrf.mxu0
        %v1910 = vadd.f32 0.0, %v1909
        %v1911 = vpop.f32.mrf.mxu0
        %v1912 = vpop.f32.mrf.mxu0
        %v1913 = vpop.f32.mrf.mxu0
        %1914 = vdwg.mxu0
        %v1915 = vpack.c.bf16 %v1910, %v1910
        %v1916 = vpack.c.bf16 %v1688, %v1688
        %v1918 = vsel %vm755, %v1915, 0
        %v1921 = vsel %vm819, %v1916, 0
        %1923 = vmatprep.subr.bf16.mxu0 0
        %1924 = vmatpush1.bf16.msra.mxu0 0
        %1925 = vmatprep.subr.bf16.mxu0 0
        %1926 = vmatpush1.bf16.msra.mxu0 0
        %1927 = vmatprep.subr.bf16.mxu0 0
        %1928 = vmatpush1.bf16.msra.mxu0 0
        %1929 = vmatprep.subr.bf16.mxu0 0
        %1930 = vmatpush1.bf16.msra.mxu0 0
        %1931 = vmatprep.subr.bf16.mxu0 0
        %1932 = vmatpush1.bf16.msra.mxu0 0
        %1933 = vmatprep.subr.bf16.mxu0 0
        %1934 = vmatpush1.bf16.msra.mxu0 0
        %1935 = vmatprep.subr.bf16.mxu0 0
        %1936 = vmatpush1.bf16.msra.mxu0 0
        %1937 = vmatprep.subr.bf16.mxu0 0
        %1938 = vmatpush1.bf16.msra.mxu0 %v1921
        %1939 = vmatprep.subr.bf16.mxu0 0
        %1940 = vmatpush2.bf16.msra.mxu0 0
        %1941 = vmatprep.subr.bf16.mxu0 0
        %1942 = vmatpush2.bf16.msra.mxu0 0
        %1943 = vmatprep.subr.bf16.mxu0 0
        %1944 = vmatpush2.bf16.msra.mxu0 0
        %1945 = vmatprep.subr.bf16.mxu0 0
        %1946 = vmatpush2.bf16.msra.mxu0 0
        %1947 = vmatprep.subr.bf16.mxu0 0
        %1948 = vmatpush2.bf16.msra.mxu0 0
        %1949 = vmatprep.subr.bf16.mxu0 0
        %1950 = vmatpush2.bf16.msra.mxu0 0
        %1951 = vmatprep.subr.bf16.mxu0 0
        %1952 = vmatpush2.bf16.msra.mxu0 0
        %1953 = vmatprep.subr.bf16.mxu0 0
        %1954 = vmatpush2.bf16.msra.mxu0 0
        %1955 = vmatprep.mubr.bf16.mxu0 0
        %1956 = vmatmul.mubr.bf16.gmra.mxu0 %v1918
        %v1957 = vpop.f32.mrf.mxu0
        %v1958 = vadd.f32 0.0, %v1957
        %v1959 = vpop.f32.mrf.mxu0
        %v1960 = vpop.f32.mrf.mxu0
        %v1961 = vpop.f32.mrf.mxu0
        %1962 = vdwg.mxu0
        %v1964 = vsel %vm755, %v1802, 0
        %v1967 = vsel %vm819, %v1803, 0
        %1969 = vmatprep.subr.bf16.mxu0 0
        %1970 = vmatpush1.bf16.msra.mxu0 0
        %1971 = vmatprep.subr.bf16.mxu0 0
        %1972 = vmatpush1.bf16.msra.mxu0 0
        %1973 = vmatprep.subr.bf16.mxu0 0
        %1974 = vmatpush1.bf16.msra.mxu0 0
        %1975 = vmatprep.subr.bf16.mxu0 0
        %1976 = vmatpush1.bf16.msra.mxu0 0
        %1977 = vmatprep.subr.bf16.mxu0 0
        %1978 = vmatpush1.bf16.msra.mxu0 0
        %1979 = vmatprep.subr.bf16.mxu0 0
        %1980 = vmatpush1.bf16.msra.mxu0 0
        %1981 = vmatprep.subr.bf16.mxu0 0
        %1982 = vmatpush1.bf16.msra.mxu0 0
        %1983 = vmatprep.subr.bf16.mxu0 0
        %1984 = vmatpush1.bf16.msra.mxu0 %v1967
        %1985 = vmatprep.subr.bf16.mxu0 0
        %1986 = vmatpush2.bf16.msra.mxu0 0
        %1987 = vmatprep.subr.bf16.mxu0 0
        %1988 = vmatpush2.bf16.msra.mxu0 0
        %1989 = vmatprep.subr.bf16.mxu0 0
        %1990 = vmatpush2.bf16.msra.mxu0 0
        %1991 = vmatprep.subr.bf16.mxu0 0
        %1992 = vmatpush2.bf16.msra.mxu0 0
        %1993 = vmatprep.subr.bf16.mxu0 0
        %1994 = vmatpush2.bf16.msra.mxu0 0
        %1995 = vmatprep.subr.bf16.mxu0 0
        %1996 = vmatpush2.bf16.msra.mxu0 0
        %1997 = vmatprep.subr.bf16.mxu0 0
        %1998 = vmatpush2.bf16.msra.mxu0 0
        %1999 = vmatprep.subr.bf16.mxu0 0
        %2000 = vmatpush2.bf16.msra.mxu0 0
        %2001 = vmatprep.mubr.bf16.mxu0 0
        %2002 = vmatmul.mubr.bf16.gmra.mxu0 %v1964
        %v2003 = vpop.f32.mrf.mxu0
        %v2004 = vadd.f32 %v1958, %v2003
        %v2005 = vpop.f32.mrf.mxu0
        %v2006 = vpop.f32.mrf.mxu0
        %v2007 = vpop.f32.mrf.mxu0
        %2008 = vdwg.mxu0
        %2009 = vrot.lane.b32.xlu0 %v1691, 112
        %v2010 = vpop.permute.xlu0 %2009
        %2011 = vrot.lane.b32.xlu0 %v1692, 80
        %v2012 = vpop.permute.xlu0 %2011
        %v2014 = vsel %vm755, %v2010, 0
        %v2017 = vsel %vm755, %v2012, 0
        %2019 = vmatprep.subr.bf16.mxu0 0
        %2020 = vmatpush1.bf16.xpose.msra.mxu0 0
        %2021 = vmatprep.subr.bf16.mxu0 0
        %2022 = vmatpush1.bf16.xpose.msra.mxu0 0
        %2023 = vmatprep.subr.bf16.mxu0 0
        %2024 = vmatpush1.bf16.xpose.msra.mxu0 0
        %2025 = vmatprep.subr.bf16.mxu0 0
        %2026 = vmatpush1.bf16.xpose.msra.mxu0 0
        %2027 = vmatprep.subr.bf16.mxu0 0
        %2028 = vmatpush1.bf16.xpose.msra.mxu0 0
        %2029 = vmatprep.subr.bf16.mxu0 0
        %2030 = vmatpush1.bf16.xpose.msra.mxu0 0
        %2031 = vmatprep.subr.bf16.mxu0 0
        %2032 = vmatpush1.bf16.xpose.msra.mxu0 0
        %2033 = vmatprep.subr.bf16.mxu0 0
        %2034 = vmatpush1.bf16.xpose.msra.mxu0 %v2017
        %2035 = vmatprep.subr.bf16.mxu0 0
        %2036 = vmatpush2.bf16.xpose.msra.mxu0 0
        %2037 = vmatprep.subr.bf16.mxu0 0
        %2038 = vmatpush2.bf16.xpose.msra.mxu0 0
        %2039 = vmatprep.subr.bf16.mxu0 0
        %2040 = vmatpush2.bf16.xpose.msra.mxu0 0
        %2041 = vmatprep.subr.bf16.mxu0 0
        %2042 = vmatpush2.bf16.xpose.msra.mxu0 0
        %2043 = vmatprep.subr.bf16.mxu0 0
        %2044 = vmatpush2.bf16.xpose.msra.mxu0 0
        %2045 = vmatprep.subr.bf16.mxu0 0
        %2046 = vmatpush2.bf16.xpose.msra.mxu0 0
        %2047 = vmatprep.subr.bf16.mxu0 0
        %2048 = vmatpush2.bf16.xpose.msra.mxu0 0
        %2049 = vmatprep.subr.bf16.mxu0 0
        %2050 = vmatpush2.bf16.xpose.msra.mxu0 0
        %2051 = vmatprep.mubr.bf16.mxu0 0
        %2052 = vmatmul.mubr.bf16.gmra.mxu0 %v2014
        %v2053 = vpop.f32.mrf.mxu0
        %v2054 = vadd.f32 %v645, %v2053
        %v2055 = vpop.f32.mrf.mxu0
        %v2056 = vpop.f32.mrf.mxu0
        %v2057 = vpop.f32.mrf.mxu0
        %2058 = vdwg.mxu0
        %v2059 = vsel %vm755, %v2054, -inf
        %2060 = vmax.xlane.f32.xlu0 %v2059
        %v2061 = vpop.xlane.xlu0 %2060
        %v2062 = vsub.f32 %v2054, %v2061
        %v2063 = vmul.f32 %v2062, 1.442695
        %v2064 = vpow.pop %v2063
        %v2065 = vsel %vm755, %v2064, 0.0
        %2066 = vadd.xlane.f32.xlu0 %v2065
        %v2067 = vpop.xlane.xlu0 %2066
        %v2068 = vrcp.pop %v2067
        %v2069 = vmul.f32 %v2064, %v2068
        %v2070 = vpack.c.bf16 %v2069, %v2069
        %2071 = vrot.lane.b32.xlu0 %v1692, 48
        %v2072 = vpop.permute.xlu0 %2071
        %v2074 = vsel %vm755, %v2070, 0
        %v2077 = vsel %vm819, %v2072, 0
        %2079 = vmatprep.subr.bf16.mxu0 0
        %2080 = vmatpush1.bf16.msra.mxu0 0
        %2081 = vmatprep.subr.bf16.mxu0 0
        %2082 = vmatpush1.bf16.msra.mxu0 0
        %2083 = vmatprep.subr.bf16.mxu0 0
        %2084 = vmatpush1.bf16.msra.mxu0 0
        %2085 = vmatprep.subr.bf16.mxu0 0
        %2086 = vmatpush1.bf16.msra.mxu0 0
        %2087 = vmatprep.subr.bf16.mxu0 0
        %2088 = vmatpush1.bf16.msra.mxu0 0
        %2089 = vmatprep.subr.bf16.mxu0 0
        %2090 = vmatpush1.bf16.msra.mxu0 0
        %2091 = vmatprep.subr.bf16.mxu0 0
        %2092 = vmatpush1.bf16.msra.mxu0 0
        %2093 = vmatprep.subr.bf16.mxu0 0
        %2094 = vmatpush1.bf16.msra.mxu0 %v2077
        %2095 = vmatprep.subr.bf16.mxu0 0
        %2096 = vmatpush2.bf16.msra.mxu0 0
        %2097 = vmatprep.subr.bf16.mxu0 0
        %2098 = vmatpush2.bf16.msra.mxu0 0
        %2099 = vmatprep.subr.bf16.mxu0 0
        %2100 = vmatpush2.bf16.msra.mxu0 0
        %2101 = vmatprep.subr.bf16.mxu0 0
        %2102 = vmatpush2.bf16.msra.mxu0 0
        %2103 = vmatprep.subr.bf16.mxu0 0
        %2104 = vmatpush2.bf16.msra.mxu0 0
        %2105 = vmatprep.subr.bf16.mxu0 0
        %2106 = vmatpush2.bf16.msra.mxu0 0
        %2107 = vmatprep.subr.bf16.mxu0 0
        %2108 = vmatpush2.bf16.msra.mxu0 0
        %2109 = vmatprep.subr.bf16.mxu0 0
        %2110 = vmatpush2.bf16.msra.mxu0 0
        %2111 = vmatprep.mubr.bf16.mxu0 0
        %2112 = vmatmul.mubr.bf16.gmra.mxu0 %v2074
        %v2113 = vpop.f32.mrf.mxu0
        %v2114 = vadd.f32 0.0, %v2113
        %v2115 = vpop.f32.mrf.mxu0
        %v2116 = vpop.f32.mrf.mxu0
        %v2117 = vpop.f32.mrf.mxu0
        %2118 = vdwg.mxu0
        %v2119 = vpack.c.bf16 %v2114, %v2114
        %v2120 = vpack.c.bf16 %v1689, %v1689
        %v2122 = vsel %vm755, %v2119, 0
        %v2125 = vsel %vm819, %v2120, 0
        %2127 = vmatprep.subr.bf16.mxu0 0
        %2128 = vmatpush1.bf16.msra.mxu0 0
        %2129 = vmatprep.subr.bf16.mxu0 0
        %2130 = vmatpush1.bf16.msra.mxu0 0
        %2131 = vmatprep.subr.bf16.mxu0 0
        %2132 = vmatpush1.bf16.msra.mxu0 0
        %2133 = vmatprep.subr.bf16.mxu0 0
        %2134 = vmatpush1.bf16.msra.mxu0 0
        %2135 = vmatprep.subr.bf16.mxu0 0
        %2136 = vmatpush1.bf16.msra.mxu0 0
        %2137 = vmatprep.subr.bf16.mxu0 0
        %2138 = vmatpush1.bf16.msra.mxu0 0
        %2139 = vmatprep.subr.bf16.mxu0 0
        %2140 = vmatpush1.bf16.msra.mxu0 0
        %2141 = vmatprep.subr.bf16.mxu0 0
        %2142 = vmatpush1.bf16.msra.mxu0 %v2125
        %2143 = vmatprep.subr.bf16.mxu0 0
        %2144 = vmatpush2.bf16.msra.mxu0 0
        %2145 = vmatprep.subr.bf16.mxu0 0
        %2146 = vmatpush2.bf16.msra.mxu0 0
        %2147 = vmatprep.subr.bf16.mxu0 0
        %2148 = vmatpush2.bf16.msra.mxu0 0
        %2149 = vmatprep.subr.bf16.mxu0 0
        %2150 = vmatpush2.bf16.msra.mxu0 0
        %2151 = vmatprep.subr.bf16.mxu0 0
        %2152 = vmatpush2.bf16.msra.mxu0 0
        %2153 = vmatprep.subr.bf16.mxu0 0
        %2154 = vmatpush2.bf16.msra.mxu0 0
        %2155 = vmatprep.subr.bf16.mxu0 0
        %2156 = vmatpush2.bf16.msra.mxu0 0
        %2157 = vmatprep.subr.bf16.mxu0 0
        %2158 = vmatpush2.bf16.msra.mxu0 0
        %2159 = vmatprep.mubr.bf16.mxu0 0
        %2160 = vmatmul.mubr.bf16.gmra.mxu0 %v2122
        %v2161 = vpop.f32.mrf.mxu0
        %v2162 = vadd.f32 0.0, %v2161
        %v2163 = vpop.f32.mrf.mxu0
        %v2164 = vpop.f32.mrf.mxu0
        %v2165 = vpop.f32.mrf.mxu0
        %2166 = vdwg.mxu0
        %v2167 = vadd.f32 %v2004, %v2162
        %2168 = vrot.lane.b32.xlu0 %v1691, 104
        %v2169 = vpop.permute.xlu0 %2168
        %2170 = vrot.lane.b32.xlu0 %v1692, 72
        %v2171 = vpop.permute.xlu0 %2170
        %v2173 = vsel %vm755, %v2169, 0
        %v2176 = vsel %vm755, %v2171, 0
        %2178 = vmatprep.subr.bf16.mxu0 0
        %2179 = vmatpush1.bf16.xpose.msra.mxu0 0
        %2180 = vmatprep.subr.bf16.mxu0 0
        %2181 = vmatpush1.bf16.xpose.msra.mxu0 0
        %2182 = vmatprep.subr.bf16.mxu0 0
        %2183 = vmatpush1.bf16.xpose.msra.mxu0 0
        %2184 = vmatprep.subr.bf16.mxu0 0
        %2185 = vmatpush1.bf16.xpose.msra.mxu0 0
        %2186 = vmatprep.subr.bf16.mxu0 0
        %2187 = vmatpush1.bf16.xpose.msra.mxu0 0
        %2188 = vmatprep.subr.bf16.mxu0 0
        %2189 = vmatpush1.bf16.xpose.msra.mxu0 0
        %2190 = vmatprep.subr.bf16.mxu0 0
        %2191 = vmatpush1.bf16.xpose.msra.mxu0 0
        %2192 = vmatprep.subr.bf16.mxu0 0
        %2193 = vmatpush1.bf16.xpose.msra.mxu0 %v2176
        %2194 = vmatprep.subr.bf16.mxu0 0
        %2195 = vmatpush2.bf16.xpose.msra.mxu0 0
        %2196 = vmatprep.subr.bf16.mxu0 0
        %2197 = vmatpush2.bf16.xpose.msra.mxu0 0
        %2198 = vmatprep.subr.bf16.mxu0 0
        %2199 = vmatpush2.bf16.xpose.msra.mxu0 0
        %2200 = vmatprep.subr.bf16.mxu0 0
        %2201 = vmatpush2.bf16.xpose.msra.mxu0 0
        %2202 = vmatprep.subr.bf16.mxu0 0
        %2203 = vmatpush2.bf16.xpose.msra.mxu0 0
        %2204 = vmatprep.subr.bf16.mxu0 0
        %2205 = vmatpush2.bf16.xpose.msra.mxu0 0
        %2206 = vmatprep.subr.bf16.mxu0 0
        %2207 = vmatpush2.bf16.xpose.msra.mxu0 0
        %2208 = vmatprep.subr.bf16.mxu0 0
        %2209 = vmatpush2.bf16.xpose.msra.mxu0 0
        %2210 = vmatprep.mubr.bf16.mxu0 0
        %2211 = vmatmul.mubr.bf16.gmra.mxu0 %v2173
        %v2212 = vpop.f32.mrf.mxu0
        %v2213 = vadd.f32 %v645, %v2212
        %v2214 = vpop.f32.mrf.mxu0
        %v2215 = vpop.f32.mrf.mxu0
        %v2216 = vpop.f32.mrf.mxu0
        %2217 = vdwg.mxu0
        %v2218 = vsel %vm755, %v2213, -inf
        %2219 = vmax.xlane.f32.xlu0 %v2218
        %v2220 = vpop.xlane.xlu0 %2219
        %v2221 = vsub.f32 %v2213, %v2220
        %v2222 = vmul.f32 %v2221, 1.442695
        %v2223 = vpow.pop %v2222
        %v2224 = vsel %vm755, %v2223, 0.0
        %2225 = vadd.xlane.f32.xlu0 %v2224
        %v2226 = vpop.xlane.xlu0 %2225
        %v2227 = vrcp.pop %v2226
        %v2228 = vmul.f32 %v2223, %v2227
        %v2229 = vpack.c.bf16 %v2228, %v2228
        %2230 = vrot.lane.b32.xlu0 %v1692, 40
        %v2231 = vpop.permute.xlu0 %2230
        %v2233 = vsel %vm755, %v2229, 0
        %v2236 = vsel %vm819, %v2231, 0
        %2238 = vmatprep.subr.bf16.mxu0 0
        %2239 = vmatpush1.bf16.msra.mxu0 0
        %2240 = vmatprep.subr.bf16.mxu0 0
        %2241 = vmatpush1.bf16.msra.mxu0 0
        %2242 = vmatprep.subr.bf16.mxu0 0
        %2243 = vmatpush1.bf16.msra.mxu0 0
        %2244 = vmatprep.subr.bf16.mxu0 0
        %2245 = vmatpush1.bf16.msra.mxu0 0
        %2246 = vmatprep.subr.bf16.mxu0 0
        %2247 = vmatpush1.bf16.msra.mxu0 0
        %2248 = vmatprep.subr.bf16.mxu0 0
        %2249 = vmatpush1.bf16.msra.mxu0 0
        %2250 = vmatprep.subr.bf16.mxu0 0
        %2251 = vmatpush1.bf16.msra.mxu0 0
        %2252 = vmatprep.subr.bf16.mxu0 0
        %2253 = vmatpush1.bf16.msra.mxu0 %v2236
        %2254 = vmatprep.subr.bf16.mxu0 0
        %2255 = vmatpush2.bf16.msra.mxu0 0
        %2256 = vmatprep.subr.bf16.mxu0 0
        %2257 = vmatpush2.bf16.msra.mxu0 0
        %2258 = vmatprep.subr.bf16.mxu0 0
        %2259 = vmatpush2.bf16.msra.mxu0 0
        %2260 = vmatprep.subr.bf16.mxu0 0
        %2261 = vmatpush2.bf16.msra.mxu0 0
        %2262 = vmatprep.subr.bf16.mxu0 0
        %2263 = vmatpush2.bf16.msra.mxu0 0
        %2264 = vmatprep.subr.bf16.mxu0 0
        %2265 = vmatpush2.bf16.msra.mxu0 0
        %2266 = vmatprep.subr.bf16.mxu0 0
        %2267 = vmatpush2.bf16.msra.mxu0 0
        %2268 = vmatprep.subr.bf16.mxu0 0
        %2269 = vmatpush2.bf16.msra.mxu0 0
        %2270 = vmatprep.mubr.bf16.mxu0 0
        %2271 = vmatmul.mubr.bf16.gmra.mxu0 %v2233
        %v2272 = vpop.f32.mrf.mxu0
        %v2273 = vadd.f32 0.0, %v2272
        %v2274 = vpop.f32.mrf.mxu0
        %v2275 = vpop.f32.mrf.mxu0
        %v2276 = vpop.f32.mrf.mxu0
        %2277 = vdwg.mxu0
        %v2278 = vpack.c.bf16 %v2273, %v2273
        %v2279 = vpack.c.bf16 %v1690, %v1690
        %v2281 = vsel %vm755, %v2278, 0
        %v2284 = vsel %vm819, %v2279, 0
        %2286 = vmatprep.subr.bf16.mxu0 0
        %2287 = vmatpush1.bf16.msra.mxu0 0
        %2288 = vmatprep.subr.bf16.mxu0 0
        %2289 = vmatpush1.bf16.msra.mxu0 0
        %2290 = vmatprep.subr.bf16.mxu0 0
        %2291 = vmatpush1.bf16.msra.mxu0 0
        %2292 = vmatprep.subr.bf16.mxu0 0
        %2293 = vmatpush1.bf16.msra.mxu0 0
        %2294 = vmatprep.subr.bf16.mxu0 0
        %2295 = vmatpush1.bf16.msra.mxu0 0
        %2296 = vmatprep.subr.bf16.mxu0 0
        %2297 = vmatpush1.bf16.msra.mxu0 0
        %2298 = vmatprep.subr.bf16.mxu0 0
        %2299 = vmatpush1.bf16.msra.mxu0 0
        %2300 = vmatprep.subr.bf16.mxu0 0
        %2301 = vmatpush1.bf16.msra.mxu0 %v2284
        %2302 = vmatprep.subr.bf16.mxu0 0
        %2303 = vmatpush2.bf16.msra.mxu0 0
        %2304 = vmatprep.subr.bf16.mxu0 0
        %2305 = vmatpush2.bf16.msra.mxu0 0
        %2306 = vmatprep.subr.bf16.mxu0 0
        %2307 = vmatpush2.bf16.msra.mxu0 0
        %2308 = vmatprep.subr.bf16.mxu0 0
        %2309 = vmatpush2.bf16.msra.mxu0 0
        %2310 = vmatprep.subr.bf16.mxu0 0
        %2311 = vmatpush2.bf16.msra.mxu0 0
        %2312 = vmatprep.subr.bf16.mxu0 0
        %2313 = vmatpush2.bf16.msra.mxu0 0
        %2314 = vmatprep.subr.bf16.mxu0 0
        %2315 = vmatpush2.bf16.msra.mxu0 0
        %2316 = vmatprep.subr.bf16.mxu0 0
        %2317 = vmatpush2.bf16.msra.mxu0 0
        %2318 = vmatprep.mubr.bf16.mxu0 0
        %2319 = vmatmul.mubr.bf16.gmra.mxu0 %v2281
        %v2320 = vpop.f32.mrf.mxu0
        %v2321 = vadd.f32 0.0, %v2320
        %v2322 = vpop.f32.mrf.mxu0
        %v2323 = vpop.f32.mrf.mxu0
        %v2324 = vpop.f32.mrf.mxu0
        %2325 = vdwg.mxu0
        %v2326 = vadd.f32 %v2167, %v2321
        %s2327 = scalar_lea.vmem %s7, 1
        %v2328 = vld [vmem:[%s2327] sm:$0x1]
        %v2330 = vlaneseq
        %v2331 = vshrl.u32 %v2330, 7
        %v2332 = vsub.s32 0, %v2331
        %v2333 = vrot.slane %v2328, %v2332
        %v2335 = vadd.f32 %v2326, %v2333
        %v2336 = vadd.f32 %v2335, %v1615
        %s2337 = scalar_lea.vmem %s8, 1
        %v2338 = vld [vmem:[%s2337] sm:$0x1]
        %s2339 = scalar_lea.vmem %s9, 1
        %v2340 = vld [vmem:[%s2339] sm:$0x1]
        %v2341 = vsel %vm649, %v2336, 0.0
        %2342 = vadd.xlane.f32.xlu0 %v2341
        %v2343 = vpop.xlane.xlu0 %2342
        %v2344 = vmul.f32 %v2343, %v653
        %v2345 = vsub.f32 %v2336, %v2344
        %v2346 = vmul.f32 %v2345, %v2345
        %v2347 = vsel %vm649, %v2346, 0.0
        %2348 = vadd.xlane.f32.xlu0 %v2347
        %v2349 = vpop.xlane.xlu0 %2348
        %v2350 = vmul.f32 %v2349, %v653
        %v2351 = vadd.f32 %v2350, 1e-12
        %v2352 = vrsqrt.pop %v2351
        %v2353 = vmul.f32 %v2345, %v2352
        %v2355 = vlaneseq
        %v2356 = vshrl.u32 %v2355, 7
        %v2357 = vsub.s32 0, %v2356
        %v2358 = vrot.slane %v2338, %v2357
        %v2360 = vmul.f32 %v2353, %v2358
        %v2362 = vlaneseq
        %v2363 = vshrl.u32 %v2362, 7
        %v2364 = vsub.s32 0, %v2363
        %v2365 = vrot.slane %v2340, %v2364
        %v2367 = vadd.f32 %v2360, %v2365
        %s2368 = scalar_lea.vmem %s10, 16
        %v2369 = vld [vmem:[%s2368] sm:$0xf]
        %v2370 = vld [vmem:[%s2368 + $0x4] sm:$0xf]
        %v2371 = vld [vmem:[%s2368 + $0x8] sm:$0xf]
        %v2372 = vld [vmem:[%s2368 + $0xc] sm:$0xf]
        %v2373 = vpack.c.bf16 %v2367, %v2367
        %s2374 = scalar_lea.vmem %s11, 1
        %v2375 = vld [vmem:[%s2374] sm:$0x1]
        %v2377 = vlaneseq
        %v2378 = vshrl.u32 %v2377, 7
        %v2379 = vsub.s32 0, %v2378
        %v2380 = vrot.slane %v2375, %v2379
        %v2386 = vunpack.c.l.b16 %v2369
        %v2387 = vunpack.c.l.b16 %v2370
        %v2388 = vunpack.c.l.b16 %v2371
        %v2389 = vunpack.c.l.b16 %v2372
        %v2390 = vpack.c.b16 %v2387, %v2386
        %v2391 = vpack.c.b16 %v2389, %v2388
        %v2395 = vsel %vm649, %v2373, 0
        %2397 = vmatprep.subr.bf16.mxu0 0
        %2398 = vmatpush1.bf16.msra.mxu0 0
        %2399 = vmatprep.subr.bf16.mxu0 0
        %2400 = vmatpush1.bf16.msra.mxu0 0
        %2401 = vmatprep.subr.bf16.mxu0 0
        %2402 = vmatpush1.bf16.msra.mxu0 0
        %2403 = vmatprep.subr.bf16.mxu0 0
        %2404 = vmatpush1.bf16.msra.mxu0 0
        %2405 = vmatprep.subr.bf16.mxu0 0
        %2406 = vmatpush1.bf16.msra.mxu0 0
        %2407 = vmatprep.subr.bf16.mxu0 0
        %2408 = vmatpush1.bf16.msra.mxu0 0
        %2409 = vmatprep.subr.bf16.mxu0 0
        %2410 = vmatpush1.bf16.msra.mxu0 %v2391
        %2411 = vmatprep.subr.bf16.mxu0 0
        %2412 = vmatpush1.bf16.msra.mxu0 %v2390
        %2413 = vmatprep.subr.bf16.mxu0 0
        %2414 = vmatpush2.bf16.msra.mxu0 0
        %2415 = vmatprep.subr.bf16.mxu0 0
        %2416 = vmatpush2.bf16.msra.mxu0 0
        %2417 = vmatprep.subr.bf16.mxu0 0
        %2418 = vmatpush2.bf16.msra.mxu0 0
        %2419 = vmatprep.subr.bf16.mxu0 0
        %2420 = vmatpush2.bf16.msra.mxu0 0
        %2421 = vmatprep.subr.bf16.mxu0 0
        %2422 = vmatpush2.bf16.msra.mxu0 0
        %2423 = vmatprep.subr.bf16.mxu0 0
        %2424 = vmatpush2.bf16.msra.mxu0 0
        %2425 = vmatprep.subr.bf16.mxu0 0
        %2426 = vmatpush2.bf16.msra.mxu0 0
        %2427 = vmatprep.subr.bf16.mxu0 0
        %2428 = vmatpush2.bf16.msra.mxu0 0
        %2429 = vmatprep.mubr.bf16.mxu0 0
        %2430 = vmatmul.mubr.bf16.gmra.mxu0 %v2395
        %v2431 = vpop.f32.mrf.mxu0
        %v2432 = vadd.f32 %v2380, %v2431
        %v2433 = vpop.f32.mrf.mxu0
        %v2434 = vpop.f32.mrf.mxu0
        %v2435 = vpop.f32.mrf.mxu0
        %2436 = vdwg.mxu0
        %v2437 = vmul.f32 %v2432, 0.5
        %v2438 = vmul.f32 %v2432, 0.044715
        %v2439 = vmul.f32 %v2438, %v2432
        %v2440 = vmul.f32 %v2439, %v2432
        %v2441 = vadd.f32 %v2432, %v2440
        %v2442 = vmul.f32 %v2441, 0.7978846
        %v2443 = vtanh.pop %v2442
        %v2444 = vadd.f32 %v2443, 1.0
        %v2445 = vmul.f32 %v2437, %v2444
        %s2446 = scalar_lea.vmem %s12, 32
        %v2447 = vld [vmem:[%s2446] sm:$0xf]
        %v2448 = vld [vmem:[%s2446 + $0x4] sm:$0xf]
        %v2449 = vld [vmem:[%s2446 + $0x8] sm:$0xf]
        %v2450 = vld [vmem:[%s2446 + $0xc] sm:$0xf]
        %v2451 = vld [vmem:[%s2446 + $0x10] sm:$0xf]
        %v2452 = vld [vmem:[%s2446 + $0x14] sm:$0xf]
        %v2453 = vld [vmem:[%s2446 + $0x18] sm:$0xf]
        %v2454 = vld [vmem:[%s2446 + $0x1c] sm:$0xf]
        %v2455 = vpack.c.bf16 %v2445, %v2445
        %s2456 = scalar_lea.vmem %s13, 1
        %v2457 = vld [vmem:[%s2456] sm:$0x1]
        %v2459 = vlaneseq
        %v2460 = vshrl.u32 %v2459, 7
        %v2461 = vsub.s32 0, %v2460
        %v2462 = vrot.slane %v2457, %v2461
        %v2472 = vunpack.c.l.b16 %v2447
        %v2473 = vunpack.c.l.b16 %v2448
        %v2474 = vunpack.c.l.b16 %v2449
        %v2475 = vunpack.c.l.b16 %v2450
        %v2476 = vunpack.c.l.b16 %v2451
        %v2477 = vunpack.c.l.b16 %v2452
        %v2478 = vunpack.c.l.b16 %v2453
        %v2479 = vunpack.c.l.b16 %v2454
        %v2480 = vpack.c.b16 %v2473, %v2472
        %v2481 = vpack.c.b16 %v2475, %v2474
        %v2482 = vpack.c.b16 %v2477, %v2476
        %v2483 = vpack.c.b16 %v2479, %v2478
        %v2489 = vsel %vm1542, %v2455, 0
        %2491 = vmatprep.subr.bf16.mxu0 0
        %2492 = vmatpush1.bf16.msra.mxu0 0
        %2493 = vmatprep.subr.bf16.mxu0 0
        %2494 = vmatpush1.bf16.msra.mxu0 0
        %2495 = vmatprep.subr.bf16.mxu0 0
        %2496 = vmatpush1.bf16.msra.mxu0 0
        %2497 = vmatprep.subr.bf16.mxu0 0
        %2498 = vmatpush1.bf16.msra.mxu0 0
        %2499 = vmatprep.subr.bf16.mxu0 0
        %2500 = vmatpush1.bf16.msra.mxu0 %v2483
        %2501 = vmatprep.subr.bf16.mxu0 0
        %2502 = vmatpush1.bf16.msra.mxu0 %v2482
        %2503 = vmatprep.subr.bf16.mxu0 0
        %2504 = vmatpush1.bf16.msra.mxu0 %v2481
        %2505 = vmatprep.subr.bf16.mxu0 0
        %2506 = vmatpush1.bf16.msra.mxu0 %v2480
        %2507 = vmatprep.subr.bf16.mxu0 0
        %2508 = vmatpush2.bf16.msra.mxu0 0
        %2509 = vmatprep.subr.bf16.mxu0 0
        %2510 = vmatpush2.bf16.msra.mxu0 0
        %2511 = vmatprep.subr.bf16.mxu0 0
        %2512 = vmatpush2.bf16.msra.mxu0 0
        %2513 = vmatprep.subr.bf16.mxu0 0
        %2514 = vmatpush2.bf16.msra.mxu0 0
        %2515 = vmatprep.subr.bf16.mxu0 0
        %2516 = vmatpush2.bf16.msra.mxu0 0
        %2517 = vmatprep.subr.bf16.mxu0 0
        %2518 = vmatpush2.bf16.msra.mxu0 0
        %2519 = vmatprep.subr.bf16.mxu0 0
        %2520 = vmatpush2.bf16.msra.mxu0 0
        %2521 = vmatprep.subr.bf16.mxu0 0
        %2522 = vmatpush2.bf16.msra.mxu0 0
        %2523 = vmatprep.mubr.bf16.mxu0 0
        %2524 = vmatmul.mubr.bf16.gmra.mxu0 %v2489
        %v2525 = vpop.f32.mrf.mxu0
        %v2526 = vadd.f32 %v2462, %v2525
        %v2527 = vpop.f32.mrf.mxu0
        %v2528 = vpop.f32.mrf.mxu0
        %v2529 = vpop.f32.mrf.mxu0
        %2530 = vdwg.mxu0
        %v2531 = vadd.f32 %v2526, %v2367
        %s2532 = scalar_lea.vmem %s14, 1
        %v2533 = vld [vmem:[%s2532] sm:$0x1]
        %s2534 = scalar_lea.vmem %s15, 1
        %v2535 = vld [vmem:[%s2534] sm:$0x1]
        %v2536 = vsel %vm649, %v2531, 0.0
        %2537 = vadd.xlane.f32.xlu0 %v2536
        %v2538 = vpop.xlane.xlu0 %2537
        %v2539 = vmul.f32 %v2538, %v653
        %v2540 = vsub.f32 %v2531, %v2539
        %v2541 = vmul.f32 %v2540, %v2540
        %v2542 = vsel %vm649, %v2541, 0.0
        %2543 = vadd.xlane.f32.xlu0 %v2542
        %v2544 = vpop.xlane.xlu0 %2543
        %v2545 = vmul.f32 %v2544, %v653
        %v2546 = vadd.f32 %v2545, 1e-12
        %v2547 = vrsqrt.pop %v2546
        %v2548 = vmul.f32 %v2540, %v2547
        %v2550 = vlaneseq
        %v2551 = vshrl.u32 %v2550, 7
        %v2552 = vsub.s32 0, %v2551
        %v2553 = vrot.slane %v2533, %v2552
        %v2555 = vmul.f32 %v2548, %v2553
        %v2557 = vlaneseq
        %v2558 = vshrl.u32 %v2557, 7
        %v2559 = vsub.s32 0, %v2558
        %v2560 = vrot.slane %v2535, %v2559
        %v2562 = vadd.f32 %v2555, %v2560
        %v2563 = vld [vmem:[%s16] sm:$0xf]
        %v2564 = vld [vmem:[%s16 + $0x4] sm:$0xf]
        %v2565 = vld [vmem:[%s16 + $0x8] sm:$0xf]
        %v2566 = vld [vmem:[%s16 + $0xc] sm:$0xf]
        %v2567 = vpack.c.bf16 %v2562, %v2562
        %v2568 = vld [vmem:[%s17] sm:$0x1]
        %v2573 = vunpack.c.l.b16 %v2563
        %v2574 = vunpack.c.l.b16 %v2564
        %v2575 = vunpack.c.l.b16 %v2565
        %v2576 = vunpack.c.l.b16 %v2566
        %v2577 = vpack.c.b16 %v2574, %v2573
        %v2578 = vpack.c.b16 %v2576, %v2575
        %v2582 = vsel %vm649, %v2567, 0
        %2584 = vmatprep.subr.bf16.mxu0 0
        %2585 = vmatpush1.bf16.msra.mxu0 0
        %2586 = vmatprep.subr.bf16.mxu0 0
        %2587 = vmatpush1.bf16.msra.mxu0 0
        %2588 = vmatprep.subr.bf16.mxu0 0
        %2589 = vmatpush1.bf16.msra.mxu0 0
        %2590 = vmatprep.subr.bf16.mxu0 0
        %2591 = vmatpush1.bf16.msra.mxu0 0
        %2592 = vmatprep.subr.bf16.mxu0 0
        %2593 = vmatpush1.bf16.msra.mxu0 0
        %2594 = vmatprep.subr.bf16.mxu0 0
        %2595 = vmatpush1.bf16.msra.mxu0 0
        %2596 = vmatprep.subr.bf16.mxu0 0
        %2597 = vmatpush1.bf16.msra.mxu0 %v2578
        %2598 = vmatprep.subr.bf16.mxu0 0
        %2599 = vmatpush1.bf16.msra.mxu0 %v2577
        %2600 = vmatprep.subr.bf16.mxu0 0
        %2601 = vmatpush2.bf16.msra.mxu0 0
        %2602 = vmatprep.subr.bf16.mxu0 0
        %2603 = vmatpush2.bf16.msra.mxu0 0
        %2604 = vmatprep.subr.bf16.mxu0 0
        %2605 = vmatpush2.bf16.msra.mxu0 0
        %2606 = vmatprep.subr.bf16.mxu0 0
        %2607 = vmatpush2.bf16.msra.mxu0 0
        %2608 = vmatprep.subr.bf16.mxu0 0
        %2609 = vmatpush2.bf16.msra.mxu0 0
        %2610 = vmatprep.subr.bf16.mxu0 0
        %2611 = vmatpush2.bf16.msra.mxu0 0
        %2612 = vmatprep.subr.bf16.mxu0 0
        %2613 = vmatpush2.bf16.msra.mxu0 0
        %2614 = vmatprep.subr.bf16.mxu0 0
        %2615 = vmatpush2.bf16.msra.mxu0 0
        %2616 = vmatprep.mubr.bf16.mxu0 0
        %2617 = vmatmul.mubr.bf16.gmra.mxu0 %v2582
        %v2618 = vpop.f32.mrf.mxu0
        %v2619 = vadd.f32 %v2568, %v2618
        %v2620 = vpop.f32.mrf.mxu0
        %v2621 = vpop.f32.mrf.mxu0
        %v2622 = vpop.f32.mrf.mxu0
        %2623 = vdwg.mxu0
        %v2624 = vtanh.pop %v2619
        %v2625 = vld [vmem:[%s18] sm:$0xf]
        %v2626 = vld [vmem:[%s18 + $0x4] sm:$0xf]
        %v2627 = vld [vmem:[%s18 + $0x8] sm:$0xf]
        %v2628 = vld [vmem:[%s18 + $0xc] sm:$0xf]
        %v2629 = vpack.c.bf16 %v2624, %v2624
        %v2630 = vld [vmem:[%s19] sm:$0x1]
        %v2635 = vunpack.c.l.b16 %v2625
        %v2636 = vunpack.c.l.b16 %v2626
        %v2637 = vunpack.c.l.b16 %v2627
        %v2638 = vunpack.c.l.b16 %v2628
        %v2639 = vpack.c.b16 %v2636, %v2635
        %v2640 = vpack.c.b16 %v2638, %v2637
        %v2644 = vsel %vm649, %v2629, 0
        %2646 = vmatprep.subr.bf16.mxu0 0
        %2647 = vmatpush1.bf16.msra.mxu0 0
        %2648 = vmatprep.subr.bf16.mxu0 0
        %2649 = vmatpush1.bf16.msra.mxu0 0
        %2650 = vmatprep.subr.bf16.mxu0 0
        %2651 = vmatpush1.bf16.msra.mxu0 0
        %2652 = vmatprep.subr.bf16.mxu0 0
        %2653 = vmatpush1.bf16.msra.mxu0 0
        %2654 = vmatprep.subr.bf16.mxu0 0
        %2655 = vmatpush1.bf16.msra.mxu0 0
        %2656 = vmatprep.subr.bf16.mxu0 0
        %2657 = vmatpush1.bf16.msra.mxu0 0
        %2658 = vmatprep.subr.bf16.mxu0 0
        %2659 = vmatpush1.bf16.msra.mxu0 %v2640
        %2660 = vmatprep.subr.bf16.mxu0 0
        %2661 = vmatpush1.bf16.msra.mxu0 %v2639
        %2662 = vmatprep.subr.bf16.mxu0 0
        %2663 = vmatpush2.bf16.msra.mxu0 0
        %2664 = vmatprep.subr.bf16.mxu0 0
        %2665 = vmatpush2.bf16.msra.mxu0 0
        %2666 = vmatprep.subr.bf16.mxu0 0
        %2667 = vmatpush2.bf16.msra.mxu0 0
        %2668 = vmatprep.subr.bf16.mxu0 0
        %2669 = vmatpush2.bf16.msra.mxu0 0
        %2670 = vmatprep.subr.bf16.mxu0 0
        %2671 = vmatpush2.bf16.msra.mxu0 0
        %2672 = vmatprep.subr.bf16.mxu0 0
        %2673 = vmatpush2.bf16.msra.mxu0 0
        %2674 = vmatprep.subr.bf16.mxu0 0
        %2675 = vmatpush2.bf16.msra.mxu0 0
        %2676 = vmatprep.subr.bf16.mxu0 0
        %2677 = vmatpush2.bf16.msra.mxu0 0
        %2678 = vmatprep.mubr.bf16.mxu0 0
        %2679 = vmatmul.mubr.bf16.gmra.mxu0 %v2644
        %v2680 = vpop.f32.mrf.mxu0
        %v2681 = vadd.f32 %v2630, %v2680
        %v2682 = vpop.f32.mrf.mxu0
        %v2683 = vpop.f32.mrf.mxu0
        %v2684 = vpop.f32.mrf.mxu0
        %2685 = vdwg.mxu0
        %vm2686 = vcmask 16384
        %2687 = vst.msk [vmem:[%s630] sm:$0x1] %vm2686, %v2681
        %s2688 = sand.u32 %s472, 1
        %s2689 = scalar_lea.sflag [#allocation3], %s2688
        %s2690 = sand.u32 %s472, 1
        %s2691 = scalar_lea.vmem [#allocation2], %s2690
        // Predicated region
        $region101: #{sequence_bert_forward.1} parent=99 // pred_check
          %p2692 = pneg %p482
        $region102: #{sequence_bert_forward.1} parent=99 // pred_check_branch
          %2694 = sbr.rel (%p2692) target = $region104
        $region103: #{sequence_bert_forward.1} parent=99 // pred_region
          %s2696 = ssub.s32 16, 16
          %2697 = vsyncadd %s2689, %s2696
          %s2698 = smul.addr %s34, 16
          %s2699 = scalar_lea.hbm %s20, %s2698
          %s2701 = sshll.u32 %s2691, 4
          %s2702 = int_to_ptr.vmem [resolvable:$true] %s2701
          %2704 = dma.vmem_to_hbm [thread:$0]  %s2702, 16, %s2699, %s2689
        $region104: #{sequence_bert_forward.1} parent=99 // pred_fallthru
          _
      $region100: #{sequence_bert_forward.1} parent=5 // pred_fallthru
        _
      %p2705 = scmp.le.s32.totalorder 2, %s29
      // Predicated region
      $region105: #{sequence_bert_forward.1} parent=5 // pred_check
        %p2706 = pneg %p2705
      $region106: #{sequence_bert_forward.1} parent=5 // pred_check_branch
        %2708 = sbr.rel (%p2706) target = $region108
      $region107: #{sequence_bert_forward.1} parent=5 // pred_region
        %s2709 = ssub.s32 %s29, 2
        // Predicated region
        $region109: #{sequence_bert_forward.1} parent=107 // pred_check
          %p2710 = pneg %p488
        $region110: #{sequence_bert_forward.1} parent=107 // pred_check_branch
          %2712 = sbr.rel (%p2710) target = $region112
        $region111: #{sequence_bert_forward.1} parent=107 // pred_region
          %s2713 = sand.u32 %s473, 1
          %s2714 = scalar_lea.sflag [#allocation3], %s2713
          %s2715 = sand.u32 %s473, 1
          %s2716 = scalar_lea.vmem [#allocation2], %s2715
          %2717 = dma.done %s2714, 16
        $region112: #{sequence_bert_forward.1} parent=107 // pred_fallthru
          _
      $region108: #{sequence_bert_forward.1} parent=5 // pred_fallthru
        _
    $region6: #{sequence_bert_forward.1} parent=1 // loop_footer
      %s33 = sadd.s32 1, %s29
    $region7: #{sequence_bert_forward.1} parent=1 // loop_footer_branch
      %28 = sbr.rel target = $region3
    $region8: #{sequence_bert_forward.1} parent=1 // loop_exit
      _
    %2718 = vsyncpa [#allocation3], 1
    %s2719 = scalar_lea.sflag [#allocation3], 1
    %2720 = vsyncpa %s2719, 1

</llo_original>
